<compile_context>
chip_gen: v6e
topology: v6e:2x2x1
jax: 0.10.0
libtpu: 0.0.40
codegen_flags: <defaults>
</compile_context>

<pallas_src>
import functools

import jax
import jax.numpy as jnp
from jax import lax
from jax.experimental import pallas as pl
from jax.experimental.pallas import tpu as pltpu

# TODO(synk): reference SiglipEncoderLayer.forward omits both the post-MLP
# residual add and the `return`; we follow the evident intent (standard Siglip
# encoder layer).  Flip to False for a literal-ops reading of the code.
_APPLY_FINAL_RESIDUAL = True


def _encoder_kernel(
    x_ref,          # (Bb, S, D)   input embeddings (read only at layer 0)
    wqkv_ref,       # (1, D, 3D)   fused q/k/v projection weight
    bqkv_ref,       # (1, 1, 3D)   fused q/k/v bias
    wo_ref,         # (1, D, D)    out_proj weight
    vecs_ref,       # (1, 6, D)    [ln1_g, ln1_b, b_out, ln2_g, ln2_b, b_fc2]
    w1_ref,         # (1, D, F)    fc1 weight
    b1_ref,         # (1, 1, F)    fc1 bias
    w2_ref,         # (1, F, D)    fc2 weight
    o_ref,          # (Bb, S, D)   output (written only at the last layer)
    h_scr,          # VMEM (Bb*S, D) f32 carried hidden state
    *, num_heads, eps):
    """One (batch-block, layer) grid step of the Siglip encoder."""
    layer = pl.program_id(1)
    n_layers = pl.num_programs(1)

    Bb, S, D = x_ref.shape
    N = Bb * S
    hd = D // num_heads
    scale = float(hd) ** -0.5

    # Initialize the carried hidden state (f32 VMEM scratch) at layer 0.
    @pl.when(layer == 0)
    def _():
        h_scr[...] = x_ref[...].reshape(N, D).astype(jnp.float32)

    h = h_scr[...]                                   # (N, D) f32

    vecs = vecs_ref[0]                               # (6, D)
    ln1_g, ln1_b = vecs[0:1, :], vecs[1:2, :]
    b_out = vecs[2:3, :]
    ln2_g, ln2_b = vecs[3:4, :], vecs[4:5, :]
    b_fc2 = vecs[5:6, :]

    def layer_norm(x, g, b):
        mu = jnp.mean(x, axis=-1, keepdims=True)
        xc = x - mu
        var = jnp.mean(xc * xc, axis=-1, keepdims=True)
        return xc * lax.rsqrt(var + eps) * g + b

    # ---- LayerNorm1 + multi-head self-attention -----------------------------
    residual = h
    hn = layer_norm(h, ln1_g, ln1_b)

    # Fused QKV projection: one (N, D) @ (D, 3D) MXU pass.
    qkv = jnp.dot(hn, wqkv_ref[0], preferred_element_type=jnp.float32) + bqkv_ref[0]
    q = qkv[:, :D] * scale                           # fold attention scale once
    k = qkv[:, D:2 * D]
    v = qkv[:, 2 * D:]

    qb = q.reshape(Bb, S, D)
    kb = k.reshape(Bb, S, D)
    vb = v.reshape(Bb, S, D)

    # TODO(synk): for large num_heads / seq_len, switch this static unroll to a
    # lax.fori_loop writing into a VMEM scratch to bound live ranges.
    heads = []
    for hix in range(num_heads):
        sl = slice(hix * hd, (hix + 1) * hd)
        qh, kh, vh = qb[:, :, sl], kb[:, :, sl], vb[:, :, sl]   # (Bb, S, hd)
        # scores[b, s, t] = <q_bs, k_bt>: contract head_dim -> no transposes.
        scores = jnp.einsum("bqd,bkd->bqk", qh, kh,
                            preferred_element_type=jnp.float32)
        m = jnp.max(scores, axis=-1, keepdims=True)
        e = jnp.exp(scores - m)
        # Reciprocal-multiply on the EUP slot instead of a VALU divide.
        p = e * pl.reciprocal(jnp.sum(e, axis=-1, keepdims=True), approx=True)
        # attention_dropout == 0.0 / eval mode -> identity (skipped).
        heads.append(jnp.einsum("bqk,bkd->bqd", p, vh,
                                preferred_element_type=jnp.float32))

    # Concatenate heads and do ONE full-depth (N, D) @ (D, D) output projection.
    attn = jnp.concatenate(heads, axis=-1).reshape(N, D)
    attn_out = jnp.dot(attn, wo_ref[0], preferred_element_type=jnp.float32) + b_out
    h = residual + attn_out

    # ---- LayerNorm2 + MLP (gelu, tanh approximation) -------------------------
    residual2 = h
    hn2 = layer_norm(h, ln2_g, ln2_b)
    x1 = jnp.dot(hn2, w1_ref[0], preferred_element_type=jnp.float32) + b1_ref[0]
    c = 0.7978845608028654  # sqrt(2/pi)
    gelu = 0.5 * x1 * (1.0 + jnp.tanh(c * (x1 + 0.044715 * x1 * x1 * x1)))
    x2 = jnp.dot(gelu, w2_ref[0], preferred_element_type=jnp.float32) + b_fc2

    new_h = residual2 + x2 if _APPLY_FINAL_RESIDUAL else x2

    # Carry in f32; write the output exactly once (lane-dense, unmasked store).
    h_scr[...] = new_h

    @pl.when(layer == n_layers - 1)
    def _():
        o_ref[...] = new_h.reshape(Bb, S, D).astype(o_ref.dtype)


def pack_siglip_params(params):
    """Fuse q/k/v weights & biases, pack the small per-layer D-vectors.

    Input: the 16-tuple of layer-stacked parameters (see _reference for the
    layout).  Linear weights are stored (in_features, out_features)."""
    (ln1_g, ln1_b, wq, bq, wk, bk, wv, bv, wo, bo,
     ln2_g, ln2_b, w1, b1, w2, b2) = params
    wqkv = jnp.concatenate([wq, wk, wv], axis=-1)                 # (L, D, 3D)
    bqkv = jnp.concatenate([bq, bk, bv], axis=-1)                 # (L, 1, 3D)
    vecs = jnp.concatenate([ln1_g, ln1_b, bo, ln2_g, ln2_b, b2], axis=1)  # (L, 6, D)
    # TODO(synk): for real Siglip sizes on v6e/v7x, cast the big weight stacks
    # (wqkv, wo, w1, w2) to bf16 here (halves weight DMA + VMEM; keep
    # preferred_element_type=f32 in the kernel).
    return (wqkv, bqkv, wo, vecs, w1, b1, w2)


@functools.partial(jax.jit, static_argnames=("num_heads", "eps", "batch_block"))
def siglip_encoder(x, packed_params, *, num_heads, eps=1e-6, batch_block=None):
    """x: (B, S, D) hidden states.  packed_params: output of pack_siglip_params."""
    wqkv, bqkv, wo, vecs, w1, b1, w2 = packed_params
    B, S, D = x.shape
    L = wqkv.shape[0]
    F = w1.shape[-1]
    assert D % num_heads == 0

    # Block Bb batch elements per grid step: M = Bb*S for the token-wise GEMMs
    # and per-layer weights are streamed once per Bb elements.
    Bb = batch_block if batch_block is not None else (2 if B % 2 == 0 else 1)
    assert B % Bb == 0

    kernel = functools.partial(_encoder_kernel, num_heads=num_heads, eps=eps)

    # Advisory scheduling hint for XLA around the custom call.
    flops = int(B * L * (8 * S * D * D + 4 * S * S * D + 4 * S * D * F))
    transcendentals = int(B * L * (num_heads * S * S + S * F))
    bytes_accessed = int(2 * x.size * x.dtype.itemsize
                         + (B // Bb) * sum(int(p.size) * p.dtype.itemsize
                                           for p in packed_params))

    def wspec(shape):
        # Per-layer weight block, selected by the layer grid coordinate.
        return pl.BlockSpec((1,) + shape, lambda b, l: (l, 0, 0))

    # Explicit scoped-VMEM budget: weights x 2 buffers + activation blocks
    # + carry scratch + headroom for in-kernel intermediates.
    per_layer_weight_bytes = 4 * (D * 3 * D + 3 * D + D * D + 6 * D + D * F + F + F * D)
    act_bytes = 4 * Bb * S * D
    vmem_limit = int(2 * per_layer_weight_bytes + 5 * act_bytes + (16 << 20))
    vmem_limit = min(vmem_limit, 48 << 20)

    out = pl.pallas_call(
        kernel,
        out_shape=jax.ShapeDtypeStruct((B, S, D), x.dtype),
        grid_spec=pltpu.PrefetchScalarGridSpec(
            num_scalar_prefetch=0,
            grid=(B // Bb, L),
            in_specs=[
                pl.BlockSpec((Bb, S, D), lambda b, l: (b, 0, 0)),  # x
                wspec((D, 3 * D)),                                 # fused qkv W
                wspec((1, 3 * D)),                                 # fused qkv b
                wspec((D, D)),                                     # out_proj W
                wspec((6, D)),                                     # packed D-vectors
                wspec((D, F)), wspec((1, F)),                      # fc1 W, b
                wspec((F, D)),                                     # fc2 W
            ],
            out_specs=pl.BlockSpec((Bb, S, D), lambda b, l: (b, 0, 0)),
            scratch_shapes=[pltpu.VMEM((Bb * S, D), jnp.float32)],
        ),
        compiler_params=pltpu.CompilerParams(
            dimension_semantics=("parallel", "arbitrary"),
            vmem_limit_bytes=vmem_limit,
        ),
        cost_estimate=pl.CostEstimate(flops=flops,
                                      transcendentals=transcendentals,
                                      bytes_accessed=bytes_accessed),
    )(x, wqkv, bqkv, wo, vecs, w1, b1, w2)
    return out


def _reference(x, params, *, num_heads, eps=1e-6):
    """Pure-JAX reference mirroring the (intended) PyTorch forward."""
    (ln1_g, ln1_b, wq, bq, wk, bk, wv, bv, wo, bo,
     ln2_g, ln2_b, w1, b1, w2, b2) = params
    B, S, D = x.shape
    L = wq.shape[0]
    hd = D // num_heads
    scale = hd ** -0.5
    P = lax.Precision.HIGHEST

    def layer_norm(h, g, b):
        mu = jnp.mean(h, axis=-1, keepdims=True)
        var = jnp.mean((h - mu) ** 2, axis=-1, keepdims=True)
        return (h - mu) * lax.rsqrt(var + eps) * g + b

    h = x
    for l in range(L):
        residual = h
        hn = layer_norm(h, ln1_g[l], ln1_b[l])
        q = jnp.einsum("bsd,de->bse", hn, wq[l], precision=P) + bq[l]
        k = jnp.einsum("bsd,de->bse", hn, wk[l], precision=P) + bk[l]
        v = jnp.einsum("bsd,de->bse", hn, wv[l], precision=P) + bv[l]
        q = q.reshape(B, S, num_heads, hd).transpose(0, 2, 1, 3)
        k = k.reshape(B, S, num_heads, hd).transpose(0, 2, 1, 3)
        v = v.reshape(B, S, num_heads, hd).transpose(0, 2, 1, 3)
        scores = jnp.einsum("bhqd,bhkd->bhqk", q, k, precision=P) * scale
        attn = jax.nn.softmax(scores.astype(jnp.float32), axis=-1)
        ao = jnp.einsum("bhqk,bhkd->bhqd", attn, v, precision=P)
        ao = ao.transpose(0, 2, 1, 3).reshape(B, S, D)
        ao = jnp.einsum("bsd,de->bse", ao, wo[l], precision=P) + bo[l]
        h = residual + ao
        residual2 = h
        hn2 = layer_norm(h, ln2_g[l], ln2_b[l])
        x1 = jnp.einsum("bsd,df->bsf", hn2, w1[l], precision=P) + b1[l]
        g = 0.5 * x1 * (1.0 + jnp.tanh(0.7978845608028654 * (x1 + 0.044715 * x1 ** 3)))
        mlp_out = jnp.einsum("bsf,fd->bsd", g, w2[l], precision=P) + b2[l]
        h = residual2 + mlp_out if _APPLY_FINAL_RESIDUAL else mlp_out
    return h


if __name__ == "__main__":
    # Small synthetic SiglipVisionConfig: hidden_size=128, num_attention_heads=4,
    # intermediate_size=256, num_hidden_layers=2, seq_len (num patches) = 64,
    # batch = 4 (so 2 batch elements per grid step, parallel axis extent 2).
    B, S, D, H, F, L = 4, 64, 128, 4, 256, 2
    EPS = 1e-6

    key = jax.random.PRNGKey(0)
    keys = jax.random.split(key, 20)

    def nrm(k, shape, s):
        return jax.random.normal(k, shape, dtype=jnp.float32) * s

    x = jax.random.normal(keys[0], (B, S, D), dtype=jnp.float32)
    params = (
        1.0 + nrm(keys[1], (L, 1, D), 0.01),   # ln1 gamma
        nrm(keys[2], (L, 1, D), 0.01),         # ln1 beta
        nrm(keys[3], (L, D, D), 0.05), nrm(keys[4], (L, 1, D), 0.01),   # q_proj
        nrm(keys[5], (L, D, D), 0.05), nrm(keys[6], (L, 1, D), 0.01),   # k_proj
        nrm(keys[7], (L, D, D), 0.05), nrm(keys[8], (L, 1, D), 0.01),   # v_proj
        nrm(keys[9], (L, D, D), 0.05), nrm(keys[10], (L, 1, D), 0.01),  # out_proj
        1.0 + nrm(keys[11], (L, 1, D), 0.01),  # ln2 gamma
        nrm(keys[12], (L, 1, D), 0.01),        # ln2 beta
        nrm(keys[13], (L, D, F), 0.05), nrm(keys[14], (L, 1, F), 0.01),  # fc1
        nrm(keys[15], (L, F, D), 0.05), nrm(keys[16], (L, 1, D), 0.01),  # fc2
    )

    packed = pack_siglip_params(params)
    out = siglip_encoder(x, packed, num_heads=H, eps=EPS)
    out = jax.block_until_ready(out)

    ref = _reference(x, params, num_heads=H, eps=EPS)
    assert out.shape == (B, S, D), out.shape
    max_err = float(jnp.max(jnp.abs(out - ref)))
    # Slightly relaxed tolerance vs pure-f32: the softmax denominator uses the
    # EUP approximate reciprocal (pl.reciprocal(approx=True)).
    assert jnp.allclose(out, ref, atol=2e-3, rtol=2e-3), max_err

    print("KERNEL_OK")
</pallas_src>

<mosaic_0001>
module attributes {stable_mosaic.version = 11 : i64} {
  func.func @_encoder_kernel(%arg0: i32, %arg1: i32, %arg2: memref<2x64x128xf32, #tpu.memory_space<vmem>>, %arg3: memref<1x128x384xf32, #tpu.memory_space<vmem>>, %arg4: memref<1x1x384xf32, #tpu.memory_space<vmem>>, %arg5: memref<1x128x128xf32, #tpu.memory_space<vmem>>, %arg6: memref<1x6x128xf32, #tpu.memory_space<vmem>>, %arg7: memref<1x128x256xf32, #tpu.memory_space<vmem>>, %arg8: memref<1x1x256xf32, #tpu.memory_space<vmem>>, %arg9: memref<1x256x128xf32, #tpu.memory_space<vmem>>, %arg10: memref<2x64x128xf32, #tpu.memory_space<vmem>>, %arg11: memref<128x128xf32, #tpu.memory_space<vmem>>) attributes {dimension_semantics = [#tpu.dimension_semantics<parallel>, #tpu.dimension_semantics<arbitrary>], iteration_bounds = array<i64: 2, 2>, scalar_prefetch = 0 : i64, scratch_operands = 1 : i64, tpu.core_type = #tpu.core_type<tc>, window_params = [{transform_indices = @transform_0, window_bounds = array<i64: 2, 64, 128>}, {transform_indices = @transform_1, window_bounds = array<i64: 1, 128, 384>}, {transform_indices = @transform_2, window_bounds = array<i64: 1, 1, 384>}, {transform_indices = @transform_3, window_bounds = array<i64: 1, 128, 128>}, {transform_indices = @transform_4, window_bounds = array<i64: 1, 6, 128>}, {transform_indices = @transform_5, window_bounds = array<i64: 1, 128, 256>}, {transform_indices = @transform_6, window_bounds = array<i64: 1, 1, 256>}, {transform_indices = @transform_7, window_bounds = array<i64: 1, 256, 128>}, {transform_indices = @transform_8, window_bounds = array<i64: 2, 64, 128>}]} {
    %c0_i32 = arith.constant 0 : i32
    %0 = arith.cmpi eq, %arg1, %c0_i32 : i32
    %1 = arith.extui %0 : i1 to i32
    %c0_i32_0 = arith.constant 0 : i32
    %2 = arith.cmpi ne, %1, %c0_i32_0 : i32
    scf.if %2 {
      %c0_60 = arith.constant 0 : index
      %c0_61 = arith.constant 0 : index
      %c0_62 = arith.constant 0 : index
      %165 = vector.load %arg2[%c0_60, %c0_61, %c0_62] : memref<2x64x128xf32, #tpu.memory_space<vmem>>, vector<2x64x128xf32>
      %166 = vector.shape_cast %165 : vector<2x64x128xf32> to vector<128x128xf32>
      %c0_63 = arith.constant 0 : index
      %c0_64 = arith.constant 0 : index
      %167 = vector.load %arg11[%c0_63, %c0_64] : memref<128x128xf32, #tpu.memory_space<vmem>>, vector<128x128xf32>
      tpu.vector_store %arg11[%c0_63, %c0_64], %166 {strides = array<i32>} : memref<128x128xf32, #tpu.memory_space<vmem>>, vector<128x128xf32>,
    } else {
    }
    %c0 = arith.constant 0 : index
    %c0_1 = arith.constant 0 : index
    %3 = vector.load %arg11[%c0, %c0_1] : memref<128x128xf32, #tpu.memory_space<vmem>>, vector<128x128xf32>
    %c0_2 = arith.constant 0 : index
    %c0_3 = arith.constant 0 : index
    %c0_4 = arith.constant 0 : index
    %4 = vector.load %arg6[%c0_2, %c0_3, %c0_4] : memref<1x6x128xf32, #tpu.memory_space<vmem>>, vector<1x6x128xf32>
    %5 = vector.shape_cast %4 : vector<1x6x128xf32> to vector<6x128xf32>
    %6 = vector.extract_strided_slice %5 {offsets = [0, 0], sizes = [1, 128], strides = [1, 1]} : vector<6x128xf32> to vector<1x128xf32>
    %7 = vector.extract_strided_slice %5 {offsets = [1, 0], sizes = [1, 128], strides = [1, 1]} : vector<6x128xf32> to vector<1x128xf32>
    %8 = vector.extract_strided_slice %5 {offsets = [2, 0], sizes = [1, 128], strides = [1, 1]} : vector<6x128xf32> to vector<1x128xf32>
    %9 = vector.extract_strided_slice %5 {offsets = [3, 0], sizes = [1, 128], strides = [1, 1]} : vector<6x128xf32> to vector<1x128xf32>
    %10 = vector.extract_strided_slice %5 {offsets = [4, 0], sizes = [1, 128], strides = [1, 1]} : vector<6x128xf32> to vector<1x128xf32>
    %11 = vector.extract_strided_slice %5 {offsets = [5, 0], sizes = [1, 128], strides = [1, 1]} : vector<6x128xf32> to vector<1x128xf32>
    %cst = arith.constant dense<0.000000e+00> : vector<128xf32>
    %12 = vector.multi_reduction <add>, %3, %cst [1] : vector<128x128xf32> to vector<128xf32>
    %13 = vector.shape_cast %12 : vector<128xf32> to vector<128x1xf32>
    %cst_5 = arith.constant 1.280000e+02 : f32
    %14 = vector.broadcast %cst_5 : f32 to vector<128x1xf32>
    %15 = arith.divf %13, %14 : vector<128x1xf32>
    %16 = vector.broadcast %15 : vector<128x1xf32> to vector<128x128xf32>
    %17 = arith.subf %3, %16 : vector<128x128xf32>
    %18 = arith.mulf %17, %17 : vector<128x128xf32>
    %cst_6 = arith.constant dense<0.000000e+00> : vector<128xf32>
    %19 = vector.multi_reduction <add>, %18, %cst_6 [1] : vector<128x128xf32> to vector<128xf32>
    %20 = vector.shape_cast %19 : vector<128xf32> to vector<128x1xf32>
    %cst_7 = arith.constant 1.280000e+02 : f32
    %21 = vector.broadcast %cst_7 : f32 to vector<128x1xf32>
    %22 = arith.divf %20, %21 : vector<128x1xf32>
    %cst_8 = arith.constant 9.99999997E-7 : f32
    %23 = vector.broadcast %cst_8 : f32 to vector<128x1xf32>
    %24 = arith.addf %22, %23 : vector<128x1xf32>
    %25 = math.rsqrt %24 : vector<128x1xf32>
    %26 = vector.broadcast %25 : vector<128x1xf32> to vector<128x128xf32>
    %27 = arith.mulf %17, %26 : vector<128x128xf32>
    %28 = vector.broadcast %6 : vector<1x128xf32> to vector<128x128xf32>
    %29 = arith.mulf %27, %28 : vector<128x128xf32>
    %30 = vector.broadcast %7 : vector<1x128xf32> to vector<128x128xf32>
    %31 = arith.addf %29, %30 : vector<128x128xf32>
    %c0_9 = arith.constant 0 : index
    %c0_10 = arith.constant 0 : index
    %c0_11 = arith.constant 0 : index
    %32 = vector.load %arg3[%c0_9, %c0_10, %c0_11] : memref<1x128x384xf32, #tpu.memory_space<vmem>>, vector<1x128x384xf32>
    %33 = vector.shape_cast %32 : vector<1x128x384xf32> to vector<128x384xf32>
    %cst_12 = arith.constant dense<0.000000e+00> : vector<128x384xf32>
    %34 = tpu.matmul %31, %33, %cst_12 {dimension_numbers = #tpu.dot_dimension_numbers<[1], [0], [0], [1], [0, 0, 1, 1], [], []>} : vector<128x128xf32>, vector<128x384xf32>, vector<128x384xf32> -> vector<128x384xf32>
    %c0_13 = arith.constant 0 : index
    %c0_14 = arith.constant 0 : index
    %c0_15 = arith.constant 0 : index
    %35 = vector.load %arg4[%c0_13, %c0_14, %c0_15] : memref<1x1x384xf32, #tpu.memory_space<vmem>>, vector<1x1x384xf32>
    %36 = vector.shape_cast %35 : vector<1x1x384xf32> to vector<1x384xf32>
    %37 = vector.broadcast %36 : vector<1x384xf32> to vector<128x384xf32>
    %38 = arith.addf %34, %37 : vector<128x384xf32>
    %39 = vector.extract_strided_slice %38 {offsets = [0, 0], sizes = [128, 128], strides = [1, 1]} : vector<128x384xf32> to vector<128x128xf32>
    %cst_16 = arith.constant 0.176776692 : f32
    %40 = vector.broadcast %cst_16 : f32 to vector<128x128xf32>
    %41 = arith.mulf %39, %40 : vector<128x128xf32>
    %42 = vector.extract_strided_slice %38 {offsets = [0, 128], sizes = [128, 128], strides = [1, 1]} : vector<128x384xf32> to vector<128x128xf32>
    %43 = vector.extract_strided_slice %38 {offsets = [0, 256], sizes = [128, 128], strides = [1, 1]} : vector<128x384xf32> to vector<128x128xf32>
    %44 = vector.shape_cast %41 : vector<128x128xf32> to vector<2x64x128xf32>
    %45 = vector.shape_cast %42 : vector<128x128xf32> to vector<2x64x128xf32>
    %46 = vector.shape_cast %43 : vector<128x128xf32> to vector<2x64x128xf32>
    %47 = vector.extract_strided_slice %44 {offsets = [0, 0, 0], sizes = [2, 64, 32], strides = [1, 1, 1]} : vector<2x64x128xf32> to vector<2x64x32xf32>
    %48 = vector.extract_strided_slice %45 {offsets = [0, 0, 0], sizes = [2, 64, 32], strides = [1, 1, 1]} : vector<2x64x128xf32> to vector<2x64x32xf32>
    %49 = vector.extract_strided_slice %46 {offsets = [0, 0, 0], sizes = [2, 64, 32], strides = [1, 1, 1]} : vector<2x64x128xf32> to vector<2x64x32xf32>
    "tpu.trace_start"() <{level = 10 : i32, message = "bqd,bkd->bqk"}> : () -> ()
    %cst_17 = arith.constant dense<0.000000e+00> : vector<2x64x64xf32>
    %50 = tpu.matmul %47, %48, %cst_17 {dimension_numbers = #tpu.dot_dimension_numbers<[2], [2], [1], [1], [0, 0, 0, 1, 1, 1], [0], [0]>} : vector<2x64x32xf32>, vector<2x64x32xf32>, vector<2x64x64xf32> -> vector<2x64x64xf32>
    "tpu.trace_stop"() : () -> ()
    %cst_18 = arith.constant dense<0xFF800000> : vector<2x64xf32>
    %51 = vector.multi_reduction <maximumf>, %50, %cst_18 [2] : vector<2x64x64xf32> to vector<2x64xf32>
    %52 = vector.shape_cast %51 : vector<2x64xf32> to vector<2x64x1xf32>
    %53 = vector.broadcast %52 : vector<2x64x1xf32> to vector<2x64x64xf32>
    %54 = arith.subf %50, %53 : vector<2x64x64xf32>
    %55 = math.exp %54 : vector<2x64x64xf32>
    %cst_19 = arith.constant dense<0.000000e+00> : vector<2x64xf32>
    %56 = vector.multi_reduction <add>, %55, %cst_19 [2] : vector<2x64x64xf32> to vector<2x64xf32>
    %57 = vector.shape_cast %56 : vector<2x64xf32> to vector<2x64x1xf32>
    %58 = tpu.reciprocal %57 {approx = true} : vector<2x64x1xf32> -> vector<2x64x1xf32>
    %59 = vector.broadcast %58 : vector<2x64x1xf32> to vector<2x64x64xf32>
    %60 = arith.mulf %55, %59 : vector<2x64x64xf32>
    "tpu.trace_start"() <{level = 10 : i32, message = "bqk,bkd->bqd"}> : () -> ()
    %cst_20 = arith.constant dense<0.000000e+00> : vector<2x64x32xf32>
    %61 = tpu.matmul %60, %49, %cst_20 {dimension_numbers = #tpu.dot_dimension_numbers<[2], [1], [1], [2], [0, 0, 0, 1, 1, 2], [0], [0]>} : vector<2x64x64xf32>, vector<2x64x32xf32>, vector<2x64x32xf32> -> vector<2x64x32xf32>
    "tpu.trace_stop"() : () -> ()
    %62 = vector.extract_strided_slice %44 {offsets = [0, 0, 32], sizes = [2, 64, 32], strides = [1, 1, 1]} : vector<2x64x128xf32> to vector<2x64x32xf32>
    %63 = vector.extract_strided_slice %45 {offsets = [0, 0, 32], sizes = [2, 64, 32], strides = [1, 1, 1]} : vector<2x64x128xf32> to vector<2x64x32xf32>
    %64 = vector.extract_strided_slice %46 {offsets = [0, 0, 32], sizes = [2, 64, 32], strides = [1, 1, 1]} : vector<2x64x128xf32> to vector<2x64x32xf32>
    "tpu.trace_start"() <{level = 10 : i32, message = "bqd,bkd->bqk"}> : () -> ()
    %cst_21 = arith.constant dense<0.000000e+00> : vector<2x64x64xf32>
    %65 = tpu.matmul %62, %63, %cst_21 {dimension_numbers = #tpu.dot_dimension_numbers<[2], [2], [1], [1], [0, 0, 0, 1, 1, 1], [0], [0]>} : vector<2x64x32xf32>, vector<2x64x32xf32>, vector<2x64x64xf32> -> vector<2x64x64xf32>
    "tpu.trace_stop"() : () -> ()
    %cst_22 = arith.constant dense<0xFF800000> : vector<2x64xf32>
    %66 = vector.multi_reduction <maximumf>, %65, %cst_22 [2] : vector<2x64x64xf32> to vector<2x64xf32>
    %67 = vector.shape_cast %66 : vector<2x64xf32> to vector<2x64x1xf32>
    %68 = vector.broadcast %67 : vector<2x64x1xf32> to vector<2x64x64xf32>
    %69 = arith.subf %65, %68 : vector<2x64x64xf32>
    %70 = math.exp %69 : vector<2x64x64xf32>
    %cst_23 = arith.constant dense<0.000000e+00> : vector<2x64xf32>
    %71 = vector.multi_reduction <add>, %70, %cst_23 [2] : vector<2x64x64xf32> to vector<2x64xf32>
    %72 = vector.shape_cast %71 : vector<2x64xf32> to vector<2x64x1xf32>
    %73 = tpu.reciprocal %72 {approx = true} : vector<2x64x1xf32> -> vector<2x64x1xf32>
    %74 = vector.broadcast %73 : vector<2x64x1xf32> to vector<2x64x64xf32>
    %75 = arith.mulf %70, %74 : vector<2x64x64xf32>
    "tpu.trace_start"() <{level = 10 : i32, message = "bqk,bkd->bqd"}> : () -> ()
    %cst_24 = arith.constant dense<0.000000e+00> : vector<2x64x32xf32>
    %76 = tpu.matmul %75, %64, %cst_24 {dimension_numbers = #tpu.dot_dimension_numbers<[2], [1], [1], [2], [0, 0, 0, 1, 1, 2], [0], [0]>} : vector<2x64x64xf32>, vector<2x64x32xf32>, vector<2x64x32xf32> -> vector<2x64x32xf32>
    "tpu.trace_stop"() : () -> ()
    %77 = vector.extract_strided_slice %44 {offsets = [0, 0, 64], sizes = [2, 64, 32], strides = [1, 1, 1]} : vector<2x64x128xf32> to vector<2x64x32xf32>
    %78 = vector.extract_strided_slice %45 {offsets = [0, 0, 64], sizes = [2, 64, 32], strides = [1, 1, 1]} : vector<2x64x128xf32> to vector<2x64x32xf32>
    %79 = vector.extract_strided_slice %46 {offsets = [0, 0, 64], sizes = [2, 64, 32], strides = [1, 1, 1]} : vector<2x64x128xf32> to vector<2x64x32xf32>
    "tpu.trace_start"() <{level = 10 : i32, message = "bqd,bkd->bqk"}> : () -> ()
    %cst_25 = arith.constant dense<0.000000e+00> : vector<2x64x64xf32>
    %80 = tpu.matmul %77, %78, %cst_25 {dimension_numbers = #tpu.dot_dimension_numbers<[2], [2], [1], [1], [0, 0, 0, 1, 1, 1], [0], [0]>} : vector<2x64x32xf32>, vector<2x64x32xf32>, vector<2x64x64xf32> -> vector<2x64x64xf32>
    "tpu.trace_stop"() : () -> ()
    %cst_26 = arith.constant dense<0xFF800000> : vector<2x64xf32>
    %81 = vector.multi_reduction <maximumf>, %80, %cst_26 [2] : vector<2x64x64xf32> to vector<2x64xf32>
    %82 = vector.shape_cast %81 : vector<2x64xf32> to vector<2x64x1xf32>
    %83 = vector.broadcast %82 : vector<2x64x1xf32> to vector<2x64x64xf32>
    %84 = arith.subf %80, %83 : vector<2x64x64xf32>
    %85 = math.exp %84 : vector<2x64x64xf32>
    %cst_27 = arith.constant dense<0.000000e+00> : vector<2x64xf32>
    %86 = vector.multi_reduction <add>, %85, %cst_27 [2] : vector<2x64x64xf32> to vector<2x64xf32>
    %87 = vector.shape_cast %86 : vector<2x64xf32> to vector<2x64x1xf32>
    %88 = tpu.reciprocal %87 {approx = true} : vector<2x64x1xf32> -> vector<2x64x1xf32>
    %89 = vector.broadcast %88 : vector<2x64x1xf32> to vector<2x64x64xf32>
    %90 = arith.mulf %85, %89 : vector<2x64x64xf32>
    "tpu.trace_start"() <{level = 10 : i32, message = "bqk,bkd->bqd"}> : () -> ()
    %cst_28 = arith.constant dense<0.000000e+00> : vector<2x64x32xf32>
    %91 = tpu.matmul %90, %79, %cst_28 {dimension_numbers = #tpu.dot_dimension_numbers<[2], [1], [1], [2], [0, 0, 0, 1, 1, 2], [0], [0]>} : vector<2x64x64xf32>, vector<2x64x32xf32>, vector<2x64x32xf32> -> vector<2x64x32xf32>
    "tpu.trace_stop"() : () -> ()
    %92 = vector.extract_strided_slice %44 {offsets = [0, 0, 96], sizes = [2, 64, 32], strides = [1, 1, 1]} : vector<2x64x128xf32> to vector<2x64x32xf32>
    %93 = vector.extract_strided_slice %45 {offsets = [0, 0, 96], sizes = [2, 64, 32], strides = [1, 1, 1]} : vector<2x64x128xf32> to vector<2x64x32xf32>
    %94 = vector.extract_strided_slice %46 {offsets = [0, 0, 96], sizes = [2, 64, 32], strides = [1, 1, 1]} : vector<2x64x128xf32> to vector<2x64x32xf32>
    "tpu.trace_start"() <{level = 10 : i32, message = "bqd,bkd->bqk"}> : () -> ()
    %cst_29 = arith.constant dense<0.000000e+00> : vector<2x64x64xf32>
    %95 = tpu.matmul %92, %93, %cst_29 {dimension_numbers = #tpu.dot_dimension_numbers<[2], [2], [1], [1], [0, 0, 0, 1, 1, 1], [0], [0]>} : vector<2x64x32xf32>, vector<2x64x32xf32>, vector<2x64x64xf32> -> vector<2x64x64xf32>
    "tpu.trace_stop"() : () -> ()
    %cst_30 = arith.constant dense<0xFF800000> : vector<2x64xf32>
    %96 = vector.multi_reduction <maximumf>, %95, %cst_30 [2] : vector<2x64x64xf32> to vector<2x64xf32>
    %97 = vector.shape_cast %96 : vector<2x64xf32> to vector<2x64x1xf32>
    %98 = vector.broadcast %97 : vector<2x64x1xf32> to vector<2x64x64xf32>
    %99 = arith.subf %95, %98 : vector<2x64x64xf32>
    %100 = math.exp %99 : vector<2x64x64xf32>
    %cst_31 = arith.constant dense<0.000000e+00> : vector<2x64xf32>
    %101 = vector.multi_reduction <add>, %100, %cst_31 [2] : vector<2x64x64xf32> to vector<2x64xf32>
    %102 = vector.shape_cast %101 : vector<2x64xf32> to vector<2x64x1xf32>
    %103 = tpu.reciprocal %102 {approx = true} : vector<2x64x1xf32> -> vector<2x64x1xf32>
    %104 = vector.broadcast %103 : vector<2x64x1xf32> to vector<2x64x64xf32>
    %105 = arith.mulf %100, %104 : vector<2x64x64xf32>
    "tpu.trace_start"() <{level = 10 : i32, message = "bqk,bkd->bqd"}> : () -> ()
    %cst_32 = arith.constant dense<0.000000e+00> : vector<2x64x32xf32>
    %106 = tpu.matmul %105, %94, %cst_32 {dimension_numbers = #tpu.dot_dimension_numbers<[2], [1], [1], [2], [0, 0, 0, 1, 1, 2], [0], [0]>} : vector<2x64x64xf32>, vector<2x64x32xf32>, vector<2x64x32xf32> -> vector<2x64x32xf32>
    "tpu.trace_stop"() : () -> ()
    %107 = tpu.concatenate %61, %76, %91, %106 in 2 : vector<2x64x32xf32>, vector<2x64x32xf32>, vector<2x64x32xf32>, vector<2x64x32xf32> -> vector<2x64x128xf32>
    %108 = vector.shape_cast %107 : vector<2x64x128xf32> to vector<128x128xf32>
    %c0_33 = arith.constant 0 : index
    %c0_34 = arith.constant 0 : index
    %c0_35 = arith.constant 0 : index
    %109 = vector.load %arg5[%c0_33, %c0_34, %c0_35] : memref<1x128x128xf32, #tpu.memory_space<vmem>>, vector<1x128x128xf32>
    %110 = vector.shape_cast %109 : vector<1x128x128xf32> to vector<128x128xf32>
    %cst_36 = arith.constant dense<0.000000e+00> : vector<128x128xf32>
    %111 = tpu.matmul %108, %110, %cst_36 {dimension_numbers = #tpu.dot_dimension_numbers<[1], [0], [0], [1], [0, 0, 1, 1], [], []>} : vector<128x128xf32>, vector<128x128xf32>, vector<128x128xf32> -> vector<128x128xf32>
    %112 = vector.broadcast %8 : vector<1x128xf32> to vector<128x128xf32>
    %113 = arith.addf %111, %112 : vector<128x128xf32>
    %114 = arith.addf %3, %113 : vector<128x128xf32>
    %cst_37 = arith.constant dense<0.000000e+00> : vector<128xf32>
    %115 = vector.multi_reduction <add>, %114, %cst_37 [1] : vector<128x128xf32> to vector<128xf32>
    %116 = vector.shape_cast %115 : vector<128xf32> to vector<128x1xf32>
    %cst_38 = arith.constant 1.280000e+02 : f32
    %117 = vector.broadcast %cst_38 : f32 to vector<128x1xf32>
    %118 = arith.divf %116, %117 : vector<128x1xf32>
    %119 = vector.broadcast %118 : vector<128x1xf32> to vector<128x128xf32>
    %120 = arith.subf %114, %119 : vector<128x128xf32>
    %121 = arith.mulf %120, %120 : vector<128x128xf32>
    %cst_39 = arith.constant dense<0.000000e+00> : vector<128xf32>
    %122 = vector.multi_reduction <add>, %121, %cst_39 [1] : vector<128x128xf32> to vector<128xf32>
    %123 = vector.shape_cast %122 : vector<128xf32> to vector<128x1xf32>
    %cst_40 = arith.constant 1.280000e+02 : f32
    %124 = vector.broadcast %cst_40 : f32 to vector<128x1xf32>
    %125 = arith.divf %123, %124 : vector<128x1xf32>
    %cst_41 = arith.constant 9.99999997E-7 : f32
    %126 = vector.broadcast %cst_41 : f32 to vector<128x1xf32>
    %127 = arith.addf %125, %126 : vector<128x1xf32>
    %128 = math.rsqrt %127 : vector<128x1xf32>
    %129 = vector.broadcast %128 : vector<128x1xf32> to vector<128x128xf32>
    %130 = arith.mulf %120, %129 : vector<128x128xf32>
    %131 = vector.broadcast %9 : vector<1x128xf32> to vector<128x128xf32>
    %132 = arith.mulf %130, %131 : vector<128x128xf32>
    %133 = vector.broadcast %10 : vector<1x128xf32> to vector<128x128xf32>
    %134 = arith.addf %132, %133 : vector<128x128xf32>
    %c0_42 = arith.constant 0 : index
    %c0_43 = arith.constant 0 : index
    %c0_44 = arith.constant 0 : index
    %135 = vector.load %arg7[%c0_42, %c0_43, %c0_44] : memref<1x128x256xf32, #tpu.memory_space<vmem>>, vector<1x128x256xf32>
    %136 = vector.shape_cast %135 : vector<1x128x256xf32> to vector<128x256xf32>
    %cst_45 = arith.constant dense<0.000000e+00> : vector<128x256xf32>
    %137 = tpu.matmul %134, %136, %cst_45 {dimension_numbers = #tpu.dot_dimension_numbers<[1], [0], [0], [1], [0, 0, 1, 1], [], []>} : vector<128x128xf32>, vector<128x256xf32>, vector<128x256xf32> -> vector<128x256xf32>
    %c0_46 = arith.constant 0 : index
    %c0_47 = arith.constant 0 : index
    %c0_48 = arith.constant 0 : index
    %138 = vector.load %arg8[%c0_46, %c0_47, %c0_48] : memref<1x1x256xf32, #tpu.memory_space<vmem>>, vector<1x1x256xf32>
    %139 = vector.shape_cast %138 : vector<1x1x256xf32> to vector<1x256xf32>
    %140 = vector.broadcast %139 : vector<1x256xf32> to vector<128x256xf32>
    %141 = arith.addf %137, %140 : vector<128x256xf32>
    %cst_49 = arith.constant 5.000000e-01 : f32
    %142 = vector.broadcast %cst_49 : f32 to vector<128x256xf32>
    %143 = arith.mulf %142, %141 : vector<128x256xf32>
    %cst_50 = arith.constant 4.471500e-02 : f32
    %144 = vector.broadcast %cst_50 : f32 to vector<128x256xf32>
    %145 = arith.mulf %144, %141 : vector<128x256xf32>
    %146 = arith.mulf %145, %141 : vector<128x256xf32>
    %147 = arith.mulf %146, %141 : vector<128x256xf32>
    %148 = arith.addf %141, %147 : vector<128x256xf32>
    %cst_51 = arith.constant 0.797884583 : f32
    %149 = vector.broadcast %cst_51 : f32 to vector<128x256xf32>
    %150 = arith.mulf %149, %148 : vector<128x256xf32>
    %151 = math.tanh %150 : vector<128x256xf32>
    %cst_52 = arith.constant 1.000000e+00 : f32
    %152 = vector.broadcast %cst_52 : f32 to vector<128x256xf32>
    %153 = arith.addf %152, %151 : vector<128x256xf32>
    %154 = arith.mulf %143, %153 : vector<128x256xf32>
    %c0_53 = arith.constant 0 : index
    %c0_54 = arith.constant 0 : index
    %c0_55 = arith.constant 0 : index
    %155 = vector.load %arg9[%c0_53, %c0_54, %c0_55] : memref<1x256x128xf32, #tpu.memory_space<vmem>>, vector<1x256x128xf32>
    %156 = vector.shape_cast %155 : vector<1x256x128xf32> to vector<256x128xf32>
    %cst_56 = arith.constant dense<0.000000e+00> : vector<128x128xf32>
    %157 = tpu.matmul %154, %156, %cst_56 {dimension_numbers = #tpu.dot_dimension_numbers<[1], [0], [0], [1], [0, 0, 1, 1], [], []>} : vector<128x256xf32>, vector<256x128xf32>, vector<128x128xf32> -> vector<128x128xf32>
    %158 = vector.broadcast %11 : vector<1x128xf32> to vector<128x128xf32>
    %159 = arith.addf %157, %158 : vector<128x128xf32>
    %160 = arith.addf %114, %159 : vector<128x128xf32>
    %c0_57 = arith.constant 0 : index
    %c0_58 = arith.constant 0 : index
    %161 = vector.load %arg11[%c0_57, %c0_58] : memref<128x128xf32, #tpu.memory_space<vmem>>, vector<128x128xf32>
    tpu.vector_store %arg11[%c0_57, %c0_58], %160 {strides = array<i32>} : memref<128x128xf32, #tpu.memory_space<vmem>>, vector<128x128xf32>,
    %c1_i32 = arith.constant 1 : i32
    %162 = arith.cmpi eq, %arg1, %c1_i32 : i32
    %163 = arith.extui %162 : i1 to i32
    %c0_i32_59 = arith.constant 0 : i32
    %164 = arith.cmpi ne, %163, %c0_i32_59 : i32
    scf.if %164 {
      %165 = vector.shape_cast %160 : vector<128x128xf32> to vector<2x64x128xf32>
      %c0_60 = arith.constant 0 : index
      %c0_61 = arith.constant 0 : index
      %c0_62 = arith.constant 0 : index
      %166 = vector.load %arg10[%c0_60, %c0_61, %c0_62] : memref<2x64x128xf32, #tpu.memory_space<vmem>>, vector<2x64x128xf32>
      tpu.vector_store %arg10[%c0_60, %c0_61, %c0_62], %165 {strides = array<i32>} : memref<2x64x128xf32, #tpu.memory_space<vmem>>, vector<2x64x128xf32>,
    } else {
    }
    return
  }
  func.func @transform_0(%arg0: i32, %arg1: i32) -> (i32, i32, i32) {
    %c0_i32 = arith.constant 0 : i32
    %c0_i32_0 = arith.constant 0 : i32
    %c0_i32_1 = arith.constant 0 : i32
    return %arg0, %c0_i32, %c0_i32_0 : i32, i32, i32
  }
  func.func @transform_1(%arg0: i32, %arg1: i32) -> (i32, i32, i32) {
    %c0_i32 = arith.constant 0 : i32
    %c0_i32_0 = arith.constant 0 : i32
    %c0_i32_1 = arith.constant 0 : i32
    return %arg1, %c0_i32, %c0_i32_0 : i32, i32, i32
  }
  func.func @transform_2(%arg0: i32, %arg1: i32) -> (i32, i32, i32) {
    %c0_i32 = arith.constant 0 : i32
    %c0_i32_0 = arith.constant 0 : i32
    %c0_i32_1 = arith.constant 0 : i32
    return %arg1, %c0_i32, %c0_i32_0 : i32, i32, i32
  }
  func.func @transform_3(%arg0: i32, %arg1: i32) -> (i32, i32, i32) {
    %c0_i32 = arith.constant 0 : i32
    %c0_i32_0 = arith.constant 0 : i32
    %c0_i32_1 = arith.constant 0 : i32
    return %arg1, %c0_i32, %c0_i32_0 : i32, i32, i32
  }
  func.func @transform_4(%arg0: i32, %arg1: i32) -> (i32, i32, i32) {
    %c0_i32 = arith.constant 0 : i32
    %c0_i32_0 = arith.constant 0 : i32
    %c0_i32_1 = arith.constant 0 : i32
    return %arg1, %c0_i32, %c0_i32_0 : i32, i32, i32
  }
  func.func @transform_5(%arg0: i32, %arg1: i32) -> (i32, i32, i32) {
    %c0_i32 = arith.constant 0 : i32
    %c0_i32_0 = arith.constant 0 : i32
    %c0_i32_1 = arith.constant 0 : i32
    return %arg1, %c0_i32, %c0_i32_0 : i32, i32, i32
  }
  func.func @transform_6(%arg0: i32, %arg1: i32) -> (i32, i32, i32) {
    %c0_i32 = arith.constant 0 : i32
    %c0_i32_0 = arith.constant 0 : i32
    %c0_i32_1 = arith.constant 0 : i32
    return %arg1, %c0_i32, %c0_i32_0 : i32, i32, i32
  }
  func.func @transform_7(%arg0: i32, %arg1: i32) -> (i32, i32, i32) {
    %c0_i32 = arith.constant 0 : i32
    %c0_i32_0 = arith.constant 0 : i32
    %c0_i32_1 = arith.constant 0 : i32
    return %arg1, %c0_i32, %c0_i32_0 : i32, i32, i32
  }
  func.func @transform_8(%arg0: i32, %arg1: i32) -> (i32, i32, i32) {
    %c0_i32 = arith.constant 0 : i32
    %c0_i32_0 = arith.constant 0 : i32
    %c0_i32_1 = arith.constant 0 : i32
    return %arg0, %c0_i32, %c0_i32_0 : i32, i32, i32
  }
}

</mosaic_0001>

<llo_original>
// kernel: siglip_encoder.1
$region0: #{siglip_encoder.1}
  #allocation0 [shape = 'u32[]', space=smem, size = 0x4, offset = 0x4, fixed_abs, tag = 'smem constant byte address 0x4 - core index']
  #allocation1 [shape = 'u32[144,128]{1,0:T(1,128)}', space=vmem, size = 0x12000, scoped, tag = 'internal scratch']
  #allocation2 [shape = 'f32[128,128]{1,0:T(8,128)}', space=vmem, size = 0x10000, scoped, tag = 'scratch operand']
  %s0 = inlined_call_operand.hbm [shape: f32[4,64,128], index: 0, kind: input, shape index: {}]
  %s1 = inlined_call_operand.hbm [shape: f32[2,128,384], index: 1, kind: input, shape index: {}]
  %s2 = inlined_call_operand.vmem [shape: f32[2,1,384], index: 2, kind: input, shape index: {}]
  %s3 = inlined_call_operand.hbm [shape: f32[2,128,128], index: 3, kind: input, shape index: {}]
  %s4 = inlined_call_operand.vmem [shape: f32[2,6,128], index: 4, kind: input, shape index: {}]
  %s5 = inlined_call_operand.hbm [shape: f32[2,128,256], index: 5, kind: input, shape index: {}]
  %s6 = inlined_call_operand.vmem [shape: f32[2,1,256], index: 6, kind: input, shape index: {}]
  %s7 = inlined_call_operand.hbm [shape: f32[2,256,128], index: 7, kind: input, shape index: {}]
  %s8 = inlined_call_operand.hbm [shape: f32[4,64,128], index: 8, kind: output, shape index: {}]
  %s9 = sld [smem:[#allocation0]]
  $region93: #{siglip_encoder.1} parent=0
    _
  %s11 = ssub.s32 1, %s9
  %s12 = scalar_select 0, %s11, %s9
  $region1: #{siglip_encoder.1} parent=0
    #allocation3 [shape = 'u8[131072]{0}', space=vmem, size = 0x20000, scoped, tag = 'input window, operand 0']
    #allocation4 [shape = 's32[2]{0}', space=sflag, size = 0x8, scoped, tag = 'scoped memory for siglip_encoder.1']
    #allocation5 [shape = 's32[2]{0}', space=sflag, size = 0x8, scoped, tag = 'scoped memory for siglip_encoder.1']
    #allocation6 [shape = 'u8[393216]{0}', space=vmem, size = 0x60000, scoped, tag = 'input window, operand 1']
    #allocation7 [shape = 's32[2]{0}', space=sflag, size = 0x8, scoped, tag = 'scoped memory for siglip_encoder.1']
    #allocation8 [shape = 'u8[131072]{0}', space=vmem, size = 0x20000, scoped, tag = 'input window, operand 3']
    #allocation9 [shape = 'u8[262144]{0}', space=vmem, size = 0x40000, scoped, tag = 'input window, operand 5']
    #allocation10 [shape = 's32[2]{0}', space=sflag, size = 0x8, scoped, tag = 'scoped memory for siglip_encoder.1']
    #allocation11 [shape = 'u8[262144]{0}', space=vmem, size = 0x40000, scoped, tag = 'input window, operand 7']
    #allocation12 [shape = 'u8[131072]{0}', space=vmem, size = 0x20000, scoped, tag = 'output window, operand 0']
    %13 = vsyncpa [#allocation4], 0
    %s14 = scalar_lea.sflag [#allocation4], 1
    %15 = vsyncpa %s14, 0
    %16 = vsyncpa [#allocation7], 0
    %s17 = scalar_lea.sflag [#allocation7], 1
    %18 = vsyncpa %s17, 0
    %19 = vsyncpa [#allocation10], 0
    %s20 = scalar_lea.sflag [#allocation10], 1
    %21 = vsyncpa %s20, 0
    %22 = vsyncpa [#allocation5], 0
    %s23 = scalar_lea.sflag [#allocation5], 1
    %24 = vsyncpa %s23, 0
    loop: start=0, step=1, limit=6
    $region2: #{siglip_encoder.1} parent=1 // loop_pre_header
      _
    $region3: #{siglip_encoder.1} parent=1 // loop_header
      %s26 = sphi 0, %s30
      %p27 = scmp.ge.s32.totalorder %s26, 6
      %s33 = sphi 0, %s45
      %s34 = sphi 0, %s41
      %s35 = sphi 0, %s33
      %s36 = sphi 0, %s34
      %s37 = sphi 0, %s35
      %s38 = sphi 0, %s36
      %s48 = sphi 0, %s50
      %s51 = sphi 0, %s48
      %s52 = sphi 0, %s51
      %s68 = sphi 0, %s52
      %s74 = sphi 0, %s76
      %s77 = sphi 0, %s74
      %s78 = sphi 0, %s77
      %s94 = sphi 0, %s78
      %s100 = sphi 0, %s102
      %s103 = sphi 0, %s100
      %s104 = sphi 0, %s103
      %s120 = sphi 0, %s104
      %s126 = sphi 0, %s128
      %s129 = sphi 0, %s126
      %s130 = sphi 0, %s129
      %s146 = sphi 0, %s130
      %s152 = sphi 0, %s154
      %s155 = sphi 0, %s152
      %s156 = sphi 0, %s155
      %s172 = sphi 0, %s156
      %s178 = sphi 0, %s180
      %s181 = sphi 0, %s178
      %s182 = sphi 0, %s181
      %s198 = sphi 0, %s182
      %s204 = sphi 0, %s206
      %s207 = sphi 0, %s204
      %s208 = sphi 0, %s207
      %s224 = sphi 0, %s208
      %s230 = sphi 0, %s232
      %s233 = sphi 0, %s230
      %s234 = sphi 0, %s233
      %s250 = sphi 0, %s234
      %s256 = sphi 0, %s258
      %s259 = sphi 0, %s256
      %s260 = sphi 0, %s259
      %s276 = sphi 0, %s260
    $region4: #{siglip_encoder.1} parent=1 // loop_header_branch
      %29 = sbr.rel (%p27) target = $region8
    $region5: #{siglip_encoder.1} parent=1 // loop_body
      %s31 = ssub.s32 %s26, 1
      %s32 = ssub.s32 %s26, 2
      %s39 = sadd.s32 1, %s34
      %p40 = scmp.ge.s32.totalorder %s39, 2
      %s41 = scalar_select %p40, 0, %s39
      %s42 = sadd.s32 1, %s33
      %s43 = scalar_select %p40, %s42, %s33
      %p44 = scmp.ge.s32.totalorder %s43, 2
      %s45 = scalar_select %p44, 0, %s43
      %s46 = ssub.s32 %s33, %s45
      %p47 = scmp.eq.s32.totalorder %s46, 0
      %s49 = sadd.s32 %s48, 1
      %s50 = scalar_select %p47, %s48, %s49
      %p53 = pneg %p47
      %p54 = scmp.eq.s32.totalorder %s26, 3
      %p55 = por %p53, %p54
      %p56 = scmp.ne.s32.totalorder %s48, %s51
      %p57 = scmp.eq.s32.totalorder %s26, 0
      %p58 = por %p56, %p57
      %p59 = scmp.ne.s32.totalorder %s48, %s51
      %p60 = scmp.eq.s32.totalorder %s31, 3
      %p61 = por %p59, %p60
      %p62 = scmp.ne.s32.totalorder %s51, %s52
      %p63 = scmp.eq.s32.totalorder %s31, 0
      %p64 = por %p62, %p63
      %p65 = scmp.ne.s32.totalorder %s51, %s52
      %p66 = scmp.eq.s32.totalorder %s32, 3
      %p67 = por %p65, %p66
      %p69 = scmp.ne.s32.totalorder %s52, %s68
      %p70 = scmp.eq.s32.totalorder %s32, 0
      %p71 = por %p69, %p70
      %s72 = ssub.s32 %s34, %s41
      %p73 = scmp.eq.s32.totalorder %s72, 0
      %s75 = sadd.s32 %s74, 1
      %s76 = scalar_select %p73, %s74, %s75
      %p79 = pneg %p73
      %p80 = scmp.eq.s32.totalorder %s26, 3
      %p81 = por %p79, %p80
      %p82 = scmp.ne.s32.totalorder %s74, %s77
      %p83 = scmp.eq.s32.totalorder %s26, 0
      %p84 = por %p82, %p83
      %p85 = scmp.ne.s32.totalorder %s74, %s77
      %p86 = scmp.eq.s32.totalorder %s31, 3
      %p87 = por %p85, %p86
      %p88 = scmp.ne.s32.totalorder %s77, %s78
      %p89 = scmp.eq.s32.totalorder %s31, 0
      %p90 = por %p88, %p89
      %p91 = scmp.ne.s32.totalorder %s77, %s78
      %p92 = scmp.eq.s32.totalorder %s32, 3
      %p93 = por %p91, %p92
      %p95 = scmp.ne.s32.totalorder %s78, %s94
      %p96 = scmp.eq.s32.totalorder %s32, 0
      %p97 = por %p95, %p96
      %s98 = ssub.s32 %s34, %s41
      %p99 = scmp.eq.s32.totalorder %s98, 0
      %s101 = sadd.s32 %s100, 1
      %s102 = scalar_select %p99, %s100, %s101
      %p105 = pneg %p99
      %p106 = scmp.eq.s32.totalorder %s26, 3
      %p107 = por %p105, %p106
      %p108 = scmp.ne.s32.totalorder %s100, %s103
      %p109 = scmp.eq.s32.totalorder %s26, 0
      %p110 = por %p108, %p109
      %p111 = scmp.ne.s32.totalorder %s100, %s103
      %p112 = scmp.eq.s32.totalorder %s31, 3
      %p113 = por %p111, %p112
      %p114 = scmp.ne.s32.totalorder %s103, %s104
      %p115 = scmp.eq.s32.totalorder %s31, 0
      %p116 = por %p114, %p115
      %p117 = scmp.ne.s32.totalorder %s103, %s104
      %p118 = scmp.eq.s32.totalorder %s32, 3
      %p119 = por %p117, %p118
      %p121 = scmp.ne.s32.totalorder %s104, %s120
      %p122 = scmp.eq.s32.totalorder %s32, 0
      %p123 = por %p121, %p122
      %s124 = ssub.s32 %s34, %s41
      %p125 = scmp.eq.s32.totalorder %s124, 0
      %s127 = sadd.s32 %s126, 1
      %s128 = scalar_select %p125, %s126, %s127
      %p131 = pneg %p125
      %p132 = scmp.eq.s32.totalorder %s26, 3
      %p133 = por %p131, %p132
      %p134 = scmp.ne.s32.totalorder %s126, %s129
      %p135 = scmp.eq.s32.totalorder %s26, 0
      %p136 = por %p134, %p135
      %p137 = scmp.ne.s32.totalorder %s126, %s129
      %p138 = scmp.eq.s32.totalorder %s31, 3
      %p139 = por %p137, %p138
      %p140 = scmp.ne.s32.totalorder %s129, %s130
      %p141 = scmp.eq.s32.totalorder %s31, 0
      %p142 = por %p140, %p141
      %p143 = scmp.ne.s32.totalorder %s129, %s130
      %p144 = scmp.eq.s32.totalorder %s32, 3
      %p145 = por %p143, %p144
      %p147 = scmp.ne.s32.totalorder %s130, %s146
      %p148 = scmp.eq.s32.totalorder %s32, 0
      %p149 = por %p147, %p148
      %s150 = ssub.s32 %s34, %s41
      %p151 = scmp.eq.s32.totalorder %s150, 0
      %s153 = sadd.s32 %s152, 1
      %s154 = scalar_select %p151, %s152, %s153
      %p157 = pneg %p151
      %p158 = scmp.eq.s32.totalorder %s26, 3
      %p159 = por %p157, %p158
      %p160 = scmp.ne.s32.totalorder %s152, %s155
      %p161 = scmp.eq.s32.totalorder %s26, 0
      %p162 = por %p160, %p161
      %p163 = scmp.ne.s32.totalorder %s152, %s155
      %p164 = scmp.eq.s32.totalorder %s31, 3
      %p165 = por %p163, %p164
      %p166 = scmp.ne.s32.totalorder %s155, %s156
      %p167 = scmp.eq.s32.totalorder %s31, 0
      %p168 = por %p166, %p167
      %p169 = scmp.ne.s32.totalorder %s155, %s156
      %p170 = scmp.eq.s32.totalorder %s32, 3
      %p171 = por %p169, %p170
      %p173 = scmp.ne.s32.totalorder %s156, %s172
      %p174 = scmp.eq.s32.totalorder %s32, 0
      %p175 = por %p173, %p174
      %s176 = ssub.s32 %s34, %s41
      %p177 = scmp.eq.s32.totalorder %s176, 0
      %s179 = sadd.s32 %s178, 1
      %s180 = scalar_select %p177, %s178, %s179
      %p183 = pneg %p177
      %p184 = scmp.eq.s32.totalorder %s26, 3
      %p185 = por %p183, %p184
      %p186 = scmp.ne.s32.totalorder %s178, %s181
      %p187 = scmp.eq.s32.totalorder %s26, 0
      %p188 = por %p186, %p187
      %p189 = scmp.ne.s32.totalorder %s178, %s181
      %p190 = scmp.eq.s32.totalorder %s31, 3
      %p191 = por %p189, %p190
      %p192 = scmp.ne.s32.totalorder %s181, %s182
      %p193 = scmp.eq.s32.totalorder %s31, 0
      %p194 = por %p192, %p193
      %p195 = scmp.ne.s32.totalorder %s181, %s182
      %p196 = scmp.eq.s32.totalorder %s32, 3
      %p197 = por %p195, %p196
      %p199 = scmp.ne.s32.totalorder %s182, %s198
      %p200 = scmp.eq.s32.totalorder %s32, 0
      %p201 = por %p199, %p200
      %s202 = ssub.s32 %s34, %s41
      %p203 = scmp.eq.s32.totalorder %s202, 0
      %s205 = sadd.s32 %s204, 1
      %s206 = scalar_select %p203, %s204, %s205
      %p209 = pneg %p203
      %p210 = scmp.eq.s32.totalorder %s26, 3
      %p211 = por %p209, %p210
      %p212 = scmp.ne.s32.totalorder %s204, %s207
      %p213 = scmp.eq.s32.totalorder %s26, 0
      %p214 = por %p212, %p213
      %p215 = scmp.ne.s32.totalorder %s204, %s207
      %p216 = scmp.eq.s32.totalorder %s31, 3
      %p217 = por %p215, %p216
      %p218 = scmp.ne.s32.totalorder %s207, %s208
      %p219 = scmp.eq.s32.totalorder %s31, 0
      %p220 = por %p218, %p219
      %p221 = scmp.ne.s32.totalorder %s207, %s208
      %p222 = scmp.eq.s32.totalorder %s32, 3
      %p223 = por %p221, %p222
      %p225 = scmp.ne.s32.totalorder %s208, %s224
      %p226 = scmp.eq.s32.totalorder %s32, 0
      %p227 = por %p225, %p226
      %s228 = ssub.s32 %s34, %s41
      %p229 = scmp.eq.s32.totalorder %s228, 0
      %s231 = sadd.s32 %s230, 1
      %s232 = scalar_select %p229, %s230, %s231
      %p235 = pneg %p229
      %p236 = scmp.eq.s32.totalorder %s26, 3
      %p237 = por %p235, %p236
      %p238 = scmp.ne.s32.totalorder %s230, %s233
      %p239 = scmp.eq.s32.totalorder %s26, 0
      %p240 = por %p238, %p239
      %p241 = scmp.ne.s32.totalorder %s230, %s233
      %p242 = scmp.eq.s32.totalorder %s31, 3
      %p243 = por %p241, %p242
      %p244 = scmp.ne.s32.totalorder %s233, %s234
      %p245 = scmp.eq.s32.totalorder %s31, 0
      %p246 = por %p244, %p245
      %p247 = scmp.ne.s32.totalorder %s233, %s234
      %p248 = scmp.eq.s32.totalorder %s32, 3
      %p249 = por %p247, %p248
      %p251 = scmp.ne.s32.totalorder %s234, %s250
      %p252 = scmp.eq.s32.totalorder %s32, 0
      %p253 = por %p251, %p252
      %s254 = ssub.s32 %s33, %s45
      %p255 = scmp.eq.s32.totalorder %s254, 0
      %s257 = sadd.s32 %s256, 1
      %s258 = scalar_select %p255, %s256, %s257
      %p261 = pneg %p255
      %p262 = scmp.eq.s32.totalorder %s26, 3
      %p263 = por %p261, %p262
      %p264 = scmp.ne.s32.totalorder %s256, %s259
      %p265 = scmp.eq.s32.totalorder %s26, 0
      %p266 = por %p264, %p265
      %p267 = scmp.ne.s32.totalorder %s256, %s259
      %p268 = scmp.eq.s32.totalorder %s31, 3
      %p269 = por %p267, %p268
      %p270 = scmp.ne.s32.totalorder %s259, %s260
      %p271 = scmp.eq.s32.totalorder %s31, 0
      %p272 = por %p270, %p271
      %p273 = scmp.ne.s32.totalorder %s259, %s260
      %p274 = scmp.eq.s32.totalorder %s32, 3
      %p275 = por %p273, %p274
      %p277 = scmp.ne.s32.totalorder %s260, %s276
      %p278 = scmp.eq.s32.totalorder %s32, 0
      %p279 = por %p277, %p278
      %p280 = scmp.le.s32.totalorder 1, %s26
      %p281 = scmp.lt.s32.totalorder %s26, 5
      %p282 = pnand %p280, %p281
      %p283 = pneg %p282
      // Predicated region
      $region9: #{siglip_encoder.1} parent=5 // pred_check
        _
      $region10: #{siglip_encoder.1} parent=5 // pred_check_branch
        %285 = sbr.rel (%p282) target = $region12
      $region11: #{siglip_encoder.1} parent=5 // pred_region
        %s286 = ssub.s32 %s26, 1
      $region12: #{siglip_encoder.1} parent=5 // pred_fallthru
        _
      %p287 = scmp.lt.s32.totalorder %s26, 4
      // Predicated region
      $region13: #{siglip_encoder.1} parent=5 // pred_check
        %p288 = pneg %p287
      $region14: #{siglip_encoder.1} parent=5 // pred_check_branch
        %290 = sbr.rel (%p288) target = $region16
      $region15: #{siglip_encoder.1} parent=5 // pred_region
        // Predicated region
        $region17: #{siglip_encoder.1} parent=15 // pred_check
          %p291 = pneg %p58
        $region18: #{siglip_encoder.1} parent=15 // pred_check_branch
          %293 = sbr.rel (%p291) target = $region20
        $region19: #{siglip_encoder.1} parent=15 // pred_region
          %s294 = sand.u32 %s48, 1
          %s295 = scalar_lea.sflag [#allocation4], %s294
          %s296 = sand.u32 %s48, 1
          %s297 = smul.addr %s296, 128
          %s298 = scalar_lea.vmem [#allocation3], %s297
          %s299 = smul.u32 2, %s33
          %s301 = ssub.s32 2048, 2048
          %302 = vsyncadd %s295, %s301
          %s303 = smul.addr %s299, 8
          %s304 = smul.addr %s303, 128
          %s305 = scalar_lea.hbm %s0, %s304
          %s306 = sshll.u32 %s298, 4
          %s307 = int_to_ptr.vmem [resolvable:$true] %s306
          %312 = dma.hbm_to_vmem [thread:$0]  %s305, 2048, %s307, %s295, 128, 128, 8
        $region20: #{siglip_encoder.1} parent=15 // pred_fallthru
          _
        // Predicated region
        $region21: #{siglip_encoder.1} parent=15 // pred_check
          %p313 = pneg %p84
        $region22: #{siglip_encoder.1} parent=15 // pred_check_branch
          %315 = sbr.rel (%p313) target = $region24
        $region23: #{siglip_encoder.1} parent=15 // pred_region
          %s316 = sand.u32 %s26, 1
          %s317 = scalar_lea.sflag [#allocation7], %s316
          %s318 = sand.u32 %s74, 1
          %s319 = smul.addr %s318, 384
          %s320 = scalar_lea.vmem [#allocation6], %s319
          %s322 = ssub.s32 6144, 6144
          %323 = vsyncadd %s317, %s322
          %s324 = smul.addr %s34, 48
          %s325 = smul.addr %s324, 128
          %s326 = scalar_lea.hbm %s1, %s325
          %s327 = sshll.u32 %s320, 4
          %s328 = int_to_ptr.vmem [resolvable:$true] %s327
          %333 = dma.hbm_to_vmem [thread:$0]  %s326, 6144, %s328, %s317, 384, 384, 24
        $region24: #{siglip_encoder.1} parent=15 // pred_fallthru
          _
        // Predicated region
        $region25: #{siglip_encoder.1} parent=15 // pred_check
          %p334 = pneg %p110
        $region26: #{siglip_encoder.1} parent=15 // pred_check_branch
          %336 = sbr.rel (%p334) target = $region28
        $region27: #{siglip_encoder.1} parent=15 // pred_region
          %p337 = scmp.lt.s32.totalorder %s34, 1
          %s338 = scalar_select %p337, %s34, 1
          %s339 = smul.addr %s338, 3
          %s340 = scalar_lea.vmem %s2, %s339
        $region28: #{siglip_encoder.1} parent=15 // pred_fallthru
          _
        // Predicated region
        $region29: #{siglip_encoder.1} parent=15 // pred_check
          %p341 = pneg %p136
        $region30: #{siglip_encoder.1} parent=15 // pred_check_branch
          %343 = sbr.rel (%p341) target = $region32
        $region31: #{siglip_encoder.1} parent=15 // pred_region
          %s344 = sand.u32 %s26, 1
          %s345 = scalar_lea.sflag [#allocation7], %s344
          %s346 = sand.u32 %s126, 1
          %s347 = smul.addr %s346, 128
          %s348 = scalar_lea.vmem [#allocation8], %s347
          %s350 = ssub.s32 2048, 2048
          %351 = vsyncadd %s345, %s350
          %s352 = smul.addr %s34, 16
          %s353 = smul.addr %s352, 128
          %s354 = scalar_lea.hbm %s3, %s353
          %s355 = sshll.u32 %s348, 4
          %s356 = int_to_ptr.vmem [resolvable:$true] %s355
          %361 = dma.hbm_to_vmem [thread:$0]  %s354, 2048, %s356, %s345, 128, 128, 8
        $region32: #{siglip_encoder.1} parent=15 // pred_fallthru
          _
        // Predicated region
        $region33: #{siglip_encoder.1} parent=15 // pred_check
          %p362 = pneg %p162
        $region34: #{siglip_encoder.1} parent=15 // pred_check_branch
          %364 = sbr.rel (%p362) target = $region36
        $region35: #{siglip_encoder.1} parent=15 // pred_region
          %p365 = scmp.lt.s32.totalorder %s34, 1
          %s366 = scalar_select %p365, %s34, 1
          %s367 = smul.addr %s366, 8
          %s368 = scalar_lea.vmem %s4, %s367
        $region36: #{siglip_encoder.1} parent=15 // pred_fallthru
          _
        // Predicated region
        $region37: #{siglip_encoder.1} parent=15 // pred_check
          %p369 = pneg %p188
        $region38: #{siglip_encoder.1} parent=15 // pred_check_branch
          %371 = sbr.rel (%p369) target = $region40
        $region39: #{siglip_encoder.1} parent=15 // pred_region
          %s372 = sand.u32 %s26, 1
          %s373 = scalar_lea.sflag [#allocation10], %s372
          %s374 = sand.u32 %s178, 1
          %s375 = smul.addr %s374, 256
          %s376 = scalar_lea.vmem [#allocation9], %s375
          %s378 = ssub.s32 4096, 4096
          %379 = vsyncadd %s373, %s378
          %s380 = smul.addr %s34, 32
          %s381 = smul.addr %s380, 128
          %s382 = scalar_lea.hbm %s5, %s381
          %s383 = sshll.u32 %s376, 4
          %s384 = int_to_ptr.vmem [resolvable:$true] %s383
          %389 = dma.hbm_to_vmem [thread:$0]  %s382, 4096, %s384, %s373, 256, 256, 16
        $region40: #{siglip_encoder.1} parent=15 // pred_fallthru
          _
        // Predicated region
        $region41: #{siglip_encoder.1} parent=15 // pred_check
          %p390 = pneg %p214
        $region42: #{siglip_encoder.1} parent=15 // pred_check_branch
          %392 = sbr.rel (%p390) target = $region44
        $region43: #{siglip_encoder.1} parent=15 // pred_region
          %p393 = scmp.lt.s32.totalorder %s34, 1
          %s394 = scalar_select %p393, %s34, 1
          %s395 = smul.addr %s394, 2
          %s396 = scalar_lea.vmem %s6, %s395
        $region44: #{siglip_encoder.1} parent=15 // pred_fallthru
          _
        // Predicated region
        $region45: #{siglip_encoder.1} parent=15 // pred_check
          %p397 = pneg %p240
        $region46: #{siglip_encoder.1} parent=15 // pred_check_branch
          %399 = sbr.rel (%p397) target = $region48
        $region47: #{siglip_encoder.1} parent=15 // pred_region
          %s400 = sand.u32 %s26, 1
          %s401 = scalar_lea.sflag [#allocation10], %s400
          %s402 = sand.u32 %s230, 1
          %s403 = smul.addr %s402, 256
          %s404 = scalar_lea.vmem [#allocation11], %s403
          %s406 = ssub.s32 4096, 4096
          %407 = vsyncadd %s401, %s406
          %s408 = smul.addr %s34, 32
          %s409 = smul.addr %s408, 128
          %s410 = scalar_lea.hbm %s7, %s409
          %s411 = sshll.u32 %s404, 4
          %s412 = int_to_ptr.vmem [resolvable:$true] %s411
          %417 = dma.hbm_to_vmem [thread:$0]  %s410, 4096, %s412, %s401, 128, 128, 8
        $region48: #{siglip_encoder.1} parent=15 // pred_fallthru
          _
      $region16: #{siglip_encoder.1} parent=5 // pred_fallthru
        _
      %p418 = scmp.le.s32.totalorder 1, %s26
      %p419 = scmp.lt.s32.totalorder %s26, 5
      %p420 = pnand %p418, %p419
      %p421 = pneg %p420
      // Predicated region
      $region49: #{siglip_encoder.1} parent=5 // pred_check
        _
      $region50: #{siglip_encoder.1} parent=5 // pred_check_branch
        %423 = sbr.rel (%p420) target = $region52
      $region51: #{siglip_encoder.1} parent=5 // pred_region
        %s424 = ssub.s32 %s26, 1
        %s425 = sand.u32 %s51, 1
        %s426 = scalar_lea.sflag [#allocation4], %s425
        %s427 = sand.u32 %s51, 1
        %s428 = smul.addr %s427, 128
        %s429 = scalar_lea.vmem [#allocation3], %s428
        // Predicated region
        $region53: #{siglip_encoder.1} parent=51 // pred_check
          %p430 = pneg %p64
        $region54: #{siglip_encoder.1} parent=51 // pred_check_branch
          %432 = sbr.rel (%p430) target = $region56
        $region55: #{siglip_encoder.1} parent=51 // pred_region
          %433 = dma.done %s426, 2048
        $region56: #{siglip_encoder.1} parent=51 // pred_fallthru
          _
        %s434 = sand.u32 %s31, 1
        %s435 = scalar_lea.sflag [#allocation7], %s434
        %s436 = sand.u32 %s77, 1
        %s437 = smul.addr %s436, 384
        %s438 = scalar_lea.vmem [#allocation6], %s437
        // Predicated region
        $region57: #{siglip_encoder.1} parent=51 // pred_check
          %p439 = pneg %p90
        $region58: #{siglip_encoder.1} parent=51 // pred_check_branch
          %441 = sbr.rel (%p439) target = $region60
        $region59: #{siglip_encoder.1} parent=51 // pred_region
          %442 = dma.done %s435, 6144
        $region60: #{siglip_encoder.1} parent=51 // pred_fallthru
          _
        %s443 = sand.u32 %s31, 1
        %s444 = scalar_lea.sflag [#allocation7], %s443
        %s445 = sand.u32 %s129, 1
        %s446 = smul.addr %s445, 128
        %s447 = scalar_lea.vmem [#allocation8], %s446
        // Predicated region
        $region61: #{siglip_encoder.1} parent=51 // pred_check
          %p448 = pneg %p142
        $region62: #{siglip_encoder.1} parent=51 // pred_check_branch
          %450 = sbr.rel (%p448) target = $region64
        $region63: #{siglip_encoder.1} parent=51 // pred_region
          %451 = dma.done %s444, 2048
        $region64: #{siglip_encoder.1} parent=51 // pred_fallthru
          _
        %s452 = sand.u32 %s31, 1
        %s453 = scalar_lea.sflag [#allocation10], %s452
        %s454 = sand.u32 %s181, 1
        %s455 = smul.addr %s454, 256
        %s456 = scalar_lea.vmem [#allocation9], %s455
        // Predicated region
        $region65: #{siglip_encoder.1} parent=51 // pred_check
          %p457 = pneg %p194
        $region66: #{siglip_encoder.1} parent=51 // pred_check_branch
          %459 = sbr.rel (%p457) target = $region68
        $region67: #{siglip_encoder.1} parent=51 // pred_region
          %460 = dma.done %s453, 4096
        $region68: #{siglip_encoder.1} parent=51 // pred_fallthru
          _
        %s461 = sand.u32 %s31, 1
        %s462 = scalar_lea.sflag [#allocation10], %s461
        %s463 = sand.u32 %s233, 1
        %s464 = smul.addr %s463, 256
        %s465 = scalar_lea.vmem [#allocation11], %s464
        // Predicated region
        $region69: #{siglip_encoder.1} parent=51 // pred_check
          %p466 = pneg %p246
        $region70: #{siglip_encoder.1} parent=51 // pred_check_branch
          %468 = sbr.rel (%p466) target = $region72
        $region71: #{siglip_encoder.1} parent=51 // pred_region
          %469 = dma.done %s462, 4096
        $region72: #{siglip_encoder.1} parent=51 // pred_fallthru
          _
        %s470 = sand.u32 %s51, 1
        %s471 = scalar_lea.sflag [#allocation4], %s470
        %s472 = sand.u32 %s51, 1
        %s473 = smul.addr %s472, 128
        %s474 = scalar_lea.vmem [#allocation3], %s473
        %p475 = pneg %p64
        %p476 = pneg %p61
        %s477 = sand.u32 %s31, 1
        %s478 = scalar_lea.sflag [#allocation7], %s477
        %s479 = sand.u32 %s77, 1
        %s480 = smul.addr %s479, 384
        %s481 = scalar_lea.vmem [#allocation6], %s480
        %p482 = pneg %p90
        %p483 = pneg %p87
        %p484 = scmp.lt.s32.totalorder %s36, 1
        %s485 = scalar_select %p484, %s36, 1
        %s486 = smul.addr %s485, 3
        %s487 = scalar_lea.vmem %s2, %s486
        %p488 = pneg %p116
        %p489 = pneg %p113
        %s490 = sand.u32 %s31, 1
        %s491 = scalar_lea.sflag [#allocation7], %s490
        %s492 = sand.u32 %s129, 1
        %s493 = smul.addr %s492, 128
        %s494 = scalar_lea.vmem [#allocation8], %s493
        %p495 = pneg %p142
        %p496 = pneg %p139
        %p497 = scmp.lt.s32.totalorder %s36, 1
        %s498 = scalar_select %p497, %s36, 1
        %s499 = smul.addr %s498, 8
        %s500 = scalar_lea.vmem %s4, %s499
        %p501 = pneg %p168
        %p502 = pneg %p165
        %s503 = sand.u32 %s31, 1
        %s504 = scalar_lea.sflag [#allocation10], %s503
        %s505 = sand.u32 %s181, 1
        %s506 = smul.addr %s505, 256
        %s507 = scalar_lea.vmem [#allocation9], %s506
        %p508 = pneg %p194
        %p509 = pneg %p191
        %p510 = scmp.lt.s32.totalorder %s36, 1
        %s511 = scalar_select %p510, %s36, 1
        %s512 = smul.addr %s511, 2
        %s513 = scalar_lea.vmem %s6, %s512
        %p514 = pneg %p220
        %p515 = pneg %p217
        %s516 = sand.u32 %s31, 1
        %s517 = scalar_lea.sflag [#allocation10], %s516
        %s518 = sand.u32 %s233, 1
        %s519 = smul.addr %s518, 256
        %s520 = scalar_lea.vmem [#allocation11], %s519
        %p521 = pneg %p246
        %p522 = pneg %p243
        %p523 = pneg %p272
        %p524 = pneg %p269
        %s525 = sand.u32 %s259, 1
        %s526 = scalar_lea.sflag [#allocation5], %s525
        %s527 = sand.u32 %s259, 1
        %s528 = smul.addr %s527, 128
        %s529 = scalar_lea.vmem [#allocation12], %s528
        %s530 = smul.u32 2, %s35
        %p531 = scmp.lt.s32.totalorder %s36, 1
        %s532 = scalar_select %p531, %s36, 1
        %s533 = smul.addr %s532, 3
        %s534 = scalar_lea.vmem %s2, %s533
        %p535 = scmp.lt.s32.totalorder %s36, 1
        %s536 = scalar_select %p535, %s36, 1
        %s537 = smul.addr %s536, 8
        %s538 = scalar_lea.vmem %s4, %s537
        %p539 = scmp.lt.s32.totalorder %s36, 1
        %s540 = scalar_select %p539, %s36, 1
        %s541 = smul.addr %s540, 2
        %s542 = scalar_lea.vmem %s6, %s541
        %s543 = smul.u32 2, %s35
        %p544 = scmp.eq.s32.totalorder %s36, 0
        // Predicated region
        $region73: #{siglip_encoder.1} parent=51 // pred_check
          %p545 = pneg %p544
        $region74: #{siglip_encoder.1} parent=51 // pred_check_branch
          %547 = sbr.rel (%p545) target = $region76
        $region75: #{siglip_encoder.1} parent=51 // pred_region
          %v548 = vld [vmem:[%s429] sm:$0xff]
          %v549 = vld [vmem:[%s429 + $0x8] sm:$0xff]
          %v550 = vld [vmem:[%s429 + $0x10] sm:$0xff]
          %v551 = vld [vmem:[%s429 + $0x18] sm:$0xff]
          %v552 = vld [vmem:[%s429 + $0x20] sm:$0xff]
          %v553 = vld [vmem:[%s429 + $0x28] sm:$0xff]
          %v554 = vld [vmem:[%s429 + $0x30] sm:$0xff]
          %v555 = vld [vmem:[%s429 + $0x38] sm:$0xff]
          %v556 = vld [vmem:[%s429 + $0x40] sm:$0xff]
          %v557 = vld [vmem:[%s429 + $0x48] sm:$0xff]
          %v558 = vld [vmem:[%s429 + $0x50] sm:$0xff]
          %v559 = vld [vmem:[%s429 + $0x58] sm:$0xff]
          %v560 = vld [vmem:[%s429 + $0x60] sm:$0xff]
          %v561 = vld [vmem:[%s429 + $0x68] sm:$0xff]
          %v562 = vld [vmem:[%s429 + $0x70] sm:$0xff]
          %v563 = vld [vmem:[%s429 + $0x78] sm:$0xff]
          %564 = vst [vmem:[#allocation2] sm:$0xff] %v548
          %565 = vst [vmem:[#allocation2 + $0x8] sm:$0xff] %v549
          %566 = vst [vmem:[#allocation2 + $0x10] sm:$0xff] %v550
          %567 = vst [vmem:[#allocation2 + $0x18] sm:$0xff] %v551
          %568 = vst [vmem:[#allocation2 + $0x20] sm:$0xff] %v552
          %569 = vst [vmem:[#allocation2 + $0x28] sm:$0xff] %v553
          %570 = vst [vmem:[#allocation2 + $0x30] sm:$0xff] %v554
          %571 = vst [vmem:[#allocation2 + $0x38] sm:$0xff] %v555
          %572 = vst [vmem:[#allocation2 + $0x40] sm:$0xff] %v556
          %573 = vst [vmem:[#allocation2 + $0x48] sm:$0xff] %v557
          %574 = vst [vmem:[#allocation2 + $0x50] sm:$0xff] %v558
          %575 = vst [vmem:[#allocation2 + $0x58] sm:$0xff] %v559
          %576 = vst [vmem:[#allocation2 + $0x60] sm:$0xff] %v560
          %577 = vst [vmem:[#allocation2 + $0x68] sm:$0xff] %v561
          %578 = vst [vmem:[#allocation2 + $0x70] sm:$0xff] %v562
          %579 = vst [vmem:[#allocation2 + $0x78] sm:$0xff] %v563
        $region76: #{siglip_encoder.1} parent=51 // pred_fallthru
          _
        %v580 = vld [vmem:[#allocation2] sm:$0xff]
        %v581 = vld [vmem:[#allocation2 + $0x8] sm:$0xff]
        %v582 = vld [vmem:[#allocation2 + $0x10] sm:$0xff]
        %v583 = vld [vmem:[#allocation2 + $0x18] sm:$0xff]
        %v584 = vld [vmem:[#allocation2 + $0x20] sm:$0xff]
        %v585 = vld [vmem:[#allocation2 + $0x28] sm:$0xff]
        %v586 = vld [vmem:[#allocation2 + $0x30] sm:$0xff]
        %v587 = vld [vmem:[#allocation2 + $0x38] sm:$0xff]
        %v588 = vld [vmem:[#allocation2 + $0x40] sm:$0xff]
        %v589 = vld [vmem:[#allocation2 + $0x48] sm:$0xff]
        %v590 = vld [vmem:[#allocation2 + $0x50] sm:$0xff]
        %v591 = vld [vmem:[#allocation2 + $0x58] sm:$0xff]
        %v592 = vld [vmem:[#allocation2 + $0x60] sm:$0xff]
        %v593 = vld [vmem:[#allocation2 + $0x68] sm:$0xff]
        %v594 = vld [vmem:[#allocation2 + $0x70] sm:$0xff]
        %v595 = vld [vmem:[#allocation2 + $0x78] sm:$0xff]
        %v596 = vld [vmem:[%s538] sm:$0x3f]
        %597 = vadd.xlane.f32.xlu0 %v580
        %v598 = vpop.xlane.xlu0 %597
        %599 = vadd.xlane.f32.xlu0 %v581
        %v600 = vpop.xlane.xlu0 %599
        %601 = vadd.xlane.f32.xlu0 %v582
        %v602 = vpop.xlane.xlu0 %601
        %603 = vadd.xlane.f32.xlu0 %v583
        %v604 = vpop.xlane.xlu0 %603
        %605 = vadd.xlane.f32.xlu0 %v584
        %v606 = vpop.xlane.xlu0 %605
        %607 = vadd.xlane.f32.xlu0 %v585
        %v608 = vpop.xlane.xlu0 %607
        %609 = vadd.xlane.f32.xlu0 %v586
        %v610 = vpop.xlane.xlu0 %609
        %611 = vadd.xlane.f32.xlu0 %v587
        %v612 = vpop.xlane.xlu0 %611
        %613 = vadd.xlane.f32.xlu0 %v588
        %v614 = vpop.xlane.xlu0 %613
        %615 = vadd.xlane.f32.xlu0 %v589
        %v616 = vpop.xlane.xlu0 %615
        %617 = vadd.xlane.f32.xlu0 %v590
        %v618 = vpop.xlane.xlu0 %617
        %619 = vadd.xlane.f32.xlu0 %v591
        %v620 = vpop.xlane.xlu0 %619
        %621 = vadd.xlane.f32.xlu0 %v592
        %v622 = vpop.xlane.xlu0 %621
        %623 = vadd.xlane.f32.xlu0 %v593
        %v624 = vpop.xlane.xlu0 %623
        %625 = vadd.xlane.f32.xlu0 %v594
        %v626 = vpop.xlane.xlu0 %625
        %627 = vadd.xlane.f32.xlu0 %v595
        %v628 = vpop.xlane.xlu0 %627
        %v629 = vrcp.pop 128.0
        %v630 = vmul.f32 %v598, %v629
        %v631 = vmul.f32 %v600, %v629
        %v632 = vmul.f32 %v602, %v629
        %v633 = vmul.f32 %v604, %v629
        %v634 = vmul.f32 %v606, %v629
        %v635 = vmul.f32 %v608, %v629
        %v636 = vmul.f32 %v610, %v629
        %v637 = vmul.f32 %v612, %v629
        %v638 = vmul.f32 %v614, %v629
        %v639 = vmul.f32 %v616, %v629
        %v640 = vmul.f32 %v618, %v629
        %v641 = vmul.f32 %v620, %v629
        %v642 = vmul.f32 %v622, %v629
        %v643 = vmul.f32 %v624, %v629
        %v644 = vmul.f32 %v626, %v629
        %v645 = vmul.f32 %v628, %v629
        %v646 = vsub.f32 %v580, %v630
        %v647 = vsub.f32 %v581, %v631
        %v648 = vsub.f32 %v582, %v632
        %v649 = vsub.f32 %v583, %v633
        %v650 = vsub.f32 %v584, %v634
        %v651 = vsub.f32 %v585, %v635
        %v652 = vsub.f32 %v586, %v636
        %v653 = vsub.f32 %v587, %v637
        %v654 = vsub.f32 %v588, %v638
        %v655 = vsub.f32 %v589, %v639
        %v656 = vsub.f32 %v590, %v640
        %v657 = vsub.f32 %v591, %v641
        %v658 = vsub.f32 %v592, %v642
        %v659 = vsub.f32 %v593, %v643
        %v660 = vsub.f32 %v594, %v644
        %v661 = vsub.f32 %v595, %v645
        %v662 = vmul.f32 %v646, %v646
        %v663 = vmul.f32 %v647, %v647
        %v664 = vmul.f32 %v648, %v648
        %v665 = vmul.f32 %v649, %v649
        %v666 = vmul.f32 %v650, %v650
        %v667 = vmul.f32 %v651, %v651
        %v668 = vmul.f32 %v652, %v652
        %v669 = vmul.f32 %v653, %v653
        %v670 = vmul.f32 %v654, %v654
        %v671 = vmul.f32 %v655, %v655
        %v672 = vmul.f32 %v656, %v656
        %v673 = vmul.f32 %v657, %v657
        %v674 = vmul.f32 %v658, %v658
        %v675 = vmul.f32 %v659, %v659
        %v676 = vmul.f32 %v660, %v660
        %v677 = vmul.f32 %v661, %v661
        %678 = vadd.xlane.f32.xlu0 %v662
        %v679 = vpop.xlane.xlu0 %678
        %680 = vadd.xlane.f32.xlu0 %v663
        %v681 = vpop.xlane.xlu0 %680
        %682 = vadd.xlane.f32.xlu0 %v664
        %v683 = vpop.xlane.xlu0 %682
        %684 = vadd.xlane.f32.xlu0 %v665
        %v685 = vpop.xlane.xlu0 %684
        %686 = vadd.xlane.f32.xlu0 %v666
        %v687 = vpop.xlane.xlu0 %686
        %688 = vadd.xlane.f32.xlu0 %v667
        %v689 = vpop.xlane.xlu0 %688
        %690 = vadd.xlane.f32.xlu0 %v668
        %v691 = vpop.xlane.xlu0 %690
        %692 = vadd.xlane.f32.xlu0 %v669
        %v693 = vpop.xlane.xlu0 %692
        %694 = vadd.xlane.f32.xlu0 %v670
        %v695 = vpop.xlane.xlu0 %694
        %696 = vadd.xlane.f32.xlu0 %v671
        %v697 = vpop.xlane.xlu0 %696
        %698 = vadd.xlane.f32.xlu0 %v672
        %v699 = vpop.xlane.xlu0 %698
        %700 = vadd.xlane.f32.xlu0 %v673
        %v701 = vpop.xlane.xlu0 %700
        %702 = vadd.xlane.f32.xlu0 %v674
        %v703 = vpop.xlane.xlu0 %702
        %704 = vadd.xlane.f32.xlu0 %v675
        %v705 = vpop.xlane.xlu0 %704
        %706 = vadd.xlane.f32.xlu0 %v676
        %v707 = vpop.xlane.xlu0 %706
        %708 = vadd.xlane.f32.xlu0 %v677
        %v709 = vpop.xlane.xlu0 %708
        %v710 = vmul.f32 %v679, %v629
        %v711 = vmul.f32 %v681, %v629
        %v712 = vmul.f32 %v683, %v629
        %v713 = vmul.f32 %v685, %v629
        %v714 = vmul.f32 %v687, %v629
        %v715 = vmul.f32 %v689, %v629
        %v716 = vmul.f32 %v691, %v629
        %v717 = vmul.f32 %v693, %v629
        %v718 = vmul.f32 %v695, %v629
        %v719 = vmul.f32 %v697, %v629
        %v720 = vmul.f32 %v699, %v629
        %v721 = vmul.f32 %v701, %v629
        %v722 = vmul.f32 %v703, %v629
        %v723 = vmul.f32 %v705, %v629
        %v724 = vmul.f32 %v707, %v629
        %v725 = vmul.f32 %v709, %v629
        %v726 = vadd.f32 %v710, 1e-06
        %v727 = vadd.f32 %v711, 1e-06
        %v728 = vadd.f32 %v712, 1e-06
        %v729 = vadd.f32 %v713, 1e-06
        %v730 = vadd.f32 %v714, 1e-06
        %v731 = vadd.f32 %v715, 1e-06
        %v732 = vadd.f32 %v716, 1e-06
        %v733 = vadd.f32 %v717, 1e-06
        %v734 = vadd.f32 %v718, 1e-06
        %v735 = vadd.f32 %v719, 1e-06
        %v736 = vadd.f32 %v720, 1e-06
        %v737 = vadd.f32 %v721, 1e-06
        %v738 = vadd.f32 %v722, 1e-06
        %v739 = vadd.f32 %v723, 1e-06
        %v740 = vadd.f32 %v724, 1e-06
        %v741 = vadd.f32 %v725, 1e-06
        %v742 = vrsqrt.pop %v726
        %v743 = vrsqrt.pop %v727
        %v744 = vrsqrt.pop %v728
        %v745 = vrsqrt.pop %v729
        %v746 = vrsqrt.pop %v730
        %v747 = vrsqrt.pop %v731
        %v748 = vrsqrt.pop %v732
        %v749 = vrsqrt.pop %v733
        %v750 = vrsqrt.pop %v734
        %v751 = vrsqrt.pop %v735
        %v752 = vrsqrt.pop %v736
        %v753 = vrsqrt.pop %v737
        %v754 = vrsqrt.pop %v738
        %v755 = vrsqrt.pop %v739
        %v756 = vrsqrt.pop %v740
        %v757 = vrsqrt.pop %v741
        %v758 = vmul.f32 %v646, %v742
        %v759 = vmul.f32 %v647, %v743
        %v760 = vmul.f32 %v648, %v744
        %v761 = vmul.f32 %v649, %v745
        %v762 = vmul.f32 %v650, %v746
        %v763 = vmul.f32 %v651, %v747
        %v764 = vmul.f32 %v652, %v748
        %v765 = vmul.f32 %v653, %v749
        %v766 = vmul.f32 %v654, %v750
        %v767 = vmul.f32 %v655, %v751
        %v768 = vmul.f32 %v656, %v752
        %v769 = vmul.f32 %v657, %v753
        %v770 = vmul.f32 %v658, %v754
        %v771 = vmul.f32 %v659, %v755
        %v772 = vmul.f32 %v660, %v756
        %v773 = vmul.f32 %v661, %v757
        %v774 = vlaneseq
        %v775 = vshrl.u32 %v774, 7
        %v776 = vsub.s32 0, %v775
        %v777 = vrot.slane %v596, %v776
        %v778 = vmul.f32 %v758, %v777
        %v779 = vmul.f32 %v759, %v777
        %v780 = vmul.f32 %v760, %v777
        %v781 = vmul.f32 %v761, %v777
        %v782 = vmul.f32 %v762, %v777
        %v783 = vmul.f32 %v763, %v777
        %v784 = vmul.f32 %v764, %v777
        %v785 = vmul.f32 %v765, %v777
        %v786 = vmul.f32 %v766, %v777
        %v787 = vmul.f32 %v767, %v777
        %v788 = vmul.f32 %v768, %v777
        %v789 = vmul.f32 %v769, %v777
        %v790 = vmul.f32 %v770, %v777
        %v791 = vmul.f32 %v771, %v777
        %v792 = vmul.f32 %v772, %v777
        %v793 = vmul.f32 %v773, %v777
        %v794 = vlaneseq
        %v795 = vshrl.u32 %v794, 7
        %v796 = vsub.s32 1, %v795
        %v797 = vrot.slane %v596, %v796
        %v798 = vadd.f32 %v778, %v797
        %v799 = vadd.f32 %v779, %v797
        %v800 = vadd.f32 %v780, %v797
        %v801 = vadd.f32 %v781, %v797
        %v802 = vadd.f32 %v782, %v797
        %v803 = vadd.f32 %v783, %v797
        %v804 = vadd.f32 %v784, %v797
        %v805 = vadd.f32 %v785, %v797
        %v806 = vadd.f32 %v786, %v797
        %v807 = vadd.f32 %v787, %v797
        %v808 = vadd.f32 %v788, %v797
        %v809 = vadd.f32 %v789, %v797
        %v810 = vadd.f32 %v790, %v797
        %v811 = vadd.f32 %v791, %v797
        %v812 = vadd.f32 %v792, %v797
        %v813 = vadd.f32 %v793, %v797
        %v814 = vld [vmem:[%s438] sm:$0xff]
        %v815 = vld [vmem:[%s438 + $0x8] sm:$0xff]
        %v816 = vld [vmem:[%s438 + $0x10] sm:$0xff]
        %v817 = vld [vmem:[%s438 + $0x18] sm:$0xff]
        %v818 = vld [vmem:[%s438 + $0x20] sm:$0xff]
        %v819 = vld [vmem:[%s438 + $0x28] sm:$0xff]
        %v820 = vld [vmem:[%s438 + $0x30] sm:$0xff]
        %v821 = vld [vmem:[%s438 + $0x38] sm:$0xff]
        %v822 = vld [vmem:[%s438 + $0x40] sm:$0xff]
        %v823 = vld [vmem:[%s438 + $0x48] sm:$0xff]
        %v824 = vld [vmem:[%s438 + $0x50] sm:$0xff]
        %v825 = vld [vmem:[%s438 + $0x58] sm:$0xff]
        %v826 = vld [vmem:[%s438 + $0x60] sm:$0xff]
        %v827 = vld [vmem:[%s438 + $0x68] sm:$0xff]
        %v828 = vld [vmem:[%s438 + $0x70] sm:$0xff]
        %v829 = vld [vmem:[%s438 + $0x78] sm:$0xff]
        %v830 = vld [vmem:[%s438 + $0x80] sm:$0xff]
        %v831 = vld [vmem:[%s438 + $0x88] sm:$0xff]
        %v832 = vld [vmem:[%s438 + $0x90] sm:$0xff]
        %v833 = vld [vmem:[%s438 + $0x98] sm:$0xff]
        %v834 = vld [vmem:[%s438 + $0xa0] sm:$0xff]
        %v835 = vld [vmem:[%s438 + $0xa8] sm:$0xff]
        %v836 = vld [vmem:[%s438 + $0xb0] sm:$0xff]
        %v837 = vld [vmem:[%s438 + $0xb8] sm:$0xff]
        %v838 = vld [vmem:[%s438 + $0xc0] sm:$0xff]
        %v839 = vld [vmem:[%s438 + $0xc8] sm:$0xff]
        %v840 = vld [vmem:[%s438 + $0xd0] sm:$0xff]
        %v841 = vld [vmem:[%s438 + $0xd8] sm:$0xff]
        %v842 = vld [vmem:[%s438 + $0xe0] sm:$0xff]
        %v843 = vld [vmem:[%s438 + $0xe8] sm:$0xff]
        %v844 = vld [vmem:[%s438 + $0xf0] sm:$0xff]
        %v845 = vld [vmem:[%s438 + $0xf8] sm:$0xff]
        %v846 = vld [vmem:[%s438 + $0x100] sm:$0xff]
        %v847 = vld [vmem:[%s438 + $0x108] sm:$0xff]
        %v848 = vld [vmem:[%s438 + $0x110] sm:$0xff]
        %v849 = vld [vmem:[%s438 + $0x118] sm:$0xff]
        %v850 = vld [vmem:[%s438 + $0x120] sm:$0xff]
        %v851 = vld [vmem:[%s438 + $0x128] sm:$0xff]
        %v852 = vld [vmem:[%s438 + $0x130] sm:$0xff]
        %v853 = vld [vmem:[%s438 + $0x138] sm:$0xff]
        %v854 = vld [vmem:[%s438 + $0x140] sm:$0xff]
        %v855 = vld [vmem:[%s438 + $0x148] sm:$0xff]
        %v856 = vld [vmem:[%s438 + $0x150] sm:$0xff]
        %v857 = vld [vmem:[%s438 + $0x158] sm:$0xff]
        %v858 = vld [vmem:[%s438 + $0x160] sm:$0xff]
        %v859 = vld [vmem:[%s438 + $0x168] sm:$0xff]
        %v860 = vld [vmem:[%s438 + $0x170] sm:$0xff]
        %v861 = vld [vmem:[%s438 + $0x178] sm:$0xff]
        %v862 = vld [vmem:[%s534] sm:$0x7]
        %v864 = vlaneseq
        %v865 = vshrl.u32 %v864, 7
        %v866 = vsub.s32 0, %v865
        %v867 = vrot.slane %v862, %v866
        %v868 = vlaneseq
        %v869 = vshrl.u32 %v868, 7
        %v870 = vsub.s32 1, %v869
        %v871 = vrot.slane %v862, %v870
        %v872 = vlaneseq
        %v873 = vshrl.u32 %v872, 7
        %v874 = vsub.s32 2, %v873
        %v875 = vrot.slane %v862, %v874
        %879 = vmatprep.subr.mxu0 %v860
        %880 = vmatpush1.msra.mxu0 %v859
        %881 = vmatprep.subr.mxu0 %v857
        %882 = vmatpush1.msra.mxu0 %v856
        %883 = vmatprep.subr.mxu0 %v854
        %884 = vmatpush1.msra.mxu0 %v853
        %885 = vmatprep.subr.mxu0 %v851
        %886 = vmatpush1.msra.mxu0 %v850
        %887 = vmatprep.subr.mxu0 %v848
        %888 = vmatpush1.msra.mxu0 %v847
        %889 = vmatprep.subr.mxu0 %v845
        %890 = vmatpush1.msra.mxu0 %v844
        %891 = vmatprep.subr.mxu0 %v842
        %892 = vmatpush1.msra.mxu0 %v841
        %893 = vmatprep.subr.mxu0 %v839
        %894 = vmatpush1.msra.mxu0 %v838
        %895 = vmatprep.subr.mxu0 %v836
        %896 = vmatpush1.msra.mxu0 %v835
        %897 = vmatprep.subr.mxu0 %v833
        %898 = vmatpush1.msra.mxu0 %v832
        %899 = vmatprep.subr.mxu0 %v830
        %900 = vmatpush1.msra.mxu0 %v829
        %901 = vmatprep.subr.mxu0 %v827
        %902 = vmatpush1.msra.mxu0 %v826
        %903 = vmatprep.subr.mxu0 %v824
        %904 = vmatpush1.msra.mxu0 %v823
        %905 = vmatprep.subr.mxu0 %v821
        %906 = vmatpush1.msra.mxu0 %v820
        %907 = vmatprep.subr.mxu0 %v818
        %908 = vmatpush1.msra.mxu0 %v817
        %909 = vmatprep.subr.mxu0 %v815
        %910 = vmatpush1.msra.mxu0 %v814
        %911 = vmatprep.subr.mxu0 0.0
        %912 = vmatpush2.msra.mxu0 0.0
        %913 = vmatprep.subr.mxu0 0.0
        %914 = vmatpush2.msra.mxu0 0.0
        %915 = vmatprep.subr.mxu0 0.0
        %916 = vmatpush2.msra.mxu0 0.0
        %917 = vmatprep.subr.mxu0 0.0
        %918 = vmatpush2.msra.mxu0 0.0
        %919 = vmatprep.subr.mxu0 0.0
        %920 = vmatpush2.msra.mxu0 0.0
        %921 = vmatprep.subr.mxu0 0.0
        %922 = vmatpush2.msra.mxu0 0.0
        %923 = vmatprep.subr.mxu0 0.0
        %924 = vmatpush2.msra.mxu0 0.0
        %925 = vmatprep.subr.mxu0 0.0
        %926 = vmatpush2.msra.mxu0 0.0
        %927 = vmatprep.subr.mxu0 0.0
        %928 = vmatpush2.msra.mxu0 0.0
        %929 = vmatprep.subr.mxu0 0.0
        %930 = vmatpush2.msra.mxu0 0.0
        %931 = vmatprep.subr.mxu0 0.0
        %932 = vmatpush2.msra.mxu0 0.0
        %933 = vmatprep.subr.mxu0 0.0
        %934 = vmatpush2.msra.mxu0 0.0
        %935 = vmatprep.subr.mxu0 0.0
        %936 = vmatpush2.msra.mxu0 0.0
        %937 = vmatprep.subr.mxu0 0.0
        %938 = vmatpush2.msra.mxu0 0.0
        %939 = vmatprep.subr.mxu0 0.0
        %940 = vmatpush2.msra.mxu0 0.0
        %941 = vmatprep.subr.mxu0 0.0
        %942 = vmatpush2.msra.mxu0 0.0
        %943 = vmatprep.mubr.f32.mxu0 0.0
        %944 = vmatmul.mubr.f32.gmra.mxu0 %v798
        %v945 = vpop.f32.mrf.mxu0
        %v946 = vadd.f32 %v867, %v945
        %v947 = vpop.f32.mrf.mxu0
        %v948 = vadd.f32 %v871, %v947
        %949 = vmatprep.mubr.f32.mxu0 0.0
        %950 = vmatmul.mubr.f32.gmra.mxu0 %v799
        %v951 = vpop.f32.mrf.mxu0
        %v952 = vadd.f32 %v867, %v951
        %v953 = vpop.f32.mrf.mxu0
        %v954 = vadd.f32 %v871, %v953
        %955 = vmatprep.mubr.f32.mxu0 0.0
        %956 = vmatmul.mubr.f32.gmra.mxu0 %v800
        %v957 = vpop.f32.mrf.mxu0
        %v958 = vadd.f32 %v867, %v957
        %v959 = vpop.f32.mrf.mxu0
        %v960 = vadd.f32 %v871, %v959
        %961 = vmatprep.mubr.f32.mxu0 0.0
        %962 = vmatmul.mubr.f32.gmra.mxu0 %v801
        %v963 = vpop.f32.mrf.mxu0
        %v964 = vadd.f32 %v867, %v963
        %v965 = vpop.f32.mrf.mxu0
        %v966 = vadd.f32 %v871, %v965
        %967 = vmatprep.mubr.f32.mxu0 0.0
        %968 = vmatmul.mubr.f32.gmra.mxu0 %v802
        %v969 = vpop.f32.mrf.mxu0
        %v970 = vadd.f32 %v867, %v969
        %v971 = vpop.f32.mrf.mxu0
        %v972 = vadd.f32 %v871, %v971
        %973 = vmatprep.mubr.f32.mxu0 0.0
        %974 = vmatmul.mubr.f32.gmra.mxu0 %v803
        %v975 = vpop.f32.mrf.mxu0
        %v976 = vadd.f32 %v867, %v975
        %v977 = vpop.f32.mrf.mxu0
        %v978 = vadd.f32 %v871, %v977
        %979 = vmatprep.mubr.f32.mxu0 0.0
        %980 = vmatmul.mubr.f32.gmra.mxu0 %v804
        %v981 = vpop.f32.mrf.mxu0
        %v982 = vadd.f32 %v867, %v981
        %v983 = vpop.f32.mrf.mxu0
        %v984 = vadd.f32 %v871, %v983
        %985 = vmatprep.mubr.f32.mxu0 0.0
        %986 = vmatmul.mubr.f32.gmra.mxu0 %v805
        %v987 = vpop.f32.mrf.mxu0
        %v988 = vadd.f32 %v867, %v987
        %v989 = vpop.f32.mrf.mxu0
        %v990 = vadd.f32 %v871, %v989
        %991 = vmatprep.mubr.f32.mxu0 0.0
        %992 = vmatmul.mubr.f32.gmra.mxu0 %v806
        %v993 = vpop.f32.mrf.mxu0
        %v994 = vadd.f32 %v867, %v993
        %v995 = vpop.f32.mrf.mxu0
        %v996 = vadd.f32 %v871, %v995
        %997 = vmatprep.mubr.f32.mxu0 0.0
        %998 = vmatmul.mubr.f32.gmra.mxu0 %v807
        %v999 = vpop.f32.mrf.mxu0
        %v1000 = vadd.f32 %v867, %v999
        %v1001 = vpop.f32.mrf.mxu0
        %v1002 = vadd.f32 %v871, %v1001
        %1003 = vmatprep.mubr.f32.mxu0 0.0
        %1004 = vmatmul.mubr.f32.gmra.mxu0 %v808
        %v1005 = vpop.f32.mrf.mxu0
        %v1006 = vadd.f32 %v867, %v1005
        %v1007 = vpop.f32.mrf.mxu0
        %v1008 = vadd.f32 %v871, %v1007
        %1009 = vmatprep.mubr.f32.mxu0 0.0
        %1010 = vmatmul.mubr.f32.gmra.mxu0 %v809
        %v1011 = vpop.f32.mrf.mxu0
        %v1012 = vadd.f32 %v867, %v1011
        %v1013 = vpop.f32.mrf.mxu0
        %v1014 = vadd.f32 %v871, %v1013
        %1015 = vmatprep.mubr.f32.mxu0 0.0
        %1016 = vmatmul.mubr.f32.gmra.mxu0 %v810
        %v1017 = vpop.f32.mrf.mxu0
        %v1018 = vadd.f32 %v867, %v1017
        %v1019 = vpop.f32.mrf.mxu0
        %v1020 = vadd.f32 %v871, %v1019
        %1021 = vmatprep.mubr.f32.mxu0 0.0
        %1022 = vmatmul.mubr.f32.gmra.mxu0 %v811
        %v1023 = vpop.f32.mrf.mxu0
        %v1024 = vadd.f32 %v867, %v1023
        %v1025 = vpop.f32.mrf.mxu0
        %v1026 = vadd.f32 %v871, %v1025
        %1027 = vmatprep.mubr.f32.mxu0 0.0
        %1028 = vmatmul.mubr.f32.gmra.mxu0 %v812
        %v1029 = vpop.f32.mrf.mxu0
        %v1030 = vadd.f32 %v867, %v1029
        %v1031 = vpop.f32.mrf.mxu0
        %v1032 = vadd.f32 %v871, %v1031
        %1033 = vmatprep.mubr.f32.mxu0 0.0
        %1034 = vmatmul.mubr.f32.gmra.mxu0 %v813
        %v1035 = vpop.f32.mrf.mxu0
        %v1036 = vadd.f32 %v867, %v1035
        %v1037 = vpop.f32.mrf.mxu0
        %v1038 = vadd.f32 %v871, %v1037
        %1039 = vdwg.mxu0
        %1040 = vmatprep.subr.mxu0 0.0
        %1041 = vmatpush1.msra.mxu0 %v861
        %1042 = vmatprep.subr.mxu0 0.0
        %1043 = vmatpush1.msra.mxu0 %v858
        %1044 = vmatprep.subr.mxu0 0.0
        %1045 = vmatpush1.msra.mxu0 %v855
        %1046 = vmatprep.subr.mxu0 0.0
        %1047 = vmatpush1.msra.mxu0 %v852
        %1048 = vmatprep.subr.mxu0 0.0
        %1049 = vmatpush1.msra.mxu0 %v849
        %1050 = vmatprep.subr.mxu0 0.0
        %1051 = vmatpush1.msra.mxu0 %v846
        %1052 = vmatprep.subr.mxu0 0.0
        %1053 = vmatpush1.msra.mxu0 %v843
        %1054 = vmatprep.subr.mxu0 0.0
        %1055 = vmatpush1.msra.mxu0 %v840
        %1056 = vmatprep.subr.mxu0 0.0
        %1057 = vmatpush1.msra.mxu0 %v837
        %1058 = vmatprep.subr.mxu0 0.0
        %1059 = vmatpush1.msra.mxu0 %v834
        %1060 = vmatprep.subr.mxu0 0.0
        %1061 = vmatpush1.msra.mxu0 %v831
        %1062 = vmatprep.subr.mxu0 0.0
        %1063 = vmatpush1.msra.mxu0 %v828
        %1064 = vmatprep.subr.mxu0 0.0
        %1065 = vmatpush1.msra.mxu0 %v825
        %1066 = vmatprep.subr.mxu0 0.0
        %1067 = vmatpush1.msra.mxu0 %v822
        %1068 = vmatprep.subr.mxu0 0.0
        %1069 = vmatpush1.msra.mxu0 %v819
        %1070 = vmatprep.subr.mxu0 0.0
        %1071 = vmatpush1.msra.mxu0 %v816
        %1072 = vmatprep.subr.mxu0 0.0
        %1073 = vmatpush2.msra.mxu0 0.0
        %1074 = vmatprep.subr.mxu0 0.0
        %1075 = vmatpush2.msra.mxu0 0.0
        %1076 = vmatprep.subr.mxu0 0.0
        %1077 = vmatpush2.msra.mxu0 0.0
        %1078 = vmatprep.subr.mxu0 0.0
        %1079 = vmatpush2.msra.mxu0 0.0
        %1080 = vmatprep.subr.mxu0 0.0
        %1081 = vmatpush2.msra.mxu0 0.0
        %1082 = vmatprep.subr.mxu0 0.0
        %1083 = vmatpush2.msra.mxu0 0.0
        %1084 = vmatprep.subr.mxu0 0.0
        %1085 = vmatpush2.msra.mxu0 0.0
        %1086 = vmatprep.subr.mxu0 0.0
        %1087 = vmatpush2.msra.mxu0 0.0
        %1088 = vmatprep.subr.mxu0 0.0
        %1089 = vmatpush2.msra.mxu0 0.0
        %1090 = vmatprep.subr.mxu0 0.0
        %1091 = vmatpush2.msra.mxu0 0.0
        %1092 = vmatprep.subr.mxu0 0.0
        %1093 = vmatpush2.msra.mxu0 0.0
        %1094 = vmatprep.subr.mxu0 0.0
        %1095 = vmatpush2.msra.mxu0 0.0
        %1096 = vmatprep.subr.mxu0 0.0
        %1097 = vmatpush2.msra.mxu0 0.0
        %1098 = vmatprep.subr.mxu0 0.0
        %1099 = vmatpush2.msra.mxu0 0.0
        %1100 = vmatprep.subr.mxu0 0.0
        %1101 = vmatpush2.msra.mxu0 0.0
        %1102 = vmatprep.subr.mxu0 0.0
        %1103 = vmatpush2.msra.mxu0 0.0
        %1104 = vmatprep.mubr.f32.mxu0 0.0
        %1105 = vmatmul.mubr.f32.gmra.mxu0 %v798
        %v1106 = vpop.f32.mrf.mxu0
        %v1107 = vadd.f32 %v875, %v1106
        %v1108 = vpop.f32.mrf.mxu0
        %1109 = vmatprep.mubr.f32.mxu0 0.0
        %1110 = vmatmul.mubr.f32.gmra.mxu0 %v799
        %v1111 = vpop.f32.mrf.mxu0
        %v1112 = vadd.f32 %v875, %v1111
        %v1113 = vpop.f32.mrf.mxu0
        %1114 = vmatprep.mubr.f32.mxu0 0.0
        %1115 = vmatmul.mubr.f32.gmra.mxu0 %v800
        %v1116 = vpop.f32.mrf.mxu0
        %v1117 = vadd.f32 %v875, %v1116
        %v1118 = vpop.f32.mrf.mxu0
        %1119 = vmatprep.mubr.f32.mxu0 0.0
        %1120 = vmatmul.mubr.f32.gmra.mxu0 %v801
        %v1121 = vpop.f32.mrf.mxu0
        %v1122 = vadd.f32 %v875, %v1121
        %v1123 = vpop.f32.mrf.mxu0
        %1124 = vmatprep.mubr.f32.mxu0 0.0
        %1125 = vmatmul.mubr.f32.gmra.mxu0 %v802
        %v1126 = vpop.f32.mrf.mxu0
        %v1127 = vadd.f32 %v875, %v1126
        %v1128 = vpop.f32.mrf.mxu0
        %1129 = vmatprep.mubr.f32.mxu0 0.0
        %1130 = vmatmul.mubr.f32.gmra.mxu0 %v803
        %v1131 = vpop.f32.mrf.mxu0
        %v1132 = vadd.f32 %v875, %v1131
        %v1133 = vpop.f32.mrf.mxu0
        %1134 = vmatprep.mubr.f32.mxu0 0.0
        %1135 = vmatmul.mubr.f32.gmra.mxu0 %v804
        %v1136 = vpop.f32.mrf.mxu0
        %v1137 = vadd.f32 %v875, %v1136
        %v1138 = vpop.f32.mrf.mxu0
        %1139 = vmatprep.mubr.f32.mxu0 0.0
        %1140 = vmatmul.mubr.f32.gmra.mxu0 %v805
        %v1141 = vpop.f32.mrf.mxu0
        %v1142 = vadd.f32 %v875, %v1141
        %v1143 = vpop.f32.mrf.mxu0
        %1144 = vmatprep.mubr.f32.mxu0 0.0
        %1145 = vmatmul.mubr.f32.gmra.mxu0 %v806
        %v1146 = vpop.f32.mrf.mxu0
        %v1147 = vadd.f32 %v875, %v1146
        %v1148 = vpop.f32.mrf.mxu0
        %1149 = vmatprep.mubr.f32.mxu0 0.0
        %1150 = vmatmul.mubr.f32.gmra.mxu0 %v807
        %v1151 = vpop.f32.mrf.mxu0
        %v1152 = vadd.f32 %v875, %v1151
        %v1153 = vpop.f32.mrf.mxu0
        %1154 = vmatprep.mubr.f32.mxu0 0.0
        %1155 = vmatmul.mubr.f32.gmra.mxu0 %v808
        %v1156 = vpop.f32.mrf.mxu0
        %v1157 = vadd.f32 %v875, %v1156
        %v1158 = vpop.f32.mrf.mxu0
        %1159 = vmatprep.mubr.f32.mxu0 0.0
        %1160 = vmatmul.mubr.f32.gmra.mxu0 %v809
        %v1161 = vpop.f32.mrf.mxu0
        %v1162 = vadd.f32 %v875, %v1161
        %v1163 = vpop.f32.mrf.mxu0
        %1164 = vmatprep.mubr.f32.mxu0 0.0
        %1165 = vmatmul.mubr.f32.gmra.mxu0 %v810
        %v1166 = vpop.f32.mrf.mxu0
        %v1167 = vadd.f32 %v875, %v1166
        %v1168 = vpop.f32.mrf.mxu0
        %1169 = vmatprep.mubr.f32.mxu0 0.0
        %1170 = vmatmul.mubr.f32.gmra.mxu0 %v811
        %v1171 = vpop.f32.mrf.mxu0
        %v1172 = vadd.f32 %v875, %v1171
        %v1173 = vpop.f32.mrf.mxu0
        %1174 = vmatprep.mubr.f32.mxu0 0.0
        %1175 = vmatmul.mubr.f32.gmra.mxu0 %v812
        %v1176 = vpop.f32.mrf.mxu0
        %v1177 = vadd.f32 %v875, %v1176
        %v1178 = vpop.f32.mrf.mxu0
        %1179 = vmatprep.mubr.f32.mxu0 0.0
        %1180 = vmatmul.mubr.f32.gmra.mxu0 %v813
        %v1181 = vpop.f32.mrf.mxu0
        %v1182 = vadd.f32 %v875, %v1181
        %v1183 = vpop.f32.mrf.mxu0
        %1184 = vdwg.mxu0
        %v1185 = vmul.f32 %v946, 0.17677669
        %v1186 = vmul.f32 %v952, 0.17677669
        %v1187 = vmul.f32 %v958, 0.17677669
        %v1188 = vmul.f32 %v964, 0.17677669
        %v1189 = vmul.f32 %v970, 0.17677669
        %v1190 = vmul.f32 %v976, 0.17677669
        %v1191 = vmul.f32 %v982, 0.17677669
        %v1192 = vmul.f32 %v988, 0.17677669
        %v1193 = vmul.f32 %v994, 0.17677669
        %v1194 = vmul.f32 %v1000, 0.17677669
        %v1195 = vmul.f32 %v1006, 0.17677669
        %v1196 = vmul.f32 %v1012, 0.17677669
        %v1197 = vmul.f32 %v1018, 0.17677669
        %v1198 = vmul.f32 %v1024, 0.17677669
        %v1199 = vmul.f32 %v1030, 0.17677669
        %v1200 = vmul.f32 %v1036, 0.17677669
        %vm1201 = vcmask 261120
        %v1203 = vsel %vm1201, %v1185, 0
        %v1206 = vsel %vm1201, %v1186, 0
        %v1209 = vsel %vm1201, %v1187, 0
        %v1212 = vsel %vm1201, %v1188, 0
        %v1215 = vsel %vm1201, %v1189, 0
        %v1218 = vsel %vm1201, %v1190, 0
        %v1221 = vsel %vm1201, %v1191, 0
        %v1224 = vsel %vm1201, %v1192, 0
        %v1227 = vsel %vm1201, %v948, 0
        %v1230 = vsel %vm1201, %v954, 0
        %v1233 = vsel %vm1201, %v960, 0
        %v1236 = vsel %vm1201, %v966, 0
        %v1239 = vsel %vm1201, %v972, 0
        %v1242 = vsel %vm1201, %v978, 0
        %v1245 = vsel %vm1201, %v984, 0
        %v1248 = vsel %vm1201, %v990, 0
        %1250 = vmatprep.subr.mxu0 0.0
        %1251 = vmatpush1.xpose.msra.mxu0 0.0
        %1252 = vmatprep.subr.mxu0 0.0
        %1253 = vmatpush1.xpose.msra.mxu0 0.0
        %1254 = vmatprep.subr.mxu0 0.0
        %1255 = vmatpush1.xpose.msra.mxu0 0.0
        %1256 = vmatprep.subr.mxu0 0.0
        %1257 = vmatpush1.xpose.msra.mxu0 0.0
        %1258 = vmatprep.subr.mxu0 0.0
        %1259 = vmatpush1.xpose.msra.mxu0 0.0
        %1260 = vmatprep.subr.mxu0 0.0
        %1261 = vmatpush1.xpose.msra.mxu0 0.0
        %1262 = vmatprep.subr.mxu0 0.0
        %1263 = vmatpush1.xpose.msra.mxu0 0.0
        %1264 = vmatprep.subr.mxu0 0.0
        %1265 = vmatpush1.xpose.msra.mxu0 0.0
        %1266 = vmatprep.subr.mxu0 0.0
        %1267 = vmatpush1.xpose.msra.mxu0 %v1248
        %1268 = vmatprep.subr.mxu0 0.0
        %1269 = vmatpush1.xpose.msra.mxu0 %v1245
        %1270 = vmatprep.subr.mxu0 0.0
        %1271 = vmatpush1.xpose.msra.mxu0 %v1242
        %1272 = vmatprep.subr.mxu0 0.0
        %1273 = vmatpush1.xpose.msra.mxu0 %v1239
        %1274 = vmatprep.subr.mxu0 0.0
        %1275 = vmatpush1.xpose.msra.mxu0 %v1236
        %1276 = vmatprep.subr.mxu0 0.0
        %1277 = vmatpush1.xpose.msra.mxu0 %v1233
        %1278 = vmatprep.subr.mxu0 0.0
        %1279 = vmatpush1.xpose.msra.mxu0 %v1230
        %1280 = vmatprep.subr.mxu0 0.0
        %1281 = vmatpush1.xpose.msra.mxu0 %v1227
        %1282 = vmatprep.subr.mxu0 0.0
        %1283 = vmatpush2.xpose.msra.mxu0 0.0
        %1284 = vmatprep.subr.mxu0 0.0
        %1285 = vmatpush2.xpose.msra.mxu0 0.0
        %1286 = vmatprep.subr.mxu0 0.0
        %1287 = vmatpush2.xpose.msra.mxu0 0.0
        %1288 = vmatprep.subr.mxu0 0.0
        %1289 = vmatpush2.xpose.msra.mxu0 0.0
        %1290 = vmatprep.subr.mxu0 0.0
        %1291 = vmatpush2.xpose.msra.mxu0 0.0
        %1292 = vmatprep.subr.mxu0 0.0
        %1293 = vmatpush2.xpose.msra.mxu0 0.0
        %1294 = vmatprep.subr.mxu0 0.0
        %1295 = vmatpush2.xpose.msra.mxu0 0.0
        %1296 = vmatprep.subr.mxu0 0.0
        %1297 = vmatpush2.xpose.msra.mxu0 0.0
        %1298 = vmatprep.subr.mxu0 0.0
        %1299 = vmatpush2.xpose.msra.mxu0 0.0
        %1300 = vmatprep.subr.mxu0 0.0
        %1301 = vmatpush2.xpose.msra.mxu0 0.0
        %1302 = vmatprep.subr.mxu0 0.0
        %1303 = vmatpush2.xpose.msra.mxu0 0.0
        %1304 = vmatprep.subr.mxu0 0.0
        %1305 = vmatpush2.xpose.msra.mxu0 0.0
        %1306 = vmatprep.subr.mxu0 0.0
        %1307 = vmatpush2.xpose.msra.mxu0 0.0
        %1308 = vmatprep.subr.mxu0 0.0
        %1309 = vmatpush2.xpose.msra.mxu0 0.0
        %1310 = vmatprep.subr.mxu0 0.0
        %1311 = vmatpush2.xpose.msra.mxu0 0.0
        %1312 = vmatprep.subr.mxu0 0.0
        %1313 = vmatpush2.xpose.msra.mxu0 0.0
        %1314 = vmatprep.mubr.f32.mxu0 0.0
        %1315 = vmatmul.mubr.f32.gmra.mxu0 %v1203
        %v1316 = vpop.f32.mrf.mxu0
        %v1317 = vadd.f32 0.0, %v1316
        %v1318 = vpop.f32.mrf.mxu0
        %1319 = vmatprep.mubr.f32.mxu0 0.0
        %1320 = vmatmul.mubr.f32.gmra.mxu0 %v1206
        %v1321 = vpop.f32.mrf.mxu0
        %v1322 = vadd.f32 0.0, %v1321
        %v1323 = vpop.f32.mrf.mxu0
        %1324 = vmatprep.mubr.f32.mxu0 0.0
        %1325 = vmatmul.mubr.f32.gmra.mxu0 %v1209
        %v1326 = vpop.f32.mrf.mxu0
        %v1327 = vadd.f32 0.0, %v1326
        %v1328 = vpop.f32.mrf.mxu0
        %1329 = vmatprep.mubr.f32.mxu0 0.0
        %1330 = vmatmul.mubr.f32.gmra.mxu0 %v1212
        %v1331 = vpop.f32.mrf.mxu0
        %v1332 = vadd.f32 0.0, %v1331
        %v1333 = vpop.f32.mrf.mxu0
        %1334 = vmatprep.mubr.f32.mxu0 0.0
        %1335 = vmatmul.mubr.f32.gmra.mxu0 %v1215
        %v1336 = vpop.f32.mrf.mxu0
        %v1337 = vadd.f32 0.0, %v1336
        %v1338 = vpop.f32.mrf.mxu0
        %1339 = vmatprep.mubr.f32.mxu0 0.0
        %1340 = vmatmul.mubr.f32.gmra.mxu0 %v1218
        %v1341 = vpop.f32.mrf.mxu0
        %v1342 = vadd.f32 0.0, %v1341
        %v1343 = vpop.f32.mrf.mxu0
        %1344 = vmatprep.mubr.f32.mxu0 0.0
        %1345 = vmatmul.mubr.f32.gmra.mxu0 %v1221
        %v1346 = vpop.f32.mrf.mxu0
        %v1347 = vadd.f32 0.0, %v1346
        %v1348 = vpop.f32.mrf.mxu0
        %1349 = vmatprep.mubr.f32.mxu0 0.0
        %1350 = vmatmul.mubr.f32.gmra.mxu0 %v1224
        %v1351 = vpop.f32.mrf.mxu0
        %v1352 = vadd.f32 0.0, %v1351
        %v1353 = vpop.f32.mrf.mxu0
        %1354 = vdwg.mxu0
        %v1356 = vsel %vm1201, %v1193, 0
        %v1359 = vsel %vm1201, %v1194, 0
        %v1362 = vsel %vm1201, %v1195, 0
        %v1365 = vsel %vm1201, %v1196, 0
        %v1368 = vsel %vm1201, %v1197, 0
        %v1371 = vsel %vm1201, %v1198, 0
        %v1374 = vsel %vm1201, %v1199, 0
        %v1377 = vsel %vm1201, %v1200, 0
        %v1380 = vsel %vm1201, %v996, 0
        %v1383 = vsel %vm1201, %v1002, 0
        %v1386 = vsel %vm1201, %v1008, 0
        %v1389 = vsel %vm1201, %v1014, 0
        %v1392 = vsel %vm1201, %v1020, 0
        %v1395 = vsel %vm1201, %v1026, 0
        %v1398 = vsel %vm1201, %v1032, 0
        %v1401 = vsel %vm1201, %v1038, 0
        %1403 = vmatprep.subr.mxu0 0.0
        %1404 = vmatpush1.xpose.msra.mxu0 0.0
        %1405 = vmatprep.subr.mxu0 0.0
        %1406 = vmatpush1.xpose.msra.mxu0 0.0
        %1407 = vmatprep.subr.mxu0 0.0
        %1408 = vmatpush1.xpose.msra.mxu0 0.0
        %1409 = vmatprep.subr.mxu0 0.0
        %1410 = vmatpush1.xpose.msra.mxu0 0.0
        %1411 = vmatprep.subr.mxu0 0.0
        %1412 = vmatpush1.xpose.msra.mxu0 0.0
        %1413 = vmatprep.subr.mxu0 0.0
        %1414 = vmatpush1.xpose.msra.mxu0 0.0
        %1415 = vmatprep.subr.mxu0 0.0
        %1416 = vmatpush1.xpose.msra.mxu0 0.0
        %1417 = vmatprep.subr.mxu0 0.0
        %1418 = vmatpush1.xpose.msra.mxu0 0.0
        %1419 = vmatprep.subr.mxu0 0.0
        %1420 = vmatpush1.xpose.msra.mxu0 %v1401
        %1421 = vmatprep.subr.mxu0 0.0
        %1422 = vmatpush1.xpose.msra.mxu0 %v1398
        %1423 = vmatprep.subr.mxu0 0.0
        %1424 = vmatpush1.xpose.msra.mxu0 %v1395
        %1425 = vmatprep.subr.mxu0 0.0
        %1426 = vmatpush1.xpose.msra.mxu0 %v1392
        %1427 = vmatprep.subr.mxu0 0.0
        %1428 = vmatpush1.xpose.msra.mxu0 %v1389
        %1429 = vmatprep.subr.mxu0 0.0
        %1430 = vmatpush1.xpose.msra.mxu0 %v1386
        %1431 = vmatprep.subr.mxu0 0.0
        %1432 = vmatpush1.xpose.msra.mxu0 %v1383
        %1433 = vmatprep.subr.mxu0 0.0
        %1434 = vmatpush1.xpose.msra.mxu0 %v1380
        %1435 = vmatprep.subr.mxu0 0.0
        %1436 = vmatpush2.xpose.msra.mxu0 0.0
        %1437 = vmatprep.subr.mxu0 0.0
        %1438 = vmatpush2.xpose.msra.mxu0 0.0
        %1439 = vmatprep.subr.mxu0 0.0
        %1440 = vmatpush2.xpose.msra.mxu0 0.0
        %1441 = vmatprep.subr.mxu0 0.0
        %1442 = vmatpush2.xpose.msra.mxu0 0.0
        %1443 = vmatprep.subr.mxu0 0.0
        %1444 = vmatpush2.xpose.msra.mxu0 0.0
        %1445 = vmatprep.subr.mxu0 0.0
        %1446 = vmatpush2.xpose.msra.mxu0 0.0
        %1447 = vmatprep.subr.mxu0 0.0
        %1448 = vmatpush2.xpose.msra.mxu0 0.0
        %1449 = vmatprep.subr.mxu0 0.0
        %1450 = vmatpush2.xpose.msra.mxu0 0.0
        %1451 = vmatprep.subr.mxu0 0.0
        %1452 = vmatpush2.xpose.msra.mxu0 0.0
        %1453 = vmatprep.subr.mxu0 0.0
        %1454 = vmatpush2.xpose.msra.mxu0 0.0
        %1455 = vmatprep.subr.mxu0 0.0
        %1456 = vmatpush2.xpose.msra.mxu0 0.0
        %1457 = vmatprep.subr.mxu0 0.0
        %1458 = vmatpush2.xpose.msra.mxu0 0.0
        %1459 = vmatprep.subr.mxu0 0.0
        %1460 = vmatpush2.xpose.msra.mxu0 0.0
        %1461 = vmatprep.subr.mxu0 0.0
        %1462 = vmatpush2.xpose.msra.mxu0 0.0
        %1463 = vmatprep.subr.mxu0 0.0
        %1464 = vmatpush2.xpose.msra.mxu0 0.0
        %1465 = vmatprep.subr.mxu0 0.0
        %1466 = vmatpush2.xpose.msra.mxu0 0.0
        %1467 = vmatprep.mubr.f32.mxu0 0.0
        %1468 = vmatmul.mubr.f32.gmra.mxu0 %v1356
        %v1469 = vpop.f32.mrf.mxu0
        %v1470 = vadd.f32 0.0, %v1469
        %v1471 = vpop.f32.mrf.mxu0
        %1472 = vmatprep.mubr.f32.mxu0 0.0
        %1473 = vmatmul.mubr.f32.gmra.mxu0 %v1359
        %v1474 = vpop.f32.mrf.mxu0
        %v1475 = vadd.f32 0.0, %v1474
        %v1476 = vpop.f32.mrf.mxu0
        %1477 = vmatprep.mubr.f32.mxu0 0.0
        %1478 = vmatmul.mubr.f32.gmra.mxu0 %v1362
        %v1479 = vpop.f32.mrf.mxu0
        %v1480 = vadd.f32 0.0, %v1479
        %v1481 = vpop.f32.mrf.mxu0
        %1482 = vmatprep.mubr.f32.mxu0 0.0
        %1483 = vmatmul.mubr.f32.gmra.mxu0 %v1365
        %v1484 = vpop.f32.mrf.mxu0
        %v1485 = vadd.f32 0.0, %v1484
        %v1486 = vpop.f32.mrf.mxu0
        %1487 = vmatprep.mubr.f32.mxu0 0.0
        %1488 = vmatmul.mubr.f32.gmra.mxu0 %v1368
        %v1489 = vpop.f32.mrf.mxu0
        %v1490 = vadd.f32 0.0, %v1489
        %v1491 = vpop.f32.mrf.mxu0
        %1492 = vmatprep.mubr.f32.mxu0 0.0
        %1493 = vmatmul.mubr.f32.gmra.mxu0 %v1371
        %v1494 = vpop.f32.mrf.mxu0
        %v1495 = vadd.f32 0.0, %v1494
        %v1496 = vpop.f32.mrf.mxu0
        %1497 = vmatprep.mubr.f32.mxu0 0.0
        %1498 = vmatmul.mubr.f32.gmra.mxu0 %v1374
        %v1499 = vpop.f32.mrf.mxu0
        %v1500 = vadd.f32 0.0, %v1499
        %v1501 = vpop.f32.mrf.mxu0
        %1502 = vmatprep.mubr.f32.mxu0 0.0
        %1503 = vmatmul.mubr.f32.gmra.mxu0 %v1377
        %v1504 = vpop.f32.mrf.mxu0
        %v1505 = vadd.f32 0.0, %v1504
        %v1506 = vpop.f32.mrf.mxu0
        %1507 = vdwg.mxu0
        %vm1508 = vcmask 523264
        %v1509 = vsel %vm1508, %v1317, -inf
        %1510 = vmax.xlane.f32.xlu0 %v1509
        %v1511 = vpop.xlane.xlu0 %1510
        %v1512 = vsel %vm1508, %v1322, -inf
        %1513 = vmax.xlane.f32.xlu0 %v1512
        %v1514 = vpop.xlane.xlu0 %1513
        %v1515 = vsel %vm1508, %v1327, -inf
        %1516 = vmax.xlane.f32.xlu0 %v1515
        %v1517 = vpop.xlane.xlu0 %1516
        %v1518 = vsel %vm1508, %v1332, -inf
        %1519 = vmax.xlane.f32.xlu0 %v1518
        %v1520 = vpop.xlane.xlu0 %1519
        %v1521 = vsel %vm1508, %v1337, -inf
        %1522 = vmax.xlane.f32.xlu0 %v1521
        %v1523 = vpop.xlane.xlu0 %1522
        %v1524 = vsel %vm1508, %v1342, -inf
        %1525 = vmax.xlane.f32.xlu0 %v1524
        %v1526 = vpop.xlane.xlu0 %1525
        %v1527 = vsel %vm1508, %v1347, -inf
        %1528 = vmax.xlane.f32.xlu0 %v1527
        %v1529 = vpop.xlane.xlu0 %1528
        %v1530 = vsel %vm1508, %v1352, -inf
        %1531 = vmax.xlane.f32.xlu0 %v1530
        %v1532 = vpop.xlane.xlu0 %1531
        %v1533 = vsel %vm1508, %v1470, -inf
        %1534 = vmax.xlane.f32.xlu0 %v1533
        %v1535 = vpop.xlane.xlu0 %1534
        %v1536 = vsel %vm1508, %v1475, -inf
        %1537 = vmax.xlane.f32.xlu0 %v1536
        %v1538 = vpop.xlane.xlu0 %1537
        %v1539 = vsel %vm1508, %v1480, -inf
        %1540 = vmax.xlane.f32.xlu0 %v1539
        %v1541 = vpop.xlane.xlu0 %1540
        %v1542 = vsel %vm1508, %v1485, -inf
        %1543 = vmax.xlane.f32.xlu0 %v1542
        %v1544 = vpop.xlane.xlu0 %1543
        %v1545 = vsel %vm1508, %v1490, -inf
        %1546 = vmax.xlane.f32.xlu0 %v1545
        %v1547 = vpop.xlane.xlu0 %1546
        %v1548 = vsel %vm1508, %v1495, -inf
        %1549 = vmax.xlane.f32.xlu0 %v1548
        %v1550 = vpop.xlane.xlu0 %1549
        %v1551 = vsel %vm1508, %v1500, -inf
        %1552 = vmax.xlane.f32.xlu0 %v1551
        %v1553 = vpop.xlane.xlu0 %1552
        %v1554 = vsel %vm1508, %v1505, -inf
        %1555 = vmax.xlane.f32.xlu0 %v1554
        %v1556 = vpop.xlane.xlu0 %1555
        %v1557 = vsub.f32 %v1317, %v1511
        %v1558 = vsub.f32 %v1322, %v1514
        %v1559 = vsub.f32 %v1327, %v1517
        %v1560 = vsub.f32 %v1332, %v1520
        %v1561 = vsub.f32 %v1337, %v1523
        %v1562 = vsub.f32 %v1342, %v1526
        %v1563 = vsub.f32 %v1347, %v1529
        %v1564 = vsub.f32 %v1352, %v1532
        %v1565 = vsub.f32 %v1470, %v1535
        %v1566 = vsub.f32 %v1475, %v1538
        %v1567 = vsub.f32 %v1480, %v1541
        %v1568 = vsub.f32 %v1485, %v1544
        %v1569 = vsub.f32 %v1490, %v1547
        %v1570 = vsub.f32 %v1495, %v1550
        %v1571 = vsub.f32 %v1500, %v1553
        %v1572 = vsub.f32 %v1505, %v1556
        %v1573 = vmul.f32 %v1557, 1.442695
        %v1574 = vpow.pop %v1573
        %v1575 = vmul.f32 %v1558, 1.442695
        %v1576 = vpow.pop %v1575
        %v1577 = vmul.f32 %v1559, 1.442695
        %v1578 = vpow.pop %v1577
        %v1579 = vmul.f32 %v1560, 1.442695
        %v1580 = vpow.pop %v1579
        %v1581 = vmul.f32 %v1561, 1.442695
        %v1582 = vpow.pop %v1581
        %v1583 = vmul.f32 %v1562, 1.442695
        %v1584 = vpow.pop %v1583
        %v1585 = vmul.f32 %v1563, 1.442695
        %v1586 = vpow.pop %v1585
        %v1587 = vmul.f32 %v1564, 1.442695
        %v1588 = vpow.pop %v1587
        %v1589 = vmul.f32 %v1565, 1.442695
        %v1590 = vpow.pop %v1589
        %v1591 = vmul.f32 %v1566, 1.442695
        %v1592 = vpow.pop %v1591
        %v1593 = vmul.f32 %v1567, 1.442695
        %v1594 = vpow.pop %v1593
        %v1595 = vmul.f32 %v1568, 1.442695
        %v1596 = vpow.pop %v1595
        %v1597 = vmul.f32 %v1569, 1.442695
        %v1598 = vpow.pop %v1597
        %v1599 = vmul.f32 %v1570, 1.442695
        %v1600 = vpow.pop %v1599
        %v1601 = vmul.f32 %v1571, 1.442695
        %v1602 = vpow.pop %v1601
        %v1603 = vmul.f32 %v1572, 1.442695
        %v1604 = vpow.pop %v1603
        %v1605 = vsel %vm1508, %v1574, 0.0
        %1606 = vadd.xlane.f32.xlu0 %v1605
        %v1607 = vpop.xlane.xlu0 %1606
        %v1608 = vsel %vm1508, %v1576, 0.0
        %1609 = vadd.xlane.f32.xlu0 %v1608
        %v1610 = vpop.xlane.xlu0 %1609
        %v1611 = vsel %vm1508, %v1578, 0.0
        %1612 = vadd.xlane.f32.xlu0 %v1611
        %v1613 = vpop.xlane.xlu0 %1612
        %v1614 = vsel %vm1508, %v1580, 0.0
        %1615 = vadd.xlane.f32.xlu0 %v1614
        %v1616 = vpop.xlane.xlu0 %1615
        %v1617 = vsel %vm1508, %v1582, 0.0
        %1618 = vadd.xlane.f32.xlu0 %v1617
        %v1619 = vpop.xlane.xlu0 %1618
        %v1620 = vsel %vm1508, %v1584, 0.0
        %1621 = vadd.xlane.f32.xlu0 %v1620
        %v1622 = vpop.xlane.xlu0 %1621
        %v1623 = vsel %vm1508, %v1586, 0.0
        %1624 = vadd.xlane.f32.xlu0 %v1623
        %v1625 = vpop.xlane.xlu0 %1624
        %v1626 = vsel %vm1508, %v1588, 0.0
        %1627 = vadd.xlane.f32.xlu0 %v1626
        %v1628 = vpop.xlane.xlu0 %1627
        %v1629 = vsel %vm1508, %v1590, 0.0
        %1630 = vadd.xlane.f32.xlu0 %v1629
        %v1631 = vpop.xlane.xlu0 %1630
        %v1632 = vsel %vm1508, %v1592, 0.0
        %1633 = vadd.xlane.f32.xlu0 %v1632
        %v1634 = vpop.xlane.xlu0 %1633
        %v1635 = vsel %vm1508, %v1594, 0.0
        %1636 = vadd.xlane.f32.xlu0 %v1635
        %v1637 = vpop.xlane.xlu0 %1636
        %v1638 = vsel %vm1508, %v1596, 0.0
        %1639 = vadd.xlane.f32.xlu0 %v1638
        %v1640 = vpop.xlane.xlu0 %1639
        %v1641 = vsel %vm1508, %v1598, 0.0
        %1642 = vadd.xlane.f32.xlu0 %v1641
        %v1643 = vpop.xlane.xlu0 %1642
        %v1644 = vsel %vm1508, %v1600, 0.0
        %1645 = vadd.xlane.f32.xlu0 %v1644
        %v1646 = vpop.xlane.xlu0 %1645
        %v1647 = vsel %vm1508, %v1602, 0.0
        %1648 = vadd.xlane.f32.xlu0 %v1647
        %v1649 = vpop.xlane.xlu0 %1648
        %v1650 = vsel %vm1508, %v1604, 0.0
        %1651 = vadd.xlane.f32.xlu0 %v1650
        %v1652 = vpop.xlane.xlu0 %1651
        %v1653 = vrcp.pop %v1607
        %v1654 = vrcp.pop %v1610
        %v1655 = vrcp.pop %v1613
        %v1656 = vrcp.pop %v1616
        %v1657 = vrcp.pop %v1619
        %v1658 = vrcp.pop %v1622
        %v1659 = vrcp.pop %v1625
        %v1660 = vrcp.pop %v1628
        %v1661 = vrcp.pop %v1631
        %v1662 = vrcp.pop %v1634
        %v1663 = vrcp.pop %v1637
        %v1664 = vrcp.pop %v1640
        %v1665 = vrcp.pop %v1643
        %v1666 = vrcp.pop %v1646
        %v1667 = vrcp.pop %v1649
        %v1668 = vrcp.pop %v1652
        %v1669 = vmul.f32 %v1574, %v1653
        %v1670 = vmul.f32 %v1576, %v1654
        %v1671 = vmul.f32 %v1578, %v1655
        %v1672 = vmul.f32 %v1580, %v1656
        %v1673 = vmul.f32 %v1582, %v1657
        %v1674 = vmul.f32 %v1584, %v1658
        %v1675 = vmul.f32 %v1586, %v1659
        %v1676 = vmul.f32 %v1588, %v1660
        %v1677 = vmul.f32 %v1590, %v1661
        %v1678 = vmul.f32 %v1592, %v1662
        %v1679 = vmul.f32 %v1594, %v1663
        %v1680 = vmul.f32 %v1596, %v1664
        %v1681 = vmul.f32 %v1598, %v1665
        %v1682 = vmul.f32 %v1600, %v1666
        %v1683 = vmul.f32 %v1602, %v1667
        %v1684 = vmul.f32 %v1604, %v1668
        %v1686 = vsel %vm1508, %v1669, 0
        %v1689 = vsel %vm1508, %v1670, 0
        %v1692 = vsel %vm1508, %v1671, 0
        %v1695 = vsel %vm1508, %v1672, 0
        %v1698 = vsel %vm1508, %v1673, 0
        %v1701 = vsel %vm1508, %v1674, 0
        %v1704 = vsel %vm1508, %v1675, 0
        %v1707 = vsel %vm1508, %v1676, 0
        %1709 = vmatprep.subr.mxu0 0.0
        %1710 = vmatpush1.msra.mxu0 0.0
        %1711 = vmatprep.subr.mxu0 0.0
        %1712 = vmatpush1.msra.mxu0 0.0
        %1713 = vmatprep.subr.mxu0 0.0
        %1714 = vmatpush1.msra.mxu0 0.0
        %1715 = vmatprep.subr.mxu0 0.0
        %1716 = vmatpush1.msra.mxu0 0.0
        %1717 = vmatprep.subr.mxu0 0.0
        %1718 = vmatpush1.msra.mxu0 0.0
        %1719 = vmatprep.subr.mxu0 0.0
        %1720 = vmatpush1.msra.mxu0 0.0
        %1721 = vmatprep.subr.mxu0 0.0
        %1722 = vmatpush1.msra.mxu0 0.0
        %1723 = vmatprep.subr.mxu0 0.0
        %1724 = vmatpush1.msra.mxu0 0.0
        %1725 = vmatprep.subr.mxu0 0.0
        %1726 = vmatpush1.msra.mxu0 %v1142
        %1727 = vmatprep.subr.mxu0 0.0
        %1728 = vmatpush1.msra.mxu0 %v1137
        %1729 = vmatprep.subr.mxu0 0.0
        %1730 = vmatpush1.msra.mxu0 %v1132
        %1731 = vmatprep.subr.mxu0 0.0
        %1732 = vmatpush1.msra.mxu0 %v1127
        %1733 = vmatprep.subr.mxu0 0.0
        %1734 = vmatpush1.msra.mxu0 %v1122
        %1735 = vmatprep.subr.mxu0 0.0
        %1736 = vmatpush1.msra.mxu0 %v1117
        %1737 = vmatprep.subr.mxu0 0.0
        %1738 = vmatpush1.msra.mxu0 %v1112
        %1739 = vmatprep.subr.mxu0 0.0
        %1740 = vmatpush1.msra.mxu0 %v1107
        %1741 = vmatprep.subr.mxu0 0.0
        %1742 = vmatpush2.msra.mxu0 0.0
        %1743 = vmatprep.subr.mxu0 0.0
        %1744 = vmatpush2.msra.mxu0 0.0
        %1745 = vmatprep.subr.mxu0 0.0
        %1746 = vmatpush2.msra.mxu0 0.0
        %1747 = vmatprep.subr.mxu0 0.0
        %1748 = vmatpush2.msra.mxu0 0.0
        %1749 = vmatprep.subr.mxu0 0.0
        %1750 = vmatpush2.msra.mxu0 0.0
        %1751 = vmatprep.subr.mxu0 0.0
        %1752 = vmatpush2.msra.mxu0 0.0
        %1753 = vmatprep.subr.mxu0 0.0
        %1754 = vmatpush2.msra.mxu0 0.0
        %1755 = vmatprep.subr.mxu0 0.0
        %1756 = vmatpush2.msra.mxu0 0.0
        %1757 = vmatprep.subr.mxu0 0.0
        %1758 = vmatpush2.msra.mxu0 0.0
        %1759 = vmatprep.subr.mxu0 0.0
        %1760 = vmatpush2.msra.mxu0 0.0
        %1761 = vmatprep.subr.mxu0 0.0
        %1762 = vmatpush2.msra.mxu0 0.0
        %1763 = vmatprep.subr.mxu0 0.0
        %1764 = vmatpush2.msra.mxu0 0.0
        %1765 = vmatprep.subr.mxu0 0.0
        %1766 = vmatpush2.msra.mxu0 0.0
        %1767 = vmatprep.subr.mxu0 0.0
        %1768 = vmatpush2.msra.mxu0 0.0
        %1769 = vmatprep.subr.mxu0 0.0
        %1770 = vmatpush2.msra.mxu0 0.0
        %1771 = vmatprep.subr.mxu0 0.0
        %1772 = vmatpush2.msra.mxu0 0.0
        %1773 = vmatprep.mubr.f32.mxu0 0.0
        %1774 = vmatmul.mubr.f32.gmra.mxu0 %v1686
        %v1775 = vpop.f32.mrf.mxu0
        %v1776 = vadd.f32 0.0, %v1775
        %v1777 = vpop.f32.mrf.mxu0
        %1778 = vmatprep.mubr.f32.mxu0 0.0
        %1779 = vmatmul.mubr.f32.gmra.mxu0 %v1689
        %v1780 = vpop.f32.mrf.mxu0
        %v1781 = vadd.f32 0.0, %v1780
        %v1782 = vpop.f32.mrf.mxu0
        %1783 = vmatprep.mubr.f32.mxu0 0.0
        %1784 = vmatmul.mubr.f32.gmra.mxu0 %v1692
        %v1785 = vpop.f32.mrf.mxu0
        %v1786 = vadd.f32 0.0, %v1785
        %v1787 = vpop.f32.mrf.mxu0
        %1788 = vmatprep.mubr.f32.mxu0 0.0
        %1789 = vmatmul.mubr.f32.gmra.mxu0 %v1695
        %v1790 = vpop.f32.mrf.mxu0
        %v1791 = vadd.f32 0.0, %v1790
        %v1792 = vpop.f32.mrf.mxu0
        %1793 = vmatprep.mubr.f32.mxu0 0.0
        %1794 = vmatmul.mubr.f32.gmra.mxu0 %v1698
        %v1795 = vpop.f32.mrf.mxu0
        %v1796 = vadd.f32 0.0, %v1795
        %v1797 = vpop.f32.mrf.mxu0
        %1798 = vmatprep.mubr.f32.mxu0 0.0
        %1799 = vmatmul.mubr.f32.gmra.mxu0 %v1701
        %v1800 = vpop.f32.mrf.mxu0
        %v1801 = vadd.f32 0.0, %v1800
        %v1802 = vpop.f32.mrf.mxu0
        %1803 = vmatprep.mubr.f32.mxu0 0.0
        %1804 = vmatmul.mubr.f32.gmra.mxu0 %v1704
        %v1805 = vpop.f32.mrf.mxu0
        %v1806 = vadd.f32 0.0, %v1805
        %v1807 = vpop.f32.mrf.mxu0
        %1808 = vmatprep.mubr.f32.mxu0 0.0
        %1809 = vmatmul.mubr.f32.gmra.mxu0 %v1707
        %v1810 = vpop.f32.mrf.mxu0
        %v1811 = vadd.f32 0.0, %v1810
        %v1812 = vpop.f32.mrf.mxu0
        %1813 = vdwg.mxu0
        %v1815 = vsel %vm1508, %v1677, 0
        %v1818 = vsel %vm1508, %v1678, 0
        %v1821 = vsel %vm1508, %v1679, 0
        %v1824 = vsel %vm1508, %v1680, 0
        %v1827 = vsel %vm1508, %v1681, 0
        %v1830 = vsel %vm1508, %v1682, 0
        %v1833 = vsel %vm1508, %v1683, 0
        %v1836 = vsel %vm1508, %v1684, 0
        %1838 = vmatprep.subr.mxu0 0.0
        %1839 = vmatpush1.msra.mxu0 0.0
        %1840 = vmatprep.subr.mxu0 0.0
        %1841 = vmatpush1.msra.mxu0 0.0
        %1842 = vmatprep.subr.mxu0 0.0
        %1843 = vmatpush1.msra.mxu0 0.0
        %1844 = vmatprep.subr.mxu0 0.0
        %1845 = vmatpush1.msra.mxu0 0.0
        %1846 = vmatprep.subr.mxu0 0.0
        %1847 = vmatpush1.msra.mxu0 0.0
        %1848 = vmatprep.subr.mxu0 0.0
        %1849 = vmatpush1.msra.mxu0 0.0
        %1850 = vmatprep.subr.mxu0 0.0
        %1851 = vmatpush1.msra.mxu0 0.0
        %1852 = vmatprep.subr.mxu0 0.0
        %1853 = vmatpush1.msra.mxu0 0.0
        %1854 = vmatprep.subr.mxu0 0.0
        %1855 = vmatpush1.msra.mxu0 %v1182
        %1856 = vmatprep.subr.mxu0 0.0
        %1857 = vmatpush1.msra.mxu0 %v1177
        %1858 = vmatprep.subr.mxu0 0.0
        %1859 = vmatpush1.msra.mxu0 %v1172
        %1860 = vmatprep.subr.mxu0 0.0
        %1861 = vmatpush1.msra.mxu0 %v1167
        %1862 = vmatprep.subr.mxu0 0.0
        %1863 = vmatpush1.msra.mxu0 %v1162
        %1864 = vmatprep.subr.mxu0 0.0
        %1865 = vmatpush1.msra.mxu0 %v1157
        %1866 = vmatprep.subr.mxu0 0.0
        %1867 = vmatpush1.msra.mxu0 %v1152
        %1868 = vmatprep.subr.mxu0 0.0
        %1869 = vmatpush1.msra.mxu0 %v1147
        %1870 = vmatprep.subr.mxu0 0.0
        %1871 = vmatpush2.msra.mxu0 0.0
        %1872 = vmatprep.subr.mxu0 0.0
        %1873 = vmatpush2.msra.mxu0 0.0
        %1874 = vmatprep.subr.mxu0 0.0
        %1875 = vmatpush2.msra.mxu0 0.0
        %1876 = vmatprep.subr.mxu0 0.0
        %1877 = vmatpush2.msra.mxu0 0.0
        %1878 = vmatprep.subr.mxu0 0.0
        %1879 = vmatpush2.msra.mxu0 0.0
        %1880 = vmatprep.subr.mxu0 0.0
        %1881 = vmatpush2.msra.mxu0 0.0
        %1882 = vmatprep.subr.mxu0 0.0
        %1883 = vmatpush2.msra.mxu0 0.0
        %1884 = vmatprep.subr.mxu0 0.0
        %1885 = vmatpush2.msra.mxu0 0.0
        %1886 = vmatprep.subr.mxu0 0.0
        %1887 = vmatpush2.msra.mxu0 0.0
        %1888 = vmatprep.subr.mxu0 0.0
        %1889 = vmatpush2.msra.mxu0 0.0
        %1890 = vmatprep.subr.mxu0 0.0
        %1891 = vmatpush2.msra.mxu0 0.0
        %1892 = vmatprep.subr.mxu0 0.0
        %1893 = vmatpush2.msra.mxu0 0.0
        %1894 = vmatprep.subr.mxu0 0.0
        %1895 = vmatpush2.msra.mxu0 0.0
        %1896 = vmatprep.subr.mxu0 0.0
        %1897 = vmatpush2.msra.mxu0 0.0
        %1898 = vmatprep.subr.mxu0 0.0
        %1899 = vmatpush2.msra.mxu0 0.0
        %1900 = vmatprep.subr.mxu0 0.0
        %1901 = vmatpush2.msra.mxu0 0.0
        %1902 = vmatprep.mubr.f32.mxu0 0.0
        %1903 = vmatmul.mubr.f32.gmra.mxu0 %v1815
        %v1904 = vpop.f32.mrf.mxu0
        %v1905 = vadd.f32 0.0, %v1904
        %v1906 = vpop.f32.mrf.mxu0
        %1907 = vmatprep.mubr.f32.mxu0 0.0
        %1908 = vmatmul.mubr.f32.gmra.mxu0 %v1818
        %v1909 = vpop.f32.mrf.mxu0
        %v1910 = vadd.f32 0.0, %v1909
        %v1911 = vpop.f32.mrf.mxu0
        %1912 = vmatprep.mubr.f32.mxu0 0.0
        %1913 = vmatmul.mubr.f32.gmra.mxu0 %v1821
        %v1914 = vpop.f32.mrf.mxu0
        %v1915 = vadd.f32 0.0, %v1914
        %v1916 = vpop.f32.mrf.mxu0
        %1917 = vmatprep.mubr.f32.mxu0 0.0
        %1918 = vmatmul.mubr.f32.gmra.mxu0 %v1824
        %v1919 = vpop.f32.mrf.mxu0
        %v1920 = vadd.f32 0.0, %v1919
        %v1921 = vpop.f32.mrf.mxu0
        %1922 = vmatprep.mubr.f32.mxu0 0.0
        %1923 = vmatmul.mubr.f32.gmra.mxu0 %v1827
        %v1924 = vpop.f32.mrf.mxu0
        %v1925 = vadd.f32 0.0, %v1924
        %v1926 = vpop.f32.mrf.mxu0
        %1927 = vmatprep.mubr.f32.mxu0 0.0
        %1928 = vmatmul.mubr.f32.gmra.mxu0 %v1830
        %v1929 = vpop.f32.mrf.mxu0
        %v1930 = vadd.f32 0.0, %v1929
        %v1931 = vpop.f32.mrf.mxu0
        %1932 = vmatprep.mubr.f32.mxu0 0.0
        %1933 = vmatmul.mubr.f32.gmra.mxu0 %v1833
        %v1934 = vpop.f32.mrf.mxu0
        %v1935 = vadd.f32 0.0, %v1934
        %v1936 = vpop.f32.mrf.mxu0
        %1937 = vmatprep.mubr.f32.mxu0 0.0
        %1938 = vmatmul.mubr.f32.gmra.mxu0 %v1836
        %v1939 = vpop.f32.mrf.mxu0
        %v1940 = vadd.f32 0.0, %v1939
        %v1941 = vpop.f32.mrf.mxu0
        %1942 = vdwg.mxu0
        %1943 = vrot.lane.b32.xlu0 %v1185, 96
        %v1944 = vpop.permute.xlu0 %1943
        %1945 = vrot.lane.b32.xlu0 %v1186, 96
        %v1946 = vpop.permute.xlu0 %1945
        %1947 = vrot.lane.b32.xlu0 %v1187, 96
        %v1948 = vpop.permute.xlu0 %1947
        %1949 = vrot.lane.b32.xlu0 %v1188, 96
        %v1950 = vpop.permute.xlu0 %1949
        %1951 = vrot.lane.b32.xlu0 %v1189, 96
        %v1952 = vpop.permute.xlu0 %1951
        %1953 = vrot.lane.b32.xlu0 %v1190, 96
        %v1954 = vpop.permute.xlu0 %1953
        %1955 = vrot.lane.b32.xlu0 %v1191, 96
        %v1956 = vpop.permute.xlu0 %1955
        %1957 = vrot.lane.b32.xlu0 %v1192, 96
        %v1958 = vpop.permute.xlu0 %1957
        %1959 = vrot.lane.b32.xlu0 %v948, 96
        %v1960 = vpop.permute.xlu0 %1959
        %1961 = vrot.lane.b32.xlu0 %v954, 96
        %v1962 = vpop.permute.xlu0 %1961
        %1963 = vrot.lane.b32.xlu0 %v960, 96
        %v1964 = vpop.permute.xlu0 %1963
        %1965 = vrot.lane.b32.xlu0 %v966, 96
        %v1966 = vpop.permute.xlu0 %1965
        %1967 = vrot.lane.b32.xlu0 %v972, 96
        %v1968 = vpop.permute.xlu0 %1967
        %1969 = vrot.lane.b32.xlu0 %v978, 96
        %v1970 = vpop.permute.xlu0 %1969
        %1971 = vrot.lane.b32.xlu0 %v984, 96
        %v1972 = vpop.permute.xlu0 %1971
        %1973 = vrot.lane.b32.xlu0 %v990, 96
        %v1974 = vpop.permute.xlu0 %1973
        %v1975 = vsel %vm1201, %v1944, 0
        %v1977 = vsel %vm1201, %v1946, 0
        %v1979 = vsel %vm1201, %v1948, 0
        %v1981 = vsel %vm1201, %v1950, 0
        %v1983 = vsel %vm1201, %v1952, 0
        %v1985 = vsel %vm1201, %v1954, 0
        %v1987 = vsel %vm1201, %v1956, 0
        %v1989 = vsel %vm1201, %v1958, 0
        %v1991 = vsel %vm1201, %v1960, 0
        %v1993 = vsel %vm1201, %v1962, 0
        %v1995 = vsel %vm1201, %v1964, 0
        %v1997 = vsel %vm1201, %v1966, 0
        %v1999 = vsel %vm1201, %v1968, 0
        %v2001 = vsel %vm1201, %v1970, 0
        %v2003 = vsel %vm1201, %v1972, 0
        %v2005 = vsel %vm1201, %v1974, 0
        %2007 = vmatprep.subr.mxu0 0.0
        %2008 = vmatpush1.xpose.msra.mxu0 0.0
        %2009 = vmatprep.subr.mxu0 0.0
        %2010 = vmatpush1.xpose.msra.mxu0 0.0
        %2011 = vmatprep.subr.mxu0 0.0
        %2012 = vmatpush1.xpose.msra.mxu0 0.0
        %2013 = vmatprep.subr.mxu0 0.0
        %2014 = vmatpush1.xpose.msra.mxu0 0.0
        %2015 = vmatprep.subr.mxu0 0.0
        %2016 = vmatpush1.xpose.msra.mxu0 0.0
        %2017 = vmatprep.subr.mxu0 0.0
        %2018 = vmatpush1.xpose.msra.mxu0 0.0
        %2019 = vmatprep.subr.mxu0 0.0
        %2020 = vmatpush1.xpose.msra.mxu0 0.0
        %2021 = vmatprep.subr.mxu0 0.0
        %2022 = vmatpush1.xpose.msra.mxu0 0.0
        %2023 = vmatprep.subr.mxu0 0.0
        %2024 = vmatpush1.xpose.msra.mxu0 %v2005
        %2025 = vmatprep.subr.mxu0 0.0
        %2026 = vmatpush1.xpose.msra.mxu0 %v2003
        %2027 = vmatprep.subr.mxu0 0.0
        %2028 = vmatpush1.xpose.msra.mxu0 %v2001
        %2029 = vmatprep.subr.mxu0 0.0
        %2030 = vmatpush1.xpose.msra.mxu0 %v1999
        %2031 = vmatprep.subr.mxu0 0.0
        %2032 = vmatpush1.xpose.msra.mxu0 %v1997
        %2033 = vmatprep.subr.mxu0 0.0
        %2034 = vmatpush1.xpose.msra.mxu0 %v1995
        %2035 = vmatprep.subr.mxu0 0.0
        %2036 = vmatpush1.xpose.msra.mxu0 %v1993
        %2037 = vmatprep.subr.mxu0 0.0
        %2038 = vmatpush1.xpose.msra.mxu0 %v1991
        %2039 = vmatprep.subr.mxu0 0.0
        %2040 = vmatpush2.xpose.msra.mxu0 0.0
        %2041 = vmatprep.subr.mxu0 0.0
        %2042 = vmatpush2.xpose.msra.mxu0 0.0
        %2043 = vmatprep.subr.mxu0 0.0
        %2044 = vmatpush2.xpose.msra.mxu0 0.0
        %2045 = vmatprep.subr.mxu0 0.0
        %2046 = vmatpush2.xpose.msra.mxu0 0.0
        %2047 = vmatprep.subr.mxu0 0.0
        %2048 = vmatpush2.xpose.msra.mxu0 0.0
        %2049 = vmatprep.subr.mxu0 0.0
        %2050 = vmatpush2.xpose.msra.mxu0 0.0
        %2051 = vmatprep.subr.mxu0 0.0
        %2052 = vmatpush2.xpose.msra.mxu0 0.0
        %2053 = vmatprep.subr.mxu0 0.0
        %2054 = vmatpush2.xpose.msra.mxu0 0.0
        %2055 = vmatprep.subr.mxu0 0.0
        %2056 = vmatpush2.xpose.msra.mxu0 0.0
        %2057 = vmatprep.subr.mxu0 0.0
        %2058 = vmatpush2.xpose.msra.mxu0 0.0
        %2059 = vmatprep.subr.mxu0 0.0
        %2060 = vmatpush2.xpose.msra.mxu0 0.0
        %2061 = vmatprep.subr.mxu0 0.0
        %2062 = vmatpush2.xpose.msra.mxu0 0.0
        %2063 = vmatprep.subr.mxu0 0.0
        %2064 = vmatpush2.xpose.msra.mxu0 0.0
        %2065 = vmatprep.subr.mxu0 0.0
        %2066 = vmatpush2.xpose.msra.mxu0 0.0
        %2067 = vmatprep.subr.mxu0 0.0
        %2068 = vmatpush2.xpose.msra.mxu0 0.0
        %2069 = vmatprep.subr.mxu0 0.0
        %2070 = vmatpush2.xpose.msra.mxu0 0.0
        %2071 = vmatprep.mubr.f32.mxu0 0.0
        %2072 = vmatmul.mubr.f32.gmra.mxu0 %v1975
        %v2073 = vpop.f32.mrf.mxu0
        %v2074 = vadd.f32 0.0, %v2073
        %v2075 = vpop.f32.mrf.mxu0
        %2076 = vmatprep.mubr.f32.mxu0 0.0
        %2077 = vmatmul.mubr.f32.gmra.mxu0 %v1977
        %v2078 = vpop.f32.mrf.mxu0
        %v2079 = vadd.f32 0.0, %v2078
        %v2080 = vpop.f32.mrf.mxu0
        %2081 = vmatprep.mubr.f32.mxu0 0.0
        %2082 = vmatmul.mubr.f32.gmra.mxu0 %v1979
        %v2083 = vpop.f32.mrf.mxu0
        %v2084 = vadd.f32 0.0, %v2083
        %v2085 = vpop.f32.mrf.mxu0
        %2086 = vmatprep.mubr.f32.mxu0 0.0
        %2087 = vmatmul.mubr.f32.gmra.mxu0 %v1981
        %v2088 = vpop.f32.mrf.mxu0
        %v2089 = vadd.f32 0.0, %v2088
        %v2090 = vpop.f32.mrf.mxu0
        %2091 = vmatprep.mubr.f32.mxu0 0.0
        %2092 = vmatmul.mubr.f32.gmra.mxu0 %v1983
        %v2093 = vpop.f32.mrf.mxu0
        %v2094 = vadd.f32 0.0, %v2093
        %v2095 = vpop.f32.mrf.mxu0
        %2096 = vmatprep.mubr.f32.mxu0 0.0
        %2097 = vmatmul.mubr.f32.gmra.mxu0 %v1985
        %v2098 = vpop.f32.mrf.mxu0
        %v2099 = vadd.f32 0.0, %v2098
        %v2100 = vpop.f32.mrf.mxu0
        %2101 = vmatprep.mubr.f32.mxu0 0.0
        %2102 = vmatmul.mubr.f32.gmra.mxu0 %v1987
        %v2103 = vpop.f32.mrf.mxu0
        %v2104 = vadd.f32 0.0, %v2103
        %v2105 = vpop.f32.mrf.mxu0
        %2106 = vmatprep.mubr.f32.mxu0 0.0
        %2107 = vmatmul.mubr.f32.gmra.mxu0 %v1989
        %v2108 = vpop.f32.mrf.mxu0
        %v2109 = vadd.f32 0.0, %v2108
        %v2110 = vpop.f32.mrf.mxu0
        %2111 = vdwg.mxu0
        %2112 = vrot.lane.b32.xlu0 %v1193, 96
        %v2113 = vpop.permute.xlu0 %2112
        %2114 = vrot.lane.b32.xlu0 %v1194, 96
        %v2115 = vpop.permute.xlu0 %2114
        %2116 = vrot.lane.b32.xlu0 %v1195, 96
        %v2117 = vpop.permute.xlu0 %2116
        %2118 = vrot.lane.b32.xlu0 %v1196, 96
        %v2119 = vpop.permute.xlu0 %2118
        %2120 = vrot.lane.b32.xlu0 %v1197, 96
        %v2121 = vpop.permute.xlu0 %2120
        %2122 = vrot.lane.b32.xlu0 %v1198, 96
        %v2123 = vpop.permute.xlu0 %2122
        %2124 = vrot.lane.b32.xlu0 %v1199, 96
        %v2125 = vpop.permute.xlu0 %2124
        %2126 = vrot.lane.b32.xlu0 %v1200, 96
        %v2127 = vpop.permute.xlu0 %2126
        %2128 = vrot.lane.b32.xlu0 %v996, 96
        %v2129 = vpop.permute.xlu0 %2128
        %2130 = vrot.lane.b32.xlu0 %v1002, 96
        %v2131 = vpop.permute.xlu0 %2130
        %2132 = vrot.lane.b32.xlu0 %v1008, 96
        %v2133 = vpop.permute.xlu0 %2132
        %2134 = vrot.lane.b32.xlu0 %v1014, 96
        %v2135 = vpop.permute.xlu0 %2134
        %2136 = vrot.lane.b32.xlu0 %v1020, 96
        %v2137 = vpop.permute.xlu0 %2136
        %2138 = vrot.lane.b32.xlu0 %v1026, 96
        %v2139 = vpop.permute.xlu0 %2138
        %2140 = vrot.lane.b32.xlu0 %v1032, 96
        %v2141 = vpop.permute.xlu0 %2140
        %2142 = vrot.lane.b32.xlu0 %v1038, 96
        %v2143 = vpop.permute.xlu0 %2142
        %v2144 = vsel %vm1201, %v2113, 0
        %v2146 = vsel %vm1201, %v2115, 0
        %v2148 = vsel %vm1201, %v2117, 0
        %v2150 = vsel %vm1201, %v2119, 0
        %v2152 = vsel %vm1201, %v2121, 0
        %v2154 = vsel %vm1201, %v2123, 0
        %v2156 = vsel %vm1201, %v2125, 0
        %v2158 = vsel %vm1201, %v2127, 0
        %v2160 = vsel %vm1201, %v2129, 0
        %v2162 = vsel %vm1201, %v2131, 0
        %v2164 = vsel %vm1201, %v2133, 0
        %v2166 = vsel %vm1201, %v2135, 0
        %v2168 = vsel %vm1201, %v2137, 0
        %v2170 = vsel %vm1201, %v2139, 0
        %v2172 = vsel %vm1201, %v2141, 0
        %v2174 = vsel %vm1201, %v2143, 0
        %2176 = vmatprep.subr.mxu0 0.0
        %2177 = vmatpush1.xpose.msra.mxu0 0.0
        %2178 = vmatprep.subr.mxu0 0.0
        %2179 = vmatpush1.xpose.msra.mxu0 0.0
        %2180 = vmatprep.subr.mxu0 0.0
        %2181 = vmatpush1.xpose.msra.mxu0 0.0
        %2182 = vmatprep.subr.mxu0 0.0
        %2183 = vmatpush1.xpose.msra.mxu0 0.0
        %2184 = vmatprep.subr.mxu0 0.0
        %2185 = vmatpush1.xpose.msra.mxu0 0.0
        %2186 = vmatprep.subr.mxu0 0.0
        %2187 = vmatpush1.xpose.msra.mxu0 0.0
        %2188 = vmatprep.subr.mxu0 0.0
        %2189 = vmatpush1.xpose.msra.mxu0 0.0
        %2190 = vmatprep.subr.mxu0 0.0
        %2191 = vmatpush1.xpose.msra.mxu0 0.0
        %2192 = vmatprep.subr.mxu0 0.0
        %2193 = vmatpush1.xpose.msra.mxu0 %v2174
        %2194 = vmatprep.subr.mxu0 0.0
        %2195 = vmatpush1.xpose.msra.mxu0 %v2172
        %2196 = vmatprep.subr.mxu0 0.0
        %2197 = vmatpush1.xpose.msra.mxu0 %v2170
        %2198 = vmatprep.subr.mxu0 0.0
        %2199 = vmatpush1.xpose.msra.mxu0 %v2168
        %2200 = vmatprep.subr.mxu0 0.0
        %2201 = vmatpush1.xpose.msra.mxu0 %v2166
        %2202 = vmatprep.subr.mxu0 0.0
        %2203 = vmatpush1.xpose.msra.mxu0 %v2164
        %2204 = vmatprep.subr.mxu0 0.0
        %2205 = vmatpush1.xpose.msra.mxu0 %v2162
        %2206 = vmatprep.subr.mxu0 0.0
        %2207 = vmatpush1.xpose.msra.mxu0 %v2160
        %2208 = vmatprep.subr.mxu0 0.0
        %2209 = vmatpush2.xpose.msra.mxu0 0.0
        %2210 = vmatprep.subr.mxu0 0.0
        %2211 = vmatpush2.xpose.msra.mxu0 0.0
        %2212 = vmatprep.subr.mxu0 0.0
        %2213 = vmatpush2.xpose.msra.mxu0 0.0
        %2214 = vmatprep.subr.mxu0 0.0
        %2215 = vmatpush2.xpose.msra.mxu0 0.0
        %2216 = vmatprep.subr.mxu0 0.0
        %2217 = vmatpush2.xpose.msra.mxu0 0.0
        %2218 = vmatprep.subr.mxu0 0.0
        %2219 = vmatpush2.xpose.msra.mxu0 0.0
        %2220 = vmatprep.subr.mxu0 0.0
        %2221 = vmatpush2.xpose.msra.mxu0 0.0
        %2222 = vmatprep.subr.mxu0 0.0
        %2223 = vmatpush2.xpose.msra.mxu0 0.0
        %2224 = vmatprep.subr.mxu0 0.0
        %2225 = vmatpush2.xpose.msra.mxu0 0.0
        %2226 = vmatprep.subr.mxu0 0.0
        %2227 = vmatpush2.xpose.msra.mxu0 0.0
        %2228 = vmatprep.subr.mxu0 0.0
        %2229 = vmatpush2.xpose.msra.mxu0 0.0
        %2230 = vmatprep.subr.mxu0 0.0
        %2231 = vmatpush2.xpose.msra.mxu0 0.0
        %2232 = vmatprep.subr.mxu0 0.0
        %2233 = vmatpush2.xpose.msra.mxu0 0.0
        %2234 = vmatprep.subr.mxu0 0.0
        %2235 = vmatpush2.xpose.msra.mxu0 0.0
        %2236 = vmatprep.subr.mxu0 0.0
        %2237 = vmatpush2.xpose.msra.mxu0 0.0
        %2238 = vmatprep.subr.mxu0 0.0
        %2239 = vmatpush2.xpose.msra.mxu0 0.0
        %2240 = vmatprep.mubr.f32.mxu0 0.0
        %2241 = vmatmul.mubr.f32.gmra.mxu0 %v2144
        %v2242 = vpop.f32.mrf.mxu0
        %v2243 = vadd.f32 0.0, %v2242
        %v2244 = vpop.f32.mrf.mxu0
        %2245 = vmatprep.mubr.f32.mxu0 0.0
        %2246 = vmatmul.mubr.f32.gmra.mxu0 %v2146
        %v2247 = vpop.f32.mrf.mxu0
        %v2248 = vadd.f32 0.0, %v2247
        %v2249 = vpop.f32.mrf.mxu0
        %2250 = vmatprep.mubr.f32.mxu0 0.0
        %2251 = vmatmul.mubr.f32.gmra.mxu0 %v2148
        %v2252 = vpop.f32.mrf.mxu0
        %v2253 = vadd.f32 0.0, %v2252
        %v2254 = vpop.f32.mrf.mxu0
        %2255 = vmatprep.mubr.f32.mxu0 0.0
        %2256 = vmatmul.mubr.f32.gmra.mxu0 %v2150
        %v2257 = vpop.f32.mrf.mxu0
        %v2258 = vadd.f32 0.0, %v2257
        %v2259 = vpop.f32.mrf.mxu0
        %2260 = vmatprep.mubr.f32.mxu0 0.0
        %2261 = vmatmul.mubr.f32.gmra.mxu0 %v2152
        %v2262 = vpop.f32.mrf.mxu0
        %v2263 = vadd.f32 0.0, %v2262
        %v2264 = vpop.f32.mrf.mxu0
        %2265 = vmatprep.mubr.f32.mxu0 0.0
        %2266 = vmatmul.mubr.f32.gmra.mxu0 %v2154
        %v2267 = vpop.f32.mrf.mxu0
        %v2268 = vadd.f32 0.0, %v2267
        %v2269 = vpop.f32.mrf.mxu0
        %2270 = vmatprep.mubr.f32.mxu0 0.0
        %2271 = vmatmul.mubr.f32.gmra.mxu0 %v2156
        %v2272 = vpop.f32.mrf.mxu0
        %v2273 = vadd.f32 0.0, %v2272
        %v2274 = vpop.f32.mrf.mxu0
        %2275 = vmatprep.mubr.f32.mxu0 0.0
        %2276 = vmatmul.mubr.f32.gmra.mxu0 %v2158
        %v2277 = vpop.f32.mrf.mxu0
        %v2278 = vadd.f32 0.0, %v2277
        %v2279 = vpop.f32.mrf.mxu0
        %2280 = vdwg.mxu0
        %v2281 = vsel %vm1508, %v2074, -inf
        %2282 = vmax.xlane.f32.xlu0 %v2281
        %v2283 = vpop.xlane.xlu0 %2282
        %v2284 = vsel %vm1508, %v2079, -inf
        %2285 = vmax.xlane.f32.xlu0 %v2284
        %v2286 = vpop.xlane.xlu0 %2285
        %v2287 = vsel %vm1508, %v2084, -inf
        %2288 = vmax.xlane.f32.xlu0 %v2287
        %v2289 = vpop.xlane.xlu0 %2288
        %v2290 = vsel %vm1508, %v2089, -inf
        %2291 = vmax.xlane.f32.xlu0 %v2290
        %v2292 = vpop.xlane.xlu0 %2291
        %v2293 = vsel %vm1508, %v2094, -inf
        %2294 = vmax.xlane.f32.xlu0 %v2293
        %v2295 = vpop.xlane.xlu0 %2294
        %v2296 = vsel %vm1508, %v2099, -inf
        %2297 = vmax.xlane.f32.xlu0 %v2296
        %v2298 = vpop.xlane.xlu0 %2297
        %v2299 = vsel %vm1508, %v2104, -inf
        %2300 = vmax.xlane.f32.xlu0 %v2299
        %v2301 = vpop.xlane.xlu0 %2300
        %v2302 = vsel %vm1508, %v2109, -inf
        %2303 = vmax.xlane.f32.xlu0 %v2302
        %v2304 = vpop.xlane.xlu0 %2303
        %v2305 = vsel %vm1508, %v2243, -inf
        %2306 = vmax.xlane.f32.xlu0 %v2305
        %v2307 = vpop.xlane.xlu0 %2306
        %v2308 = vsel %vm1508, %v2248, -inf
        %2309 = vmax.xlane.f32.xlu0 %v2308
        %v2310 = vpop.xlane.xlu0 %2309
        %v2311 = vsel %vm1508, %v2253, -inf
        %2312 = vmax.xlane.f32.xlu0 %v2311
        %v2313 = vpop.xlane.xlu0 %2312
        %v2314 = vsel %vm1508, %v2258, -inf
        %2315 = vmax.xlane.f32.xlu0 %v2314
        %v2316 = vpop.xlane.xlu0 %2315
        %v2317 = vsel %vm1508, %v2263, -inf
        %2318 = vmax.xlane.f32.xlu0 %v2317
        %v2319 = vpop.xlane.xlu0 %2318
        %v2320 = vsel %vm1508, %v2268, -inf
        %2321 = vmax.xlane.f32.xlu0 %v2320
        %v2322 = vpop.xlane.xlu0 %2321
        %v2323 = vsel %vm1508, %v2273, -inf
        %2324 = vmax.xlane.f32.xlu0 %v2323
        %v2325 = vpop.xlane.xlu0 %2324
        %v2326 = vsel %vm1508, %v2278, -inf
        %2327 = vmax.xlane.f32.xlu0 %v2326
        %v2328 = vpop.xlane.xlu0 %2327
        %v2329 = vsub.f32 %v2074, %v2283
        %v2330 = vsub.f32 %v2079, %v2286
        %v2331 = vsub.f32 %v2084, %v2289
        %v2332 = vsub.f32 %v2089, %v2292
        %v2333 = vsub.f32 %v2094, %v2295
        %v2334 = vsub.f32 %v2099, %v2298
        %v2335 = vsub.f32 %v2104, %v2301
        %v2336 = vsub.f32 %v2109, %v2304
        %v2337 = vsub.f32 %v2243, %v2307
        %v2338 = vsub.f32 %v2248, %v2310
        %v2339 = vsub.f32 %v2253, %v2313
        %v2340 = vsub.f32 %v2258, %v2316
        %v2341 = vsub.f32 %v2263, %v2319
        %v2342 = vsub.f32 %v2268, %v2322
        %v2343 = vsub.f32 %v2273, %v2325
        %v2344 = vsub.f32 %v2278, %v2328
        %v2345 = vmul.f32 %v2329, 1.442695
        %v2346 = vpow.pop %v2345
        %v2347 = vmul.f32 %v2330, 1.442695
        %v2348 = vpow.pop %v2347
        %v2349 = vmul.f32 %v2331, 1.442695
        %v2350 = vpow.pop %v2349
        %v2351 = vmul.f32 %v2332, 1.442695
        %v2352 = vpow.pop %v2351
        %v2353 = vmul.f32 %v2333, 1.442695
        %v2354 = vpow.pop %v2353
        %v2355 = vmul.f32 %v2334, 1.442695
        %v2356 = vpow.pop %v2355
        %v2357 = vmul.f32 %v2335, 1.442695
        %v2358 = vpow.pop %v2357
        %v2359 = vmul.f32 %v2336, 1.442695
        %v2360 = vpow.pop %v2359
        %v2361 = vmul.f32 %v2337, 1.442695
        %v2362 = vpow.pop %v2361
        %v2363 = vmul.f32 %v2338, 1.442695
        %v2364 = vpow.pop %v2363
        %v2365 = vmul.f32 %v2339, 1.442695
        %v2366 = vpow.pop %v2365
        %v2367 = vmul.f32 %v2340, 1.442695
        %v2368 = vpow.pop %v2367
        %v2369 = vmul.f32 %v2341, 1.442695
        %v2370 = vpow.pop %v2369
        %v2371 = vmul.f32 %v2342, 1.442695
        %v2372 = vpow.pop %v2371
        %v2373 = vmul.f32 %v2343, 1.442695
        %v2374 = vpow.pop %v2373
        %v2375 = vmul.f32 %v2344, 1.442695
        %v2376 = vpow.pop %v2375
        %v2377 = vsel %vm1508, %v2346, 0.0
        %2378 = vadd.xlane.f32.xlu0 %v2377
        %v2379 = vpop.xlane.xlu0 %2378
        %v2380 = vsel %vm1508, %v2348, 0.0
        %2381 = vadd.xlane.f32.xlu0 %v2380
        %v2382 = vpop.xlane.xlu0 %2381
        %v2383 = vsel %vm1508, %v2350, 0.0
        %2384 = vadd.xlane.f32.xlu0 %v2383
        %v2385 = vpop.xlane.xlu0 %2384
        %v2386 = vsel %vm1508, %v2352, 0.0
        %2387 = vadd.xlane.f32.xlu0 %v2386
        %v2388 = vpop.xlane.xlu0 %2387
        %v2389 = vsel %vm1508, %v2354, 0.0
        %2390 = vadd.xlane.f32.xlu0 %v2389
        %v2391 = vpop.xlane.xlu0 %2390
        %v2392 = vsel %vm1508, %v2356, 0.0
        %2393 = vadd.xlane.f32.xlu0 %v2392
        %v2394 = vpop.xlane.xlu0 %2393
        %v2395 = vsel %vm1508, %v2358, 0.0
        %2396 = vadd.xlane.f32.xlu0 %v2395
        %v2397 = vpop.xlane.xlu0 %2396
        %v2398 = vsel %vm1508, %v2360, 0.0
        %2399 = vadd.xlane.f32.xlu0 %v2398
        %v2400 = vpop.xlane.xlu0 %2399
        %v2401 = vsel %vm1508, %v2362, 0.0
        %2402 = vadd.xlane.f32.xlu0 %v2401
        %v2403 = vpop.xlane.xlu0 %2402
        %v2404 = vsel %vm1508, %v2364, 0.0
        %2405 = vadd.xlane.f32.xlu0 %v2404
        %v2406 = vpop.xlane.xlu0 %2405
        %v2407 = vsel %vm1508, %v2366, 0.0
        %2408 = vadd.xlane.f32.xlu0 %v2407
        %v2409 = vpop.xlane.xlu0 %2408
        %v2410 = vsel %vm1508, %v2368, 0.0
        %2411 = vadd.xlane.f32.xlu0 %v2410
        %v2412 = vpop.xlane.xlu0 %2411
        %v2413 = vsel %vm1508, %v2370, 0.0
        %2414 = vadd.xlane.f32.xlu0 %v2413
        %v2415 = vpop.xlane.xlu0 %2414
        %v2416 = vsel %vm1508, %v2372, 0.0
        %2417 = vadd.xlane.f32.xlu0 %v2416
        %v2418 = vpop.xlane.xlu0 %2417
        %v2419 = vsel %vm1508, %v2374, 0.0
        %2420 = vadd.xlane.f32.xlu0 %v2419
        %v2421 = vpop.xlane.xlu0 %2420
        %v2422 = vsel %vm1508, %v2376, 0.0
        %2423 = vadd.xlane.f32.xlu0 %v2422
        %v2424 = vpop.xlane.xlu0 %2423
        %v2425 = vrcp.pop %v2379
        %v2426 = vrcp.pop %v2382
        %v2427 = vrcp.pop %v2385
        %v2428 = vrcp.pop %v2388
        %v2429 = vrcp.pop %v2391
        %v2430 = vrcp.pop %v2394
        %v2431 = vrcp.pop %v2397
        %v2432 = vrcp.pop %v2400
        %v2433 = vrcp.pop %v2403
        %v2434 = vrcp.pop %v2406
        %v2435 = vrcp.pop %v2409
        %v2436 = vrcp.pop %v2412
        %v2437 = vrcp.pop %v2415
        %v2438 = vrcp.pop %v2418
        %v2439 = vrcp.pop %v2421
        %v2440 = vrcp.pop %v2424
        %v2441 = vmul.f32 %v2346, %v2425
        %v2442 = vmul.f32 %v2348, %v2426
        %v2443 = vmul.f32 %v2350, %v2427
        %v2444 = vmul.f32 %v2352, %v2428
        %v2445 = vmul.f32 %v2354, %v2429
        %v2446 = vmul.f32 %v2356, %v2430
        %v2447 = vmul.f32 %v2358, %v2431
        %v2448 = vmul.f32 %v2360, %v2432
        %v2449 = vmul.f32 %v2362, %v2433
        %v2450 = vmul.f32 %v2364, %v2434
        %v2451 = vmul.f32 %v2366, %v2435
        %v2452 = vmul.f32 %v2368, %v2436
        %v2453 = vmul.f32 %v2370, %v2437
        %v2454 = vmul.f32 %v2372, %v2438
        %v2455 = vmul.f32 %v2374, %v2439
        %v2456 = vmul.f32 %v2376, %v2440
        %2465 = vrot.lane.b32.xlu0 %v1107, 96
        %v2466 = vpop.permute.xlu0 %2465
        %2467 = vrot.lane.b32.xlu0 %v1112, 96
        %v2468 = vpop.permute.xlu0 %2467
        %2469 = vrot.lane.b32.xlu0 %v1117, 96
        %v2470 = vpop.permute.xlu0 %2469
        %2471 = vrot.lane.b32.xlu0 %v1122, 96
        %v2472 = vpop.permute.xlu0 %2471
        %2473 = vrot.lane.b32.xlu0 %v1127, 96
        %v2474 = vpop.permute.xlu0 %2473
        %2475 = vrot.lane.b32.xlu0 %v1132, 96
        %v2476 = vpop.permute.xlu0 %2475
        %2477 = vrot.lane.b32.xlu0 %v1137, 96
        %v2478 = vpop.permute.xlu0 %2477
        %2479 = vrot.lane.b32.xlu0 %v1142, 96
        %v2480 = vpop.permute.xlu0 %2479
        %v2490 = vsel %vm1508, %v2441, 0
        %v2493 = vsel %vm1508, %v2442, 0
        %v2496 = vsel %vm1508, %v2443, 0
        %v2499 = vsel %vm1508, %v2444, 0
        %v2502 = vsel %vm1508, %v2445, 0
        %v2505 = vsel %vm1508, %v2446, 0
        %v2508 = vsel %vm1508, %v2447, 0
        %v2511 = vsel %vm1508, %v2448, 0
        %2513 = vmatprep.subr.mxu0 0.0
        %2514 = vmatpush1.msra.mxu0 0.0
        %2515 = vmatprep.subr.mxu0 0.0
        %2516 = vmatpush1.msra.mxu0 0.0
        %2517 = vmatprep.subr.mxu0 0.0
        %2518 = vmatpush1.msra.mxu0 0.0
        %2519 = vmatprep.subr.mxu0 0.0
        %2520 = vmatpush1.msra.mxu0 0.0
        %2521 = vmatprep.subr.mxu0 0.0
        %2522 = vmatpush1.msra.mxu0 0.0
        %2523 = vmatprep.subr.mxu0 0.0
        %2524 = vmatpush1.msra.mxu0 0.0
        %2525 = vmatprep.subr.mxu0 0.0
        %2526 = vmatpush1.msra.mxu0 0.0
        %2527 = vmatprep.subr.mxu0 0.0
        %2528 = vmatpush1.msra.mxu0 0.0
        %2529 = vmatprep.subr.mxu0 0.0
        %2530 = vmatpush1.msra.mxu0 %v2480
        %2531 = vmatprep.subr.mxu0 0.0
        %2532 = vmatpush1.msra.mxu0 %v2478
        %2533 = vmatprep.subr.mxu0 0.0
        %2534 = vmatpush1.msra.mxu0 %v2476
        %2535 = vmatprep.subr.mxu0 0.0
        %2536 = vmatpush1.msra.mxu0 %v2474
        %2537 = vmatprep.subr.mxu0 0.0
        %2538 = vmatpush1.msra.mxu0 %v2472
        %2539 = vmatprep.subr.mxu0 0.0
        %2540 = vmatpush1.msra.mxu0 %v2470
        %2541 = vmatprep.subr.mxu0 0.0
        %2542 = vmatpush1.msra.mxu0 %v2468
        %2543 = vmatprep.subr.mxu0 0.0
        %2544 = vmatpush1.msra.mxu0 %v2466
        %2545 = vmatprep.subr.mxu0 0.0
        %2546 = vmatpush2.msra.mxu0 0.0
        %2547 = vmatprep.subr.mxu0 0.0
        %2548 = vmatpush2.msra.mxu0 0.0
        %2549 = vmatprep.subr.mxu0 0.0
        %2550 = vmatpush2.msra.mxu0 0.0
        %2551 = vmatprep.subr.mxu0 0.0
        %2552 = vmatpush2.msra.mxu0 0.0
        %2553 = vmatprep.subr.mxu0 0.0
        %2554 = vmatpush2.msra.mxu0 0.0
        %2555 = vmatprep.subr.mxu0 0.0
        %2556 = vmatpush2.msra.mxu0 0.0
        %2557 = vmatprep.subr.mxu0 0.0
        %2558 = vmatpush2.msra.mxu0 0.0
        %2559 = vmatprep.subr.mxu0 0.0
        %2560 = vmatpush2.msra.mxu0 0.0
        %2561 = vmatprep.subr.mxu0 0.0
        %2562 = vmatpush2.msra.mxu0 0.0
        %2563 = vmatprep.subr.mxu0 0.0
        %2564 = vmatpush2.msra.mxu0 0.0
        %2565 = vmatprep.subr.mxu0 0.0
        %2566 = vmatpush2.msra.mxu0 0.0
        %2567 = vmatprep.subr.mxu0 0.0
        %2568 = vmatpush2.msra.mxu0 0.0
        %2569 = vmatprep.subr.mxu0 0.0
        %2570 = vmatpush2.msra.mxu0 0.0
        %2571 = vmatprep.subr.mxu0 0.0
        %2572 = vmatpush2.msra.mxu0 0.0
        %2573 = vmatprep.subr.mxu0 0.0
        %2574 = vmatpush2.msra.mxu0 0.0
        %2575 = vmatprep.subr.mxu0 0.0
        %2576 = vmatpush2.msra.mxu0 0.0
        %2577 = vmatprep.mubr.f32.mxu0 0.0
        %2578 = vmatmul.mubr.f32.gmra.mxu0 %v2490
        %v2579 = vpop.f32.mrf.mxu0
        %v2580 = vadd.f32 0.0, %v2579
        %v2581 = vpop.f32.mrf.mxu0
        %2582 = vmatprep.mubr.f32.mxu0 0.0
        %2583 = vmatmul.mubr.f32.gmra.mxu0 %v2493
        %v2584 = vpop.f32.mrf.mxu0
        %v2585 = vadd.f32 0.0, %v2584
        %v2586 = vpop.f32.mrf.mxu0
        %2587 = vmatprep.mubr.f32.mxu0 0.0
        %2588 = vmatmul.mubr.f32.gmra.mxu0 %v2496
        %v2589 = vpop.f32.mrf.mxu0
        %v2590 = vadd.f32 0.0, %v2589
        %v2591 = vpop.f32.mrf.mxu0
        %2592 = vmatprep.mubr.f32.mxu0 0.0
        %2593 = vmatmul.mubr.f32.gmra.mxu0 %v2499
        %v2594 = vpop.f32.mrf.mxu0
        %v2595 = vadd.f32 0.0, %v2594
        %v2596 = vpop.f32.mrf.mxu0
        %2597 = vmatprep.mubr.f32.mxu0 0.0
        %2598 = vmatmul.mubr.f32.gmra.mxu0 %v2502
        %v2599 = vpop.f32.mrf.mxu0
        %v2600 = vadd.f32 0.0, %v2599
        %v2601 = vpop.f32.mrf.mxu0
        %2602 = vmatprep.mubr.f32.mxu0 0.0
        %2603 = vmatmul.mubr.f32.gmra.mxu0 %v2505
        %v2604 = vpop.f32.mrf.mxu0
        %v2605 = vadd.f32 0.0, %v2604
        %v2606 = vpop.f32.mrf.mxu0
        %2607 = vmatprep.mubr.f32.mxu0 0.0
        %2608 = vmatmul.mubr.f32.gmra.mxu0 %v2508
        %v2609 = vpop.f32.mrf.mxu0
        %v2610 = vadd.f32 0.0, %v2609
        %v2611 = vpop.f32.mrf.mxu0
        %2612 = vmatprep.mubr.f32.mxu0 0.0
        %2613 = vmatmul.mubr.f32.gmra.mxu0 %v2511
        %v2614 = vpop.f32.mrf.mxu0
        %v2615 = vadd.f32 0.0, %v2614
        %v2616 = vpop.f32.mrf.mxu0
        %2617 = vdwg.mxu0
        %2626 = vrot.lane.b32.xlu0 %v1147, 96
        %v2627 = vpop.permute.xlu0 %2626
        %2628 = vrot.lane.b32.xlu0 %v1152, 96
        %v2629 = vpop.permute.xlu0 %2628
        %2630 = vrot.lane.b32.xlu0 %v1157, 96
        %v2631 = vpop.permute.xlu0 %2630
        %2632 = vrot.lane.b32.xlu0 %v1162, 96
        %v2633 = vpop.permute.xlu0 %2632
        %2634 = vrot.lane.b32.xlu0 %v1167, 96
        %v2635 = vpop.permute.xlu0 %2634
        %2636 = vrot.lane.b32.xlu0 %v1172, 96
        %v2637 = vpop.permute.xlu0 %2636
        %2638 = vrot.lane.b32.xlu0 %v1177, 96
        %v2639 = vpop.permute.xlu0 %2638
        %2640 = vrot.lane.b32.xlu0 %v1182, 96
        %v2641 = vpop.permute.xlu0 %2640
        %v2651 = vsel %vm1508, %v2449, 0
        %v2654 = vsel %vm1508, %v2450, 0
        %v2657 = vsel %vm1508, %v2451, 0
        %v2660 = vsel %vm1508, %v2452, 0
        %v2663 = vsel %vm1508, %v2453, 0
        %v2666 = vsel %vm1508, %v2454, 0
        %v2669 = vsel %vm1508, %v2455, 0
        %v2672 = vsel %vm1508, %v2456, 0
        %2674 = vmatprep.subr.mxu0 0.0
        %2675 = vmatpush1.msra.mxu0 0.0
        %2676 = vmatprep.subr.mxu0 0.0
        %2677 = vmatpush1.msra.mxu0 0.0
        %2678 = vmatprep.subr.mxu0 0.0
        %2679 = vmatpush1.msra.mxu0 0.0
        %2680 = vmatprep.subr.mxu0 0.0
        %2681 = vmatpush1.msra.mxu0 0.0
        %2682 = vmatprep.subr.mxu0 0.0
        %2683 = vmatpush1.msra.mxu0 0.0
        %2684 = vmatprep.subr.mxu0 0.0
        %2685 = vmatpush1.msra.mxu0 0.0
        %2686 = vmatprep.subr.mxu0 0.0
        %2687 = vmatpush1.msra.mxu0 0.0
        %2688 = vmatprep.subr.mxu0 0.0
        %2689 = vmatpush1.msra.mxu0 0.0
        %2690 = vmatprep.subr.mxu0 0.0
        %2691 = vmatpush1.msra.mxu0 %v2641
        %2692 = vmatprep.subr.mxu0 0.0
        %2693 = vmatpush1.msra.mxu0 %v2639
        %2694 = vmatprep.subr.mxu0 0.0
        %2695 = vmatpush1.msra.mxu0 %v2637
        %2696 = vmatprep.subr.mxu0 0.0
        %2697 = vmatpush1.msra.mxu0 %v2635
        %2698 = vmatprep.subr.mxu0 0.0
        %2699 = vmatpush1.msra.mxu0 %v2633
        %2700 = vmatprep.subr.mxu0 0.0
        %2701 = vmatpush1.msra.mxu0 %v2631
        %2702 = vmatprep.subr.mxu0 0.0
        %2703 = vmatpush1.msra.mxu0 %v2629
        %2704 = vmatprep.subr.mxu0 0.0
        %2705 = vmatpush1.msra.mxu0 %v2627
        %2706 = vmatprep.subr.mxu0 0.0
        %2707 = vmatpush2.msra.mxu0 0.0
        %2708 = vmatprep.subr.mxu0 0.0
        %2709 = vmatpush2.msra.mxu0 0.0
        %2710 = vmatprep.subr.mxu0 0.0
        %2711 = vmatpush2.msra.mxu0 0.0
        %2712 = vmatprep.subr.mxu0 0.0
        %2713 = vmatpush2.msra.mxu0 0.0
        %2714 = vmatprep.subr.mxu0 0.0
        %2715 = vmatpush2.msra.mxu0 0.0
        %2716 = vmatprep.subr.mxu0 0.0
        %2717 = vmatpush2.msra.mxu0 0.0
        %2718 = vmatprep.subr.mxu0 0.0
        %2719 = vmatpush2.msra.mxu0 0.0
        %2720 = vmatprep.subr.mxu0 0.0
        %2721 = vmatpush2.msra.mxu0 0.0
        %2722 = vmatprep.subr.mxu0 0.0
        %2723 = vmatpush2.msra.mxu0 0.0
        %2724 = vmatprep.subr.mxu0 0.0
        %2725 = vmatpush2.msra.mxu0 0.0
        %2726 = vmatprep.subr.mxu0 0.0
        %2727 = vmatpush2.msra.mxu0 0.0
        %2728 = vmatprep.subr.mxu0 0.0
        %2729 = vmatpush2.msra.mxu0 0.0
        %2730 = vmatprep.subr.mxu0 0.0
        %2731 = vmatpush2.msra.mxu0 0.0
        %2732 = vmatprep.subr.mxu0 0.0
        %2733 = vmatpush2.msra.mxu0 0.0
        %2734 = vmatprep.subr.mxu0 0.0
        %2735 = vmatpush2.msra.mxu0 0.0
        %2736 = vmatprep.subr.mxu0 0.0
        %2737 = vmatpush2.msra.mxu0 0.0
        %2738 = vmatprep.mubr.f32.mxu0 0.0
        %2739 = vmatmul.mubr.f32.gmra.mxu0 %v2651
        %v2740 = vpop.f32.mrf.mxu0
        %v2741 = vadd.f32 0.0, %v2740
        %v2742 = vpop.f32.mrf.mxu0
        %2743 = vmatprep.mubr.f32.mxu0 0.0
        %2744 = vmatmul.mubr.f32.gmra.mxu0 %v2654
        %v2745 = vpop.f32.mrf.mxu0
        %v2746 = vadd.f32 0.0, %v2745
        %v2747 = vpop.f32.mrf.mxu0
        %2748 = vmatprep.mubr.f32.mxu0 0.0
        %2749 = vmatmul.mubr.f32.gmra.mxu0 %v2657
        %v2750 = vpop.f32.mrf.mxu0
        %v2751 = vadd.f32 0.0, %v2750
        %v2752 = vpop.f32.mrf.mxu0
        %2753 = vmatprep.mubr.f32.mxu0 0.0
        %2754 = vmatmul.mubr.f32.gmra.mxu0 %v2660
        %v2755 = vpop.f32.mrf.mxu0
        %v2756 = vadd.f32 0.0, %v2755
        %v2757 = vpop.f32.mrf.mxu0
        %2758 = vmatprep.mubr.f32.mxu0 0.0
        %2759 = vmatmul.mubr.f32.gmra.mxu0 %v2663
        %v2760 = vpop.f32.mrf.mxu0
        %v2761 = vadd.f32 0.0, %v2760
        %v2762 = vpop.f32.mrf.mxu0
        %2763 = vmatprep.mubr.f32.mxu0 0.0
        %2764 = vmatmul.mubr.f32.gmra.mxu0 %v2666
        %v2765 = vpop.f32.mrf.mxu0
        %v2766 = vadd.f32 0.0, %v2765
        %v2767 = vpop.f32.mrf.mxu0
        %2768 = vmatprep.mubr.f32.mxu0 0.0
        %2769 = vmatmul.mubr.f32.gmra.mxu0 %v2669
        %v2770 = vpop.f32.mrf.mxu0
        %v2771 = vadd.f32 0.0, %v2770
        %v2772 = vpop.f32.mrf.mxu0
        %2773 = vmatprep.mubr.f32.mxu0 0.0
        %2774 = vmatmul.mubr.f32.gmra.mxu0 %v2672
        %v2775 = vpop.f32.mrf.mxu0
        %v2776 = vadd.f32 0.0, %v2775
        %v2777 = vpop.f32.mrf.mxu0
        %2778 = vdwg.mxu0
        %2779 = vrot.lane.b32.xlu0 %v1185, 64
        %v2780 = vpop.permute.xlu0 %2779
        %2781 = vrot.lane.b32.xlu0 %v1186, 64
        %v2782 = vpop.permute.xlu0 %2781
        %2783 = vrot.lane.b32.xlu0 %v1187, 64
        %v2784 = vpop.permute.xlu0 %2783
        %2785 = vrot.lane.b32.xlu0 %v1188, 64
        %v2786 = vpop.permute.xlu0 %2785
        %2787 = vrot.lane.b32.xlu0 %v1189, 64
        %v2788 = vpop.permute.xlu0 %2787
        %2789 = vrot.lane.b32.xlu0 %v1190, 64
        %v2790 = vpop.permute.xlu0 %2789
        %2791 = vrot.lane.b32.xlu0 %v1191, 64
        %v2792 = vpop.permute.xlu0 %2791
        %2793 = vrot.lane.b32.xlu0 %v1192, 64
        %v2794 = vpop.permute.xlu0 %2793
        %2795 = vrot.lane.b32.xlu0 %v948, 64
        %v2796 = vpop.permute.xlu0 %2795
        %2797 = vrot.lane.b32.xlu0 %v954, 64
        %v2798 = vpop.permute.xlu0 %2797
        %2799 = vrot.lane.b32.xlu0 %v960, 64
        %v2800 = vpop.permute.xlu0 %2799
        %2801 = vrot.lane.b32.xlu0 %v966, 64
        %v2802 = vpop.permute.xlu0 %2801
        %2803 = vrot.lane.b32.xlu0 %v972, 64
        %v2804 = vpop.permute.xlu0 %2803
        %2805 = vrot.lane.b32.xlu0 %v978, 64
        %v2806 = vpop.permute.xlu0 %2805
        %2807 = vrot.lane.b32.xlu0 %v984, 64
        %v2808 = vpop.permute.xlu0 %2807
        %2809 = vrot.lane.b32.xlu0 %v990, 64
        %v2810 = vpop.permute.xlu0 %2809
        %v2811 = vsel %vm1201, %v2780, 0
        %v2813 = vsel %vm1201, %v2782, 0
        %v2815 = vsel %vm1201, %v2784, 0
        %v2817 = vsel %vm1201, %v2786, 0
        %v2819 = vsel %vm1201, %v2788, 0
        %v2821 = vsel %vm1201, %v2790, 0
        %v2823 = vsel %vm1201, %v2792, 0
        %v2825 = vsel %vm1201, %v2794, 0
        %v2827 = vsel %vm1201, %v2796, 0
        %v2829 = vsel %vm1201, %v2798, 0
        %v2831 = vsel %vm1201, %v2800, 0
        %v2833 = vsel %vm1201, %v2802, 0
        %v2835 = vsel %vm1201, %v2804, 0
        %v2837 = vsel %vm1201, %v2806, 0
        %v2839 = vsel %vm1201, %v2808, 0
        %v2841 = vsel %vm1201, %v2810, 0
        %2843 = vmatprep.subr.mxu0 0.0
        %2844 = vmatpush1.xpose.msra.mxu0 0.0
        %2845 = vmatprep.subr.mxu0 0.0
        %2846 = vmatpush1.xpose.msra.mxu0 0.0
        %2847 = vmatprep.subr.mxu0 0.0
        %2848 = vmatpush1.xpose.msra.mxu0 0.0
        %2849 = vmatprep.subr.mxu0 0.0
        %2850 = vmatpush1.xpose.msra.mxu0 0.0
        %2851 = vmatprep.subr.mxu0 0.0
        %2852 = vmatpush1.xpose.msra.mxu0 0.0
        %2853 = vmatprep.subr.mxu0 0.0
        %2854 = vmatpush1.xpose.msra.mxu0 0.0
        %2855 = vmatprep.subr.mxu0 0.0
        %2856 = vmatpush1.xpose.msra.mxu0 0.0
        %2857 = vmatprep.subr.mxu0 0.0
        %2858 = vmatpush1.xpose.msra.mxu0 0.0
        %2859 = vmatprep.subr.mxu0 0.0
        %2860 = vmatpush1.xpose.msra.mxu0 %v2841
        %2861 = vmatprep.subr.mxu0 0.0
        %2862 = vmatpush1.xpose.msra.mxu0 %v2839
        %2863 = vmatprep.subr.mxu0 0.0
        %2864 = vmatpush1.xpose.msra.mxu0 %v2837
        %2865 = vmatprep.subr.mxu0 0.0
        %2866 = vmatpush1.xpose.msra.mxu0 %v2835
        %2867 = vmatprep.subr.mxu0 0.0
        %2868 = vmatpush1.xpose.msra.mxu0 %v2833
        %2869 = vmatprep.subr.mxu0 0.0
        %2870 = vmatpush1.xpose.msra.mxu0 %v2831
        %2871 = vmatprep.subr.mxu0 0.0
        %2872 = vmatpush1.xpose.msra.mxu0 %v2829
        %2873 = vmatprep.subr.mxu0 0.0
        %2874 = vmatpush1.xpose.msra.mxu0 %v2827
        %2875 = vmatprep.subr.mxu0 0.0
        %2876 = vmatpush2.xpose.msra.mxu0 0.0
        %2877 = vmatprep.subr.mxu0 0.0
        %2878 = vmatpush2.xpose.msra.mxu0 0.0
        %2879 = vmatprep.subr.mxu0 0.0
        %2880 = vmatpush2.xpose.msra.mxu0 0.0
        %2881 = vmatprep.subr.mxu0 0.0
        %2882 = vmatpush2.xpose.msra.mxu0 0.0
        %2883 = vmatprep.subr.mxu0 0.0
        %2884 = vmatpush2.xpose.msra.mxu0 0.0
        %2885 = vmatprep.subr.mxu0 0.0
        %2886 = vmatpush2.xpose.msra.mxu0 0.0
        %2887 = vmatprep.subr.mxu0 0.0
        %2888 = vmatpush2.xpose.msra.mxu0 0.0
        %2889 = vmatprep.subr.mxu0 0.0
        %2890 = vmatpush2.xpose.msra.mxu0 0.0
        %2891 = vmatprep.subr.mxu0 0.0
        %2892 = vmatpush2.xpose.msra.mxu0 0.0
        %2893 = vmatprep.subr.mxu0 0.0
        %2894 = vmatpush2.xpose.msra.mxu0 0.0
        %2895 = vmatprep.subr.mxu0 0.0
        %2896 = vmatpush2.xpose.msra.mxu0 0.0
        %2897 = vmatprep.subr.mxu0 0.0
        %2898 = vmatpush2.xpose.msra.mxu0 0.0
        %2899 = vmatprep.subr.mxu0 0.0
        %2900 = vmatpush2.xpose.msra.mxu0 0.0
        %2901 = vmatprep.subr.mxu0 0.0
        %2902 = vmatpush2.xpose.msra.mxu0 0.0
        %2903 = vmatprep.subr.mxu0 0.0
        %2904 = vmatpush2.xpose.msra.mxu0 0.0
        %2905 = vmatprep.subr.mxu0 0.0
        %2906 = vmatpush2.xpose.msra.mxu0 0.0
        %2907 = vmatprep.mubr.f32.mxu0 0.0
        %2908 = vmatmul.mubr.f32.gmra.mxu0 %v2811
        %v2909 = vpop.f32.mrf.mxu0
        %v2910 = vadd.f32 0.0, %v2909
        %v2911 = vpop.f32.mrf.mxu0
        %2912 = vmatprep.mubr.f32.mxu0 0.0
        %2913 = vmatmul.mubr.f32.gmra.mxu0 %v2813
        %v2914 = vpop.f32.mrf.mxu0
        %v2915 = vadd.f32 0.0, %v2914
        %v2916 = vpop.f32.mrf.mxu0
        %2917 = vmatprep.mubr.f32.mxu0 0.0
        %2918 = vmatmul.mubr.f32.gmra.mxu0 %v2815
        %v2919 = vpop.f32.mrf.mxu0
        %v2920 = vadd.f32 0.0, %v2919
        %v2921 = vpop.f32.mrf.mxu0
        %2922 = vmatprep.mubr.f32.mxu0 0.0
        %2923 = vmatmul.mubr.f32.gmra.mxu0 %v2817
        %v2924 = vpop.f32.mrf.mxu0
        %v2925 = vadd.f32 0.0, %v2924
        %v2926 = vpop.f32.mrf.mxu0
        %2927 = vmatprep.mubr.f32.mxu0 0.0
        %2928 = vmatmul.mubr.f32.gmra.mxu0 %v2819
        %v2929 = vpop.f32.mrf.mxu0
        %v2930 = vadd.f32 0.0, %v2929
        %v2931 = vpop.f32.mrf.mxu0
        %2932 = vmatprep.mubr.f32.mxu0 0.0
        %2933 = vmatmul.mubr.f32.gmra.mxu0 %v2821
        %v2934 = vpop.f32.mrf.mxu0
        %v2935 = vadd.f32 0.0, %v2934
        %v2936 = vpop.f32.mrf.mxu0
        %2937 = vmatprep.mubr.f32.mxu0 0.0
        %2938 = vmatmul.mubr.f32.gmra.mxu0 %v2823
        %v2939 = vpop.f32.mrf.mxu0
        %v2940 = vadd.f32 0.0, %v2939
        %v2941 = vpop.f32.mrf.mxu0
        %2942 = vmatprep.mubr.f32.mxu0 0.0
        %2943 = vmatmul.mubr.f32.gmra.mxu0 %v2825
        %v2944 = vpop.f32.mrf.mxu0
        %v2945 = vadd.f32 0.0, %v2944
        %v2946 = vpop.f32.mrf.mxu0
        %2947 = vdwg.mxu0
        %2948 = vrot.lane.b32.xlu0 %v1193, 64
        %v2949 = vpop.permute.xlu0 %2948
        %2950 = vrot.lane.b32.xlu0 %v1194, 64
        %v2951 = vpop.permute.xlu0 %2950
        %2952 = vrot.lane.b32.xlu0 %v1195, 64
        %v2953 = vpop.permute.xlu0 %2952
        %2954 = vrot.lane.b32.xlu0 %v1196, 64
        %v2955 = vpop.permute.xlu0 %2954
        %2956 = vrot.lane.b32.xlu0 %v1197, 64
        %v2957 = vpop.permute.xlu0 %2956
        %2958 = vrot.lane.b32.xlu0 %v1198, 64
        %v2959 = vpop.permute.xlu0 %2958
        %2960 = vrot.lane.b32.xlu0 %v1199, 64
        %v2961 = vpop.permute.xlu0 %2960
        %2962 = vrot.lane.b32.xlu0 %v1200, 64
        %v2963 = vpop.permute.xlu0 %2962
        %2964 = vrot.lane.b32.xlu0 %v996, 64
        %v2965 = vpop.permute.xlu0 %2964
        %2966 = vrot.lane.b32.xlu0 %v1002, 64
        %v2967 = vpop.permute.xlu0 %2966
        %2968 = vrot.lane.b32.xlu0 %v1008, 64
        %v2969 = vpop.permute.xlu0 %2968
        %2970 = vrot.lane.b32.xlu0 %v1014, 64
        %v2971 = vpop.permute.xlu0 %2970
        %2972 = vrot.lane.b32.xlu0 %v1020, 64
        %v2973 = vpop.permute.xlu0 %2972
        %2974 = vrot.lane.b32.xlu0 %v1026, 64
        %v2975 = vpop.permute.xlu0 %2974
        %2976 = vrot.lane.b32.xlu0 %v1032, 64
        %v2977 = vpop.permute.xlu0 %2976
        %2978 = vrot.lane.b32.xlu0 %v1038, 64
        %v2979 = vpop.permute.xlu0 %2978
        %v2980 = vsel %vm1201, %v2949, 0
        %v2982 = vsel %vm1201, %v2951, 0
        %v2984 = vsel %vm1201, %v2953, 0
        %v2986 = vsel %vm1201, %v2955, 0
        %v2988 = vsel %vm1201, %v2957, 0
        %v2990 = vsel %vm1201, %v2959, 0
        %v2992 = vsel %vm1201, %v2961, 0
        %v2994 = vsel %vm1201, %v2963, 0
        %v2996 = vsel %vm1201, %v2965, 0
        %v2998 = vsel %vm1201, %v2967, 0
        %v3000 = vsel %vm1201, %v2969, 0
        %v3002 = vsel %vm1201, %v2971, 0
        %v3004 = vsel %vm1201, %v2973, 0
        %v3006 = vsel %vm1201, %v2975, 0
        %v3008 = vsel %vm1201, %v2977, 0
        %v3010 = vsel %vm1201, %v2979, 0
        %3012 = vmatprep.subr.mxu0 0.0
        %3013 = vmatpush1.xpose.msra.mxu0 0.0
        %3014 = vmatprep.subr.mxu0 0.0
        %3015 = vmatpush1.xpose.msra.mxu0 0.0
        %3016 = vmatprep.subr.mxu0 0.0
        %3017 = vmatpush1.xpose.msra.mxu0 0.0
        %3018 = vmatprep.subr.mxu0 0.0
        %3019 = vmatpush1.xpose.msra.mxu0 0.0
        %3020 = vmatprep.subr.mxu0 0.0
        %3021 = vmatpush1.xpose.msra.mxu0 0.0
        %3022 = vmatprep.subr.mxu0 0.0
        %3023 = vmatpush1.xpose.msra.mxu0 0.0
        %3024 = vmatprep.subr.mxu0 0.0
        %3025 = vmatpush1.xpose.msra.mxu0 0.0
        %3026 = vmatprep.subr.mxu0 0.0
        %3027 = vmatpush1.xpose.msra.mxu0 0.0
        %3028 = vmatprep.subr.mxu0 0.0
        %3029 = vmatpush1.xpose.msra.mxu0 %v3010
        %3030 = vmatprep.subr.mxu0 0.0
        %3031 = vmatpush1.xpose.msra.mxu0 %v3008
        %3032 = vmatprep.subr.mxu0 0.0
        %3033 = vmatpush1.xpose.msra.mxu0 %v3006
        %3034 = vmatprep.subr.mxu0 0.0
        %3035 = vmatpush1.xpose.msra.mxu0 %v3004
        %3036 = vmatprep.subr.mxu0 0.0
        %3037 = vmatpush1.xpose.msra.mxu0 %v3002
        %3038 = vmatprep.subr.mxu0 0.0
        %3039 = vmatpush1.xpose.msra.mxu0 %v3000
        %3040 = vmatprep.subr.mxu0 0.0
        %3041 = vmatpush1.xpose.msra.mxu0 %v2998
        %3042 = vmatprep.subr.mxu0 0.0
        %3043 = vmatpush1.xpose.msra.mxu0 %v2996
        %3044 = vmatprep.subr.mxu0 0.0
        %3045 = vmatpush2.xpose.msra.mxu0 0.0
        %3046 = vmatprep.subr.mxu0 0.0
        %3047 = vmatpush2.xpose.msra.mxu0 0.0
        %3048 = vmatprep.subr.mxu0 0.0
        %3049 = vmatpush2.xpose.msra.mxu0 0.0
        %3050 = vmatprep.subr.mxu0 0.0
        %3051 = vmatpush2.xpose.msra.mxu0 0.0
        %3052 = vmatprep.subr.mxu0 0.0
        %3053 = vmatpush2.xpose.msra.mxu0 0.0
        %3054 = vmatprep.subr.mxu0 0.0
        %3055 = vmatpush2.xpose.msra.mxu0 0.0
        %3056 = vmatprep.subr.mxu0 0.0
        %3057 = vmatpush2.xpose.msra.mxu0 0.0
        %3058 = vmatprep.subr.mxu0 0.0
        %3059 = vmatpush2.xpose.msra.mxu0 0.0
        %3060 = vmatprep.subr.mxu0 0.0
        %3061 = vmatpush2.xpose.msra.mxu0 0.0
        %3062 = vmatprep.subr.mxu0 0.0
        %3063 = vmatpush2.xpose.msra.mxu0 0.0
        %3064 = vmatprep.subr.mxu0 0.0
        %3065 = vmatpush2.xpose.msra.mxu0 0.0
        %3066 = vmatprep.subr.mxu0 0.0
        %3067 = vmatpush2.xpose.msra.mxu0 0.0
        %3068 = vmatprep.subr.mxu0 0.0
        %3069 = vmatpush2.xpose.msra.mxu0 0.0
        %3070 = vmatprep.subr.mxu0 0.0
        %3071 = vmatpush2.xpose.msra.mxu0 0.0
        %3072 = vmatprep.subr.mxu0 0.0
        %3073 = vmatpush2.xpose.msra.mxu0 0.0
        %3074 = vmatprep.subr.mxu0 0.0
        %3075 = vmatpush2.xpose.msra.mxu0 0.0
        %3076 = vmatprep.mubr.f32.mxu0 0.0
        %3077 = vmatmul.mubr.f32.gmra.mxu0 %v2980
        %v3078 = vpop.f32.mrf.mxu0
        %v3079 = vadd.f32 0.0, %v3078
        %v3080 = vpop.f32.mrf.mxu0
        %3081 = vmatprep.mubr.f32.mxu0 0.0
        %3082 = vmatmul.mubr.f32.gmra.mxu0 %v2982
        %v3083 = vpop.f32.mrf.mxu0
        %v3084 = vadd.f32 0.0, %v3083
        %v3085 = vpop.f32.mrf.mxu0
        %3086 = vmatprep.mubr.f32.mxu0 0.0
        %3087 = vmatmul.mubr.f32.gmra.mxu0 %v2984
        %v3088 = vpop.f32.mrf.mxu0
        %v3089 = vadd.f32 0.0, %v3088
        %v3090 = vpop.f32.mrf.mxu0
        %3091 = vmatprep.mubr.f32.mxu0 0.0
        %3092 = vmatmul.mubr.f32.gmra.mxu0 %v2986
        %v3093 = vpop.f32.mrf.mxu0
        %v3094 = vadd.f32 0.0, %v3093
        %v3095 = vpop.f32.mrf.mxu0
        %3096 = vmatprep.mubr.f32.mxu0 0.0
        %3097 = vmatmul.mubr.f32.gmra.mxu0 %v2988
        %v3098 = vpop.f32.mrf.mxu0
        %v3099 = vadd.f32 0.0, %v3098
        %v3100 = vpop.f32.mrf.mxu0
        %3101 = vmatprep.mubr.f32.mxu0 0.0
        %3102 = vmatmul.mubr.f32.gmra.mxu0 %v2990
        %v3103 = vpop.f32.mrf.mxu0
        %v3104 = vadd.f32 0.0, %v3103
        %v3105 = vpop.f32.mrf.mxu0
        %3106 = vmatprep.mubr.f32.mxu0 0.0
        %3107 = vmatmul.mubr.f32.gmra.mxu0 %v2992
        %v3108 = vpop.f32.mrf.mxu0
        %v3109 = vadd.f32 0.0, %v3108
        %v3110 = vpop.f32.mrf.mxu0
        %3111 = vmatprep.mubr.f32.mxu0 0.0
        %3112 = vmatmul.mubr.f32.gmra.mxu0 %v2994
        %v3113 = vpop.f32.mrf.mxu0
        %v3114 = vadd.f32 0.0, %v3113
        %v3115 = vpop.f32.mrf.mxu0
        %3116 = vdwg.mxu0
        %v3117 = vsel %vm1508, %v2910, -inf
        %3118 = vmax.xlane.f32.xlu0 %v3117
        %v3119 = vpop.xlane.xlu0 %3118
        %v3120 = vsel %vm1508, %v2915, -inf
        %3121 = vmax.xlane.f32.xlu0 %v3120
        %v3122 = vpop.xlane.xlu0 %3121
        %v3123 = vsel %vm1508, %v2920, -inf
        %3124 = vmax.xlane.f32.xlu0 %v3123
        %v3125 = vpop.xlane.xlu0 %3124
        %v3126 = vsel %vm1508, %v2925, -inf
        %3127 = vmax.xlane.f32.xlu0 %v3126
        %v3128 = vpop.xlane.xlu0 %3127
        %v3129 = vsel %vm1508, %v2930, -inf
        %3130 = vmax.xlane.f32.xlu0 %v3129
        %v3131 = vpop.xlane.xlu0 %3130
        %v3132 = vsel %vm1508, %v2935, -inf
        %3133 = vmax.xlane.f32.xlu0 %v3132
        %v3134 = vpop.xlane.xlu0 %3133
        %v3135 = vsel %vm1508, %v2940, -inf
        %3136 = vmax.xlane.f32.xlu0 %v3135
        %v3137 = vpop.xlane.xlu0 %3136
        %v3138 = vsel %vm1508, %v2945, -inf
        %3139 = vmax.xlane.f32.xlu0 %v3138
        %v3140 = vpop.xlane.xlu0 %3139
        %v3141 = vsel %vm1508, %v3079, -inf
        %3142 = vmax.xlane.f32.xlu0 %v3141
        %v3143 = vpop.xlane.xlu0 %3142
        %v3144 = vsel %vm1508, %v3084, -inf
        %3145 = vmax.xlane.f32.xlu0 %v3144
        %v3146 = vpop.xlane.xlu0 %3145
        %v3147 = vsel %vm1508, %v3089, -inf
        %3148 = vmax.xlane.f32.xlu0 %v3147
        %v3149 = vpop.xlane.xlu0 %3148
        %v3150 = vsel %vm1508, %v3094, -inf
        %3151 = vmax.xlane.f32.xlu0 %v3150
        %v3152 = vpop.xlane.xlu0 %3151
        %v3153 = vsel %vm1508, %v3099, -inf
        %3154 = vmax.xlane.f32.xlu0 %v3153
        %v3155 = vpop.xlane.xlu0 %3154
        %v3156 = vsel %vm1508, %v3104, -inf
        %3157 = vmax.xlane.f32.xlu0 %v3156
        %v3158 = vpop.xlane.xlu0 %3157
        %v3159 = vsel %vm1508, %v3109, -inf
        %3160 = vmax.xlane.f32.xlu0 %v3159
        %v3161 = vpop.xlane.xlu0 %3160
        %v3162 = vsel %vm1508, %v3114, -inf
        %3163 = vmax.xlane.f32.xlu0 %v3162
        %v3164 = vpop.xlane.xlu0 %3163
        %v3165 = vsub.f32 %v2910, %v3119
        %v3166 = vsub.f32 %v2915, %v3122
        %v3167 = vsub.f32 %v2920, %v3125
        %v3168 = vsub.f32 %v2925, %v3128
        %v3169 = vsub.f32 %v2930, %v3131
        %v3170 = vsub.f32 %v2935, %v3134
        %v3171 = vsub.f32 %v2940, %v3137
        %v3172 = vsub.f32 %v2945, %v3140
        %v3173 = vsub.f32 %v3079, %v3143
        %v3174 = vsub.f32 %v3084, %v3146
        %v3175 = vsub.f32 %v3089, %v3149
        %v3176 = vsub.f32 %v3094, %v3152
        %v3177 = vsub.f32 %v3099, %v3155
        %v3178 = vsub.f32 %v3104, %v3158
        %v3179 = vsub.f32 %v3109, %v3161
        %v3180 = vsub.f32 %v3114, %v3164
        %v3181 = vmul.f32 %v3165, 1.442695
        %v3182 = vpow.pop %v3181
        %v3183 = vmul.f32 %v3166, 1.442695
        %v3184 = vpow.pop %v3183
        %v3185 = vmul.f32 %v3167, 1.442695
        %v3186 = vpow.pop %v3185
        %v3187 = vmul.f32 %v3168, 1.442695
        %v3188 = vpow.pop %v3187
        %v3189 = vmul.f32 %v3169, 1.442695
        %v3190 = vpow.pop %v3189
        %v3191 = vmul.f32 %v3170, 1.442695
        %v3192 = vpow.pop %v3191
        %v3193 = vmul.f32 %v3171, 1.442695
        %v3194 = vpow.pop %v3193
        %v3195 = vmul.f32 %v3172, 1.442695
        %v3196 = vpow.pop %v3195
        %v3197 = vmul.f32 %v3173, 1.442695
        %v3198 = vpow.pop %v3197
        %v3199 = vmul.f32 %v3174, 1.442695
        %v3200 = vpow.pop %v3199
        %v3201 = vmul.f32 %v3175, 1.442695
        %v3202 = vpow.pop %v3201
        %v3203 = vmul.f32 %v3176, 1.442695
        %v3204 = vpow.pop %v3203
        %v3205 = vmul.f32 %v3177, 1.442695
        %v3206 = vpow.pop %v3205
        %v3207 = vmul.f32 %v3178, 1.442695
        %v3208 = vpow.pop %v3207
        %v3209 = vmul.f32 %v3179, 1.442695
        %v3210 = vpow.pop %v3209
        %v3211 = vmul.f32 %v3180, 1.442695
        %v3212 = vpow.pop %v3211
        %v3213 = vsel %vm1508, %v3182, 0.0
        %3214 = vadd.xlane.f32.xlu0 %v3213
        %v3215 = vpop.xlane.xlu0 %3214
        %v3216 = vsel %vm1508, %v3184, 0.0
        %3217 = vadd.xlane.f32.xlu0 %v3216
        %v3218 = vpop.xlane.xlu0 %3217
        %v3219 = vsel %vm1508, %v3186, 0.0
        %3220 = vadd.xlane.f32.xlu0 %v3219
        %v3221 = vpop.xlane.xlu0 %3220
        %v3222 = vsel %vm1508, %v3188, 0.0
        %3223 = vadd.xlane.f32.xlu0 %v3222
        %v3224 = vpop.xlane.xlu0 %3223
        %v3225 = vsel %vm1508, %v3190, 0.0
        %3226 = vadd.xlane.f32.xlu0 %v3225
        %v3227 = vpop.xlane.xlu0 %3226
        %v3228 = vsel %vm1508, %v3192, 0.0
        %3229 = vadd.xlane.f32.xlu0 %v3228
        %v3230 = vpop.xlane.xlu0 %3229
        %v3231 = vsel %vm1508, %v3194, 0.0
        %3232 = vadd.xlane.f32.xlu0 %v3231
        %v3233 = vpop.xlane.xlu0 %3232
        %v3234 = vsel %vm1508, %v3196, 0.0
        %3235 = vadd.xlane.f32.xlu0 %v3234
        %v3236 = vpop.xlane.xlu0 %3235
        %v3237 = vsel %vm1508, %v3198, 0.0
        %3238 = vadd.xlane.f32.xlu0 %v3237
        %v3239 = vpop.xlane.xlu0 %3238
        %v3240 = vsel %vm1508, %v3200, 0.0
        %3241 = vadd.xlane.f32.xlu0 %v3240
        %v3242 = vpop.xlane.xlu0 %3241
        %v3243 = vsel %vm1508, %v3202, 0.0
        %3244 = vadd.xlane.f32.xlu0 %v3243
        %v3245 = vpop.xlane.xlu0 %3244
        %v3246 = vsel %vm1508, %v3204, 0.0
        %3247 = vadd.xlane.f32.xlu0 %v3246
        %v3248 = vpop.xlane.xlu0 %3247
        %v3249 = vsel %vm1508, %v3206, 0.0
        %3250 = vadd.xlane.f32.xlu0 %v3249
        %v3251 = vpop.xlane.xlu0 %3250
        %v3252 = vsel %vm1508, %v3208, 0.0
        %3253 = vadd.xlane.f32.xlu0 %v3252
        %v3254 = vpop.xlane.xlu0 %3253
        %v3255 = vsel %vm1508, %v3210, 0.0
        %3256 = vadd.xlane.f32.xlu0 %v3255
        %v3257 = vpop.xlane.xlu0 %3256
        %v3258 = vsel %vm1508, %v3212, 0.0
        %3259 = vadd.xlane.f32.xlu0 %v3258
        %v3260 = vpop.xlane.xlu0 %3259
        %v3261 = vrcp.pop %v3215
        %v3262 = vrcp.pop %v3218
        %v3263 = vrcp.pop %v3221
        %v3264 = vrcp.pop %v3224
        %v3265 = vrcp.pop %v3227
        %v3266 = vrcp.pop %v3230
        %v3267 = vrcp.pop %v3233
        %v3268 = vrcp.pop %v3236
        %v3269 = vrcp.pop %v3239
        %v3270 = vrcp.pop %v3242
        %v3271 = vrcp.pop %v3245
        %v3272 = vrcp.pop %v3248
        %v3273 = vrcp.pop %v3251
        %v3274 = vrcp.pop %v3254
        %v3275 = vrcp.pop %v3257
        %v3276 = vrcp.pop %v3260
        %v3277 = vmul.f32 %v3182, %v3261
        %v3278 = vmul.f32 %v3184, %v3262
        %v3279 = vmul.f32 %v3186, %v3263
        %v3280 = vmul.f32 %v3188, %v3264
        %v3281 = vmul.f32 %v3190, %v3265
        %v3282 = vmul.f32 %v3192, %v3266
        %v3283 = vmul.f32 %v3194, %v3267
        %v3284 = vmul.f32 %v3196, %v3268
        %v3285 = vmul.f32 %v3198, %v3269
        %v3286 = vmul.f32 %v3200, %v3270
        %v3287 = vmul.f32 %v3202, %v3271
        %v3288 = vmul.f32 %v3204, %v3272
        %v3289 = vmul.f32 %v3206, %v3273
        %v3290 = vmul.f32 %v3208, %v3274
        %v3291 = vmul.f32 %v3210, %v3275
        %v3292 = vmul.f32 %v3212, %v3276
        %3293 = vrot.lane.b32.xlu0 %v1107, 64
        %v3294 = vpop.permute.xlu0 %3293
        %3295 = vrot.lane.b32.xlu0 %v1112, 64
        %v3296 = vpop.permute.xlu0 %3295
        %3297 = vrot.lane.b32.xlu0 %v1117, 64
        %v3298 = vpop.permute.xlu0 %3297
        %3299 = vrot.lane.b32.xlu0 %v1122, 64
        %v3300 = vpop.permute.xlu0 %3299
        %3301 = vrot.lane.b32.xlu0 %v1127, 64
        %v3302 = vpop.permute.xlu0 %3301
        %3303 = vrot.lane.b32.xlu0 %v1132, 64
        %v3304 = vpop.permute.xlu0 %3303
        %3305 = vrot.lane.b32.xlu0 %v1137, 64
        %v3306 = vpop.permute.xlu0 %3305
        %3307 = vrot.lane.b32.xlu0 %v1142, 64
        %v3308 = vpop.permute.xlu0 %3307
        %v3318 = vsel %vm1508, %v3277, 0
        %v3321 = vsel %vm1508, %v3278, 0
        %v3324 = vsel %vm1508, %v3279, 0
        %v3327 = vsel %vm1508, %v3280, 0
        %v3330 = vsel %vm1508, %v3281, 0
        %v3333 = vsel %vm1508, %v3282, 0
        %v3336 = vsel %vm1508, %v3283, 0
        %v3339 = vsel %vm1508, %v3284, 0
        %3341 = vmatprep.subr.mxu0 0.0
        %3342 = vmatpush1.msra.mxu0 0.0
        %3343 = vmatprep.subr.mxu0 0.0
        %3344 = vmatpush1.msra.mxu0 0.0
        %3345 = vmatprep.subr.mxu0 0.0
        %3346 = vmatpush1.msra.mxu0 0.0
        %3347 = vmatprep.subr.mxu0 0.0
        %3348 = vmatpush1.msra.mxu0 0.0
        %3349 = vmatprep.subr.mxu0 0.0
        %3350 = vmatpush1.msra.mxu0 0.0
        %3351 = vmatprep.subr.mxu0 0.0
        %3352 = vmatpush1.msra.mxu0 0.0
        %3353 = vmatprep.subr.mxu0 0.0
        %3354 = vmatpush1.msra.mxu0 0.0
        %3355 = vmatprep.subr.mxu0 0.0
        %3356 = vmatpush1.msra.mxu0 0.0
        %3357 = vmatprep.subr.mxu0 0.0
        %3358 = vmatpush1.msra.mxu0 %v3308
        %3359 = vmatprep.subr.mxu0 0.0
        %3360 = vmatpush1.msra.mxu0 %v3306
        %3361 = vmatprep.subr.mxu0 0.0
        %3362 = vmatpush1.msra.mxu0 %v3304
        %3363 = vmatprep.subr.mxu0 0.0
        %3364 = vmatpush1.msra.mxu0 %v3302
        %3365 = vmatprep.subr.mxu0 0.0
        %3366 = vmatpush1.msra.mxu0 %v3300
        %3367 = vmatprep.subr.mxu0 0.0
        %3368 = vmatpush1.msra.mxu0 %v3298
        %3369 = vmatprep.subr.mxu0 0.0
        %3370 = vmatpush1.msra.mxu0 %v3296
        %3371 = vmatprep.subr.mxu0 0.0
        %3372 = vmatpush1.msra.mxu0 %v3294
        %3373 = vmatprep.subr.mxu0 0.0
        %3374 = vmatpush2.msra.mxu0 0.0
        %3375 = vmatprep.subr.mxu0 0.0
        %3376 = vmatpush2.msra.mxu0 0.0
        %3377 = vmatprep.subr.mxu0 0.0
        %3378 = vmatpush2.msra.mxu0 0.0
        %3379 = vmatprep.subr.mxu0 0.0
        %3380 = vmatpush2.msra.mxu0 0.0
        %3381 = vmatprep.subr.mxu0 0.0
        %3382 = vmatpush2.msra.mxu0 0.0
        %3383 = vmatprep.subr.mxu0 0.0
        %3384 = vmatpush2.msra.mxu0 0.0
        %3385 = vmatprep.subr.mxu0 0.0
        %3386 = vmatpush2.msra.mxu0 0.0
        %3387 = vmatprep.subr.mxu0 0.0
        %3388 = vmatpush2.msra.mxu0 0.0
        %3389 = vmatprep.subr.mxu0 0.0
        %3390 = vmatpush2.msra.mxu0 0.0
        %3391 = vmatprep.subr.mxu0 0.0
        %3392 = vmatpush2.msra.mxu0 0.0
        %3393 = vmatprep.subr.mxu0 0.0
        %3394 = vmatpush2.msra.mxu0 0.0
        %3395 = vmatprep.subr.mxu0 0.0
        %3396 = vmatpush2.msra.mxu0 0.0
        %3397 = vmatprep.subr.mxu0 0.0
        %3398 = vmatpush2.msra.mxu0 0.0
        %3399 = vmatprep.subr.mxu0 0.0
        %3400 = vmatpush2.msra.mxu0 0.0
        %3401 = vmatprep.subr.mxu0 0.0
        %3402 = vmatpush2.msra.mxu0 0.0
        %3403 = vmatprep.subr.mxu0 0.0
        %3404 = vmatpush2.msra.mxu0 0.0
        %3405 = vmatprep.mubr.f32.mxu0 0.0
        %3406 = vmatmul.mubr.f32.gmra.mxu0 %v3318
        %v3407 = vpop.f32.mrf.mxu0
        %v3408 = vadd.f32 0.0, %v3407
        %v3409 = vpop.f32.mrf.mxu0
        %3410 = vmatprep.mubr.f32.mxu0 0.0
        %3411 = vmatmul.mubr.f32.gmra.mxu0 %v3321
        %v3412 = vpop.f32.mrf.mxu0
        %v3413 = vadd.f32 0.0, %v3412
        %v3414 = vpop.f32.mrf.mxu0
        %3415 = vmatprep.mubr.f32.mxu0 0.0
        %3416 = vmatmul.mubr.f32.gmra.mxu0 %v3324
        %v3417 = vpop.f32.mrf.mxu0
        %v3418 = vadd.f32 0.0, %v3417
        %v3419 = vpop.f32.mrf.mxu0
        %3420 = vmatprep.mubr.f32.mxu0 0.0
        %3421 = vmatmul.mubr.f32.gmra.mxu0 %v3327
        %v3422 = vpop.f32.mrf.mxu0
        %v3423 = vadd.f32 0.0, %v3422
        %v3424 = vpop.f32.mrf.mxu0
        %3425 = vmatprep.mubr.f32.mxu0 0.0
        %3426 = vmatmul.mubr.f32.gmra.mxu0 %v3330
        %v3427 = vpop.f32.mrf.mxu0
        %v3428 = vadd.f32 0.0, %v3427
        %v3429 = vpop.f32.mrf.mxu0
        %3430 = vmatprep.mubr.f32.mxu0 0.0
        %3431 = vmatmul.mubr.f32.gmra.mxu0 %v3333
        %v3432 = vpop.f32.mrf.mxu0
        %v3433 = vadd.f32 0.0, %v3432
        %v3434 = vpop.f32.mrf.mxu0
        %3435 = vmatprep.mubr.f32.mxu0 0.0
        %3436 = vmatmul.mubr.f32.gmra.mxu0 %v3336
        %v3437 = vpop.f32.mrf.mxu0
        %v3438 = vadd.f32 0.0, %v3437
        %v3439 = vpop.f32.mrf.mxu0
        %3440 = vmatprep.mubr.f32.mxu0 0.0
        %3441 = vmatmul.mubr.f32.gmra.mxu0 %v3339
        %v3442 = vpop.f32.mrf.mxu0
        %v3443 = vadd.f32 0.0, %v3442
        %v3444 = vpop.f32.mrf.mxu0
        %3445 = vdwg.mxu0
        %3446 = vrot.lane.b32.xlu0 %v1147, 64
        %v3447 = vpop.permute.xlu0 %3446
        %3448 = vrot.lane.b32.xlu0 %v1152, 64
        %v3449 = vpop.permute.xlu0 %3448
        %3450 = vrot.lane.b32.xlu0 %v1157, 64
        %v3451 = vpop.permute.xlu0 %3450
        %3452 = vrot.lane.b32.xlu0 %v1162, 64
        %v3453 = vpop.permute.xlu0 %3452
        %3454 = vrot.lane.b32.xlu0 %v1167, 64
        %v3455 = vpop.permute.xlu0 %3454
        %3456 = vrot.lane.b32.xlu0 %v1172, 64
        %v3457 = vpop.permute.xlu0 %3456
        %3458 = vrot.lane.b32.xlu0 %v1177, 64
        %v3459 = vpop.permute.xlu0 %3458
        %3460 = vrot.lane.b32.xlu0 %v1182, 64
        %v3461 = vpop.permute.xlu0 %3460
        %v3471 = vsel %vm1508, %v3285, 0
        %v3474 = vsel %vm1508, %v3286, 0
        %v3477 = vsel %vm1508, %v3287, 0
        %v3480 = vsel %vm1508, %v3288, 0
        %v3483 = vsel %vm1508, %v3289, 0
        %v3486 = vsel %vm1508, %v3290, 0
        %v3489 = vsel %vm1508, %v3291, 0
        %v3492 = vsel %vm1508, %v3292, 0
        %3494 = vmatprep.subr.mxu0 0.0
        %3495 = vmatpush1.msra.mxu0 0.0
        %3496 = vmatprep.subr.mxu0 0.0
        %3497 = vmatpush1.msra.mxu0 0.0
        %3498 = vmatprep.subr.mxu0 0.0
        %3499 = vmatpush1.msra.mxu0 0.0
        %3500 = vmatprep.subr.mxu0 0.0
        %3501 = vmatpush1.msra.mxu0 0.0
        %3502 = vmatprep.subr.mxu0 0.0
        %3503 = vmatpush1.msra.mxu0 0.0
        %3504 = vmatprep.subr.mxu0 0.0
        %3505 = vmatpush1.msra.mxu0 0.0
        %3506 = vmatprep.subr.mxu0 0.0
        %3507 = vmatpush1.msra.mxu0 0.0
        %3508 = vmatprep.subr.mxu0 0.0
        %3509 = vmatpush1.msra.mxu0 0.0
        %3510 = vmatprep.subr.mxu0 0.0
        %3511 = vmatpush1.msra.mxu0 %v3461
        %3512 = vmatprep.subr.mxu0 0.0
        %3513 = vmatpush1.msra.mxu0 %v3459
        %3514 = vmatprep.subr.mxu0 0.0
        %3515 = vmatpush1.msra.mxu0 %v3457
        %3516 = vmatprep.subr.mxu0 0.0
        %3517 = vmatpush1.msra.mxu0 %v3455
        %3518 = vmatprep.subr.mxu0 0.0
        %3519 = vmatpush1.msra.mxu0 %v3453
        %3520 = vmatprep.subr.mxu0 0.0
        %3521 = vmatpush1.msra.mxu0 %v3451
        %3522 = vmatprep.subr.mxu0 0.0
        %3523 = vmatpush1.msra.mxu0 %v3449
        %3524 = vmatprep.subr.mxu0 0.0
        %3525 = vmatpush1.msra.mxu0 %v3447
        %3526 = vmatprep.subr.mxu0 0.0
        %3527 = vmatpush2.msra.mxu0 0.0
        %3528 = vmatprep.subr.mxu0 0.0
        %3529 = vmatpush2.msra.mxu0 0.0
        %3530 = vmatprep.subr.mxu0 0.0
        %3531 = vmatpush2.msra.mxu0 0.0
        %3532 = vmatprep.subr.mxu0 0.0
        %3533 = vmatpush2.msra.mxu0 0.0
        %3534 = vmatprep.subr.mxu0 0.0
        %3535 = vmatpush2.msra.mxu0 0.0
        %3536 = vmatprep.subr.mxu0 0.0
        %3537 = vmatpush2.msra.mxu0 0.0
        %3538 = vmatprep.subr.mxu0 0.0
        %3539 = vmatpush2.msra.mxu0 0.0
        %3540 = vmatprep.subr.mxu0 0.0
        %3541 = vmatpush2.msra.mxu0 0.0
        %3542 = vmatprep.subr.mxu0 0.0
        %3543 = vmatpush2.msra.mxu0 0.0
        %3544 = vmatprep.subr.mxu0 0.0
        %3545 = vmatpush2.msra.mxu0 0.0
        %3546 = vmatprep.subr.mxu0 0.0
        %3547 = vmatpush2.msra.mxu0 0.0
        %3548 = vmatprep.subr.mxu0 0.0
        %3549 = vmatpush2.msra.mxu0 0.0
        %3550 = vmatprep.subr.mxu0 0.0
        %3551 = vmatpush2.msra.mxu0 0.0
        %3552 = vmatprep.subr.mxu0 0.0
        %3553 = vmatpush2.msra.mxu0 0.0
        %3554 = vmatprep.subr.mxu0 0.0
        %3555 = vmatpush2.msra.mxu0 0.0
        %3556 = vmatprep.subr.mxu0 0.0
        %3557 = vmatpush2.msra.mxu0 0.0
        %3558 = vmatprep.mubr.f32.mxu0 0.0
        %3559 = vmatmul.mubr.f32.gmra.mxu0 %v3471
        %v3560 = vpop.f32.mrf.mxu0
        %v3561 = vadd.f32 0.0, %v3560
        %v3562 = vpop.f32.mrf.mxu0
        %3563 = vmatprep.mubr.f32.mxu0 0.0
        %3564 = vmatmul.mubr.f32.gmra.mxu0 %v3474
        %v3565 = vpop.f32.mrf.mxu0
        %v3566 = vadd.f32 0.0, %v3565
        %v3567 = vpop.f32.mrf.mxu0
        %3568 = vmatprep.mubr.f32.mxu0 0.0
        %3569 = vmatmul.mubr.f32.gmra.mxu0 %v3477
        %v3570 = vpop.f32.mrf.mxu0
        %v3571 = vadd.f32 0.0, %v3570
        %v3572 = vpop.f32.mrf.mxu0
        %3573 = vmatprep.mubr.f32.mxu0 0.0
        %3574 = vmatmul.mubr.f32.gmra.mxu0 %v3480
        %v3575 = vpop.f32.mrf.mxu0
        %v3576 = vadd.f32 0.0, %v3575
        %v3577 = vpop.f32.mrf.mxu0
        %3578 = vmatprep.mubr.f32.mxu0 0.0
        %3579 = vmatmul.mubr.f32.gmra.mxu0 %v3483
        %v3580 = vpop.f32.mrf.mxu0
        %v3581 = vadd.f32 0.0, %v3580
        %v3582 = vpop.f32.mrf.mxu0
        %3583 = vmatprep.mubr.f32.mxu0 0.0
        %3584 = vmatmul.mubr.f32.gmra.mxu0 %v3486
        %v3585 = vpop.f32.mrf.mxu0
        %v3586 = vadd.f32 0.0, %v3585
        %v3587 = vpop.f32.mrf.mxu0
        %3588 = vmatprep.mubr.f32.mxu0 0.0
        %3589 = vmatmul.mubr.f32.gmra.mxu0 %v3489
        %v3590 = vpop.f32.mrf.mxu0
        %v3591 = vadd.f32 0.0, %v3590
        %v3592 = vpop.f32.mrf.mxu0
        %3593 = vmatprep.mubr.f32.mxu0 0.0
        %3594 = vmatmul.mubr.f32.gmra.mxu0 %v3492
        %v3595 = vpop.f32.mrf.mxu0
        %v3596 = vadd.f32 0.0, %v3595
        %v3597 = vpop.f32.mrf.mxu0
        %3598 = vdwg.mxu0
        %3599 = vrot.lane.b32.xlu0 %v1185, 32
        %v3600 = vpop.permute.xlu0 %3599
        %3601 = vrot.lane.b32.xlu0 %v1186, 32
        %v3602 = vpop.permute.xlu0 %3601
        %3603 = vrot.lane.b32.xlu0 %v1187, 32
        %v3604 = vpop.permute.xlu0 %3603
        %3605 = vrot.lane.b32.xlu0 %v1188, 32
        %v3606 = vpop.permute.xlu0 %3605
        %3607 = vrot.lane.b32.xlu0 %v1189, 32
        %v3608 = vpop.permute.xlu0 %3607
        %3609 = vrot.lane.b32.xlu0 %v1190, 32
        %v3610 = vpop.permute.xlu0 %3609
        %3611 = vrot.lane.b32.xlu0 %v1191, 32
        %v3612 = vpop.permute.xlu0 %3611
        %3613 = vrot.lane.b32.xlu0 %v1192, 32
        %v3614 = vpop.permute.xlu0 %3613
        %3615 = vrot.lane.b32.xlu0 %v948, 32
        %v3616 = vpop.permute.xlu0 %3615
        %3617 = vrot.lane.b32.xlu0 %v954, 32
        %v3618 = vpop.permute.xlu0 %3617
        %3619 = vrot.lane.b32.xlu0 %v960, 32
        %v3620 = vpop.permute.xlu0 %3619
        %3621 = vrot.lane.b32.xlu0 %v966, 32
        %v3622 = vpop.permute.xlu0 %3621
        %3623 = vrot.lane.b32.xlu0 %v972, 32
        %v3624 = vpop.permute.xlu0 %3623
        %3625 = vrot.lane.b32.xlu0 %v978, 32
        %v3626 = vpop.permute.xlu0 %3625
        %3627 = vrot.lane.b32.xlu0 %v984, 32
        %v3628 = vpop.permute.xlu0 %3627
        %3629 = vrot.lane.b32.xlu0 %v990, 32
        %v3630 = vpop.permute.xlu0 %3629
        %v3631 = vsel %vm1201, %v3600, 0
        %v3633 = vsel %vm1201, %v3602, 0
        %v3635 = vsel %vm1201, %v3604, 0
        %v3637 = vsel %vm1201, %v3606, 0
        %v3639 = vsel %vm1201, %v3608, 0
        %v3641 = vsel %vm1201, %v3610, 0
        %v3643 = vsel %vm1201, %v3612, 0
        %v3645 = vsel %vm1201, %v3614, 0
        %v3647 = vsel %vm1201, %v3616, 0
        %v3649 = vsel %vm1201, %v3618, 0
        %v3651 = vsel %vm1201, %v3620, 0
        %v3653 = vsel %vm1201, %v3622, 0
        %v3655 = vsel %vm1201, %v3624, 0
        %v3657 = vsel %vm1201, %v3626, 0
        %v3659 = vsel %vm1201, %v3628, 0
        %v3661 = vsel %vm1201, %v3630, 0
        %3663 = vmatprep.subr.mxu0 0.0
        %3664 = vmatpush1.xpose.msra.mxu0 0.0
        %3665 = vmatprep.subr.mxu0 0.0
        %3666 = vmatpush1.xpose.msra.mxu0 0.0
        %3667 = vmatprep.subr.mxu0 0.0
        %3668 = vmatpush1.xpose.msra.mxu0 0.0
        %3669 = vmatprep.subr.mxu0 0.0
        %3670 = vmatpush1.xpose.msra.mxu0 0.0
        %3671 = vmatprep.subr.mxu0 0.0
        %3672 = vmatpush1.xpose.msra.mxu0 0.0
        %3673 = vmatprep.subr.mxu0 0.0
        %3674 = vmatpush1.xpose.msra.mxu0 0.0
        %3675 = vmatprep.subr.mxu0 0.0
        %3676 = vmatpush1.xpose.msra.mxu0 0.0
        %3677 = vmatprep.subr.mxu0 0.0
        %3678 = vmatpush1.xpose.msra.mxu0 0.0
        %3679 = vmatprep.subr.mxu0 0.0
        %3680 = vmatpush1.xpose.msra.mxu0 %v3661
        %3681 = vmatprep.subr.mxu0 0.0
        %3682 = vmatpush1.xpose.msra.mxu0 %v3659
        %3683 = vmatprep.subr.mxu0 0.0
        %3684 = vmatpush1.xpose.msra.mxu0 %v3657
        %3685 = vmatprep.subr.mxu0 0.0
        %3686 = vmatpush1.xpose.msra.mxu0 %v3655
        %3687 = vmatprep.subr.mxu0 0.0
        %3688 = vmatpush1.xpose.msra.mxu0 %v3653
        %3689 = vmatprep.subr.mxu0 0.0
        %3690 = vmatpush1.xpose.msra.mxu0 %v3651
        %3691 = vmatprep.subr.mxu0 0.0
        %3692 = vmatpush1.xpose.msra.mxu0 %v3649
        %3693 = vmatprep.subr.mxu0 0.0
        %3694 = vmatpush1.xpose.msra.mxu0 %v3647
        %3695 = vmatprep.subr.mxu0 0.0
        %3696 = vmatpush2.xpose.msra.mxu0 0.0
        %3697 = vmatprep.subr.mxu0 0.0
        %3698 = vmatpush2.xpose.msra.mxu0 0.0
        %3699 = vmatprep.subr.mxu0 0.0
        %3700 = vmatpush2.xpose.msra.mxu0 0.0
        %3701 = vmatprep.subr.mxu0 0.0
        %3702 = vmatpush2.xpose.msra.mxu0 0.0
        %3703 = vmatprep.subr.mxu0 0.0
        %3704 = vmatpush2.xpose.msra.mxu0 0.0
        %3705 = vmatprep.subr.mxu0 0.0
        %3706 = vmatpush2.xpose.msra.mxu0 0.0
        %3707 = vmatprep.subr.mxu0 0.0
        %3708 = vmatpush2.xpose.msra.mxu0 0.0
        %3709 = vmatprep.subr.mxu0 0.0
        %3710 = vmatpush2.xpose.msra.mxu0 0.0
        %3711 = vmatprep.subr.mxu0 0.0
        %3712 = vmatpush2.xpose.msra.mxu0 0.0
        %3713 = vmatprep.subr.mxu0 0.0
        %3714 = vmatpush2.xpose.msra.mxu0 0.0
        %3715 = vmatprep.subr.mxu0 0.0
        %3716 = vmatpush2.xpose.msra.mxu0 0.0
        %3717 = vmatprep.subr.mxu0 0.0
        %3718 = vmatpush2.xpose.msra.mxu0 0.0
        %3719 = vmatprep.subr.mxu0 0.0
        %3720 = vmatpush2.xpose.msra.mxu0 0.0
        %3721 = vmatprep.subr.mxu0 0.0
        %3722 = vmatpush2.xpose.msra.mxu0 0.0
        %3723 = vmatprep.subr.mxu0 0.0
        %3724 = vmatpush2.xpose.msra.mxu0 0.0
        %3725 = vmatprep.subr.mxu0 0.0
        %3726 = vmatpush2.xpose.msra.mxu0 0.0
        %3727 = vmatprep.mubr.f32.mxu0 0.0
        %3728 = vmatmul.mubr.f32.gmra.mxu0 %v3631
        %v3729 = vpop.f32.mrf.mxu0
        %v3730 = vadd.f32 0.0, %v3729
        %v3731 = vpop.f32.mrf.mxu0
        %3732 = vmatprep.mubr.f32.mxu0 0.0
        %3733 = vmatmul.mubr.f32.gmra.mxu0 %v3633
        %v3734 = vpop.f32.mrf.mxu0
        %v3735 = vadd.f32 0.0, %v3734
        %v3736 = vpop.f32.mrf.mxu0
        %3737 = vmatprep.mubr.f32.mxu0 0.0
        %3738 = vmatmul.mubr.f32.gmra.mxu0 %v3635
        %v3739 = vpop.f32.mrf.mxu0
        %v3740 = vadd.f32 0.0, %v3739
        %v3741 = vpop.f32.mrf.mxu0
        %3742 = vmatprep.mubr.f32.mxu0 0.0
        %3743 = vmatmul.mubr.f32.gmra.mxu0 %v3637
        %v3744 = vpop.f32.mrf.mxu0
        %v3745 = vadd.f32 0.0, %v3744
        %v3746 = vpop.f32.mrf.mxu0
        %3747 = vmatprep.mubr.f32.mxu0 0.0
        %3748 = vmatmul.mubr.f32.gmra.mxu0 %v3639
        %v3749 = vpop.f32.mrf.mxu0
        %v3750 = vadd.f32 0.0, %v3749
        %v3751 = vpop.f32.mrf.mxu0
        %3752 = vmatprep.mubr.f32.mxu0 0.0
        %3753 = vmatmul.mubr.f32.gmra.mxu0 %v3641
        %v3754 = vpop.f32.mrf.mxu0
        %v3755 = vadd.f32 0.0, %v3754
        %v3756 = vpop.f32.mrf.mxu0
        %3757 = vmatprep.mubr.f32.mxu0 0.0
        %3758 = vmatmul.mubr.f32.gmra.mxu0 %v3643
        %v3759 = vpop.f32.mrf.mxu0
        %v3760 = vadd.f32 0.0, %v3759
        %v3761 = vpop.f32.mrf.mxu0
        %3762 = vmatprep.mubr.f32.mxu0 0.0
        %3763 = vmatmul.mubr.f32.gmra.mxu0 %v3645
        %v3764 = vpop.f32.mrf.mxu0
        %v3765 = vadd.f32 0.0, %v3764
        %v3766 = vpop.f32.mrf.mxu0
        %3767 = vdwg.mxu0
        %3768 = vrot.lane.b32.xlu0 %v1193, 32
        %v3769 = vpop.permute.xlu0 %3768
        %3770 = vrot.lane.b32.xlu0 %v1194, 32
        %v3771 = vpop.permute.xlu0 %3770
        %3772 = vrot.lane.b32.xlu0 %v1195, 32
        %v3773 = vpop.permute.xlu0 %3772
        %3774 = vrot.lane.b32.xlu0 %v1196, 32
        %v3775 = vpop.permute.xlu0 %3774
        %3776 = vrot.lane.b32.xlu0 %v1197, 32
        %v3777 = vpop.permute.xlu0 %3776
        %3778 = vrot.lane.b32.xlu0 %v1198, 32
        %v3779 = vpop.permute.xlu0 %3778
        %3780 = vrot.lane.b32.xlu0 %v1199, 32
        %v3781 = vpop.permute.xlu0 %3780
        %3782 = vrot.lane.b32.xlu0 %v1200, 32
        %v3783 = vpop.permute.xlu0 %3782
        %3784 = vrot.lane.b32.xlu0 %v996, 32
        %v3785 = vpop.permute.xlu0 %3784
        %3786 = vrot.lane.b32.xlu0 %v1002, 32
        %v3787 = vpop.permute.xlu0 %3786
        %3788 = vrot.lane.b32.xlu0 %v1008, 32
        %v3789 = vpop.permute.xlu0 %3788
        %3790 = vrot.lane.b32.xlu0 %v1014, 32
        %v3791 = vpop.permute.xlu0 %3790
        %3792 = vrot.lane.b32.xlu0 %v1020, 32
        %v3793 = vpop.permute.xlu0 %3792
        %3794 = vrot.lane.b32.xlu0 %v1026, 32
        %v3795 = vpop.permute.xlu0 %3794
        %3796 = vrot.lane.b32.xlu0 %v1032, 32
        %v3797 = vpop.permute.xlu0 %3796
        %3798 = vrot.lane.b32.xlu0 %v1038, 32
        %v3799 = vpop.permute.xlu0 %3798
        %v3800 = vsel %vm1201, %v3769, 0
        %v3802 = vsel %vm1201, %v3771, 0
        %v3804 = vsel %vm1201, %v3773, 0
        %v3806 = vsel %vm1201, %v3775, 0
        %v3808 = vsel %vm1201, %v3777, 0
        %v3810 = vsel %vm1201, %v3779, 0
        %v3812 = vsel %vm1201, %v3781, 0
        %v3814 = vsel %vm1201, %v3783, 0
        %v3816 = vsel %vm1201, %v3785, 0
        %v3818 = vsel %vm1201, %v3787, 0
        %v3820 = vsel %vm1201, %v3789, 0
        %v3822 = vsel %vm1201, %v3791, 0
        %v3824 = vsel %vm1201, %v3793, 0
        %v3826 = vsel %vm1201, %v3795, 0
        %v3828 = vsel %vm1201, %v3797, 0
        %v3830 = vsel %vm1201, %v3799, 0
        %3832 = vmatprep.subr.mxu0 0.0
        %3833 = vmatpush1.xpose.msra.mxu0 0.0
        %3834 = vmatprep.subr.mxu0 0.0
        %3835 = vmatpush1.xpose.msra.mxu0 0.0
        %3836 = vmatprep.subr.mxu0 0.0
        %3837 = vmatpush1.xpose.msra.mxu0 0.0
        %3838 = vmatprep.subr.mxu0 0.0
        %3839 = vmatpush1.xpose.msra.mxu0 0.0
        %3840 = vmatprep.subr.mxu0 0.0
        %3841 = vmatpush1.xpose.msra.mxu0 0.0
        %3842 = vmatprep.subr.mxu0 0.0
        %3843 = vmatpush1.xpose.msra.mxu0 0.0
        %3844 = vmatprep.subr.mxu0 0.0
        %3845 = vmatpush1.xpose.msra.mxu0 0.0
        %3846 = vmatprep.subr.mxu0 0.0
        %3847 = vmatpush1.xpose.msra.mxu0 0.0
        %3848 = vmatprep.subr.mxu0 0.0
        %3849 = vmatpush1.xpose.msra.mxu0 %v3830
        %3850 = vmatprep.subr.mxu0 0.0
        %3851 = vmatpush1.xpose.msra.mxu0 %v3828
        %3852 = vmatprep.subr.mxu0 0.0
        %3853 = vmatpush1.xpose.msra.mxu0 %v3826
        %3854 = vmatprep.subr.mxu0 0.0
        %3855 = vmatpush1.xpose.msra.mxu0 %v3824
        %3856 = vmatprep.subr.mxu0 0.0
        %3857 = vmatpush1.xpose.msra.mxu0 %v3822
        %3858 = vmatprep.subr.mxu0 0.0
        %3859 = vmatpush1.xpose.msra.mxu0 %v3820
        %3860 = vmatprep.subr.mxu0 0.0
        %3861 = vmatpush1.xpose.msra.mxu0 %v3818
        %3862 = vmatprep.subr.mxu0 0.0
        %3863 = vmatpush1.xpose.msra.mxu0 %v3816
        %3864 = vmatprep.subr.mxu0 0.0
        %3865 = vmatpush2.xpose.msra.mxu0 0.0
        %3866 = vmatprep.subr.mxu0 0.0
        %3867 = vmatpush2.xpose.msra.mxu0 0.0
        %3868 = vmatprep.subr.mxu0 0.0
        %3869 = vmatpush2.xpose.msra.mxu0 0.0
        %3870 = vmatprep.subr.mxu0 0.0
        %3871 = vmatpush2.xpose.msra.mxu0 0.0
        %3872 = vmatprep.subr.mxu0 0.0
        %3873 = vmatpush2.xpose.msra.mxu0 0.0
        %3874 = vmatprep.subr.mxu0 0.0
        %3875 = vmatpush2.xpose.msra.mxu0 0.0
        %3876 = vmatprep.subr.mxu0 0.0
        %3877 = vmatpush2.xpose.msra.mxu0 0.0
        %3878 = vmatprep.subr.mxu0 0.0
        %3879 = vmatpush2.xpose.msra.mxu0 0.0
        %3880 = vmatprep.subr.mxu0 0.0
        %3881 = vmatpush2.xpose.msra.mxu0 0.0
        %3882 = vmatprep.subr.mxu0 0.0
        %3883 = vmatpush2.xpose.msra.mxu0 0.0
        %3884 = vmatprep.subr.mxu0 0.0
        %3885 = vmatpush2.xpose.msra.mxu0 0.0
        %3886 = vmatprep.subr.mxu0 0.0
        %3887 = vmatpush2.xpose.msra.mxu0 0.0
        %3888 = vmatprep.subr.mxu0 0.0
        %3889 = vmatpush2.xpose.msra.mxu0 0.0
        %3890 = vmatprep.subr.mxu0 0.0
        %3891 = vmatpush2.xpose.msra.mxu0 0.0
        %3892 = vmatprep.subr.mxu0 0.0
        %3893 = vmatpush2.xpose.msra.mxu0 0.0
        %3894 = vmatprep.subr.mxu0 0.0
        %3895 = vmatpush2.xpose.msra.mxu0 0.0
        %3896 = vmatprep.mubr.f32.mxu0 0.0
        %3897 = vmatmul.mubr.f32.gmra.mxu0 %v3800
        %v3898 = vpop.f32.mrf.mxu0
        %v3899 = vadd.f32 0.0, %v3898
        %v3900 = vpop.f32.mrf.mxu0
        %3901 = vmatprep.mubr.f32.mxu0 0.0
        %3902 = vmatmul.mubr.f32.gmra.mxu0 %v3802
        %v3903 = vpop.f32.mrf.mxu0
        %v3904 = vadd.f32 0.0, %v3903
        %v3905 = vpop.f32.mrf.mxu0
        %3906 = vmatprep.mubr.f32.mxu0 0.0
        %3907 = vmatmul.mubr.f32.gmra.mxu0 %v3804
        %v3908 = vpop.f32.mrf.mxu0
        %v3909 = vadd.f32 0.0, %v3908
        %v3910 = vpop.f32.mrf.mxu0
        %3911 = vmatprep.mubr.f32.mxu0 0.0
        %3912 = vmatmul.mubr.f32.gmra.mxu0 %v3806
        %v3913 = vpop.f32.mrf.mxu0
        %v3914 = vadd.f32 0.0, %v3913
        %v3915 = vpop.f32.mrf.mxu0
        %3916 = vmatprep.mubr.f32.mxu0 0.0
        %3917 = vmatmul.mubr.f32.gmra.mxu0 %v3808
        %v3918 = vpop.f32.mrf.mxu0
        %v3919 = vadd.f32 0.0, %v3918
        %v3920 = vpop.f32.mrf.mxu0
        %3921 = vmatprep.mubr.f32.mxu0 0.0
        %3922 = vmatmul.mubr.f32.gmra.mxu0 %v3810
        %v3923 = vpop.f32.mrf.mxu0
        %v3924 = vadd.f32 0.0, %v3923
        %v3925 = vpop.f32.mrf.mxu0
        %3926 = vmatprep.mubr.f32.mxu0 0.0
        %3927 = vmatmul.mubr.f32.gmra.mxu0 %v3812
        %v3928 = vpop.f32.mrf.mxu0
        %v3929 = vadd.f32 0.0, %v3928
        %v3930 = vpop.f32.mrf.mxu0
        %3931 = vmatprep.mubr.f32.mxu0 0.0
        %3932 = vmatmul.mubr.f32.gmra.mxu0 %v3814
        %v3933 = vpop.f32.mrf.mxu0
        %v3934 = vadd.f32 0.0, %v3933
        %v3935 = vpop.f32.mrf.mxu0
        %3936 = vdwg.mxu0
        %v3937 = vsel %vm1508, %v3730, -inf
        %3938 = vmax.xlane.f32.xlu0 %v3937
        %v3939 = vpop.xlane.xlu0 %3938
        %v3940 = vsel %vm1508, %v3735, -inf
        %3941 = vmax.xlane.f32.xlu0 %v3940
        %v3942 = vpop.xlane.xlu0 %3941
        %v3943 = vsel %vm1508, %v3740, -inf
        %3944 = vmax.xlane.f32.xlu0 %v3943
        %v3945 = vpop.xlane.xlu0 %3944
        %v3946 = vsel %vm1508, %v3745, -inf
        %3947 = vmax.xlane.f32.xlu0 %v3946
        %v3948 = vpop.xlane.xlu0 %3947
        %v3949 = vsel %vm1508, %v3750, -inf
        %3950 = vmax.xlane.f32.xlu0 %v3949
        %v3951 = vpop.xlane.xlu0 %3950
        %v3952 = vsel %vm1508, %v3755, -inf
        %3953 = vmax.xlane.f32.xlu0 %v3952
        %v3954 = vpop.xlane.xlu0 %3953
        %v3955 = vsel %vm1508, %v3760, -inf
        %3956 = vmax.xlane.f32.xlu0 %v3955
        %v3957 = vpop.xlane.xlu0 %3956
        %v3958 = vsel %vm1508, %v3765, -inf
        %3959 = vmax.xlane.f32.xlu0 %v3958
        %v3960 = vpop.xlane.xlu0 %3959
        %v3961 = vsel %vm1508, %v3899, -inf
        %3962 = vmax.xlane.f32.xlu0 %v3961
        %v3963 = vpop.xlane.xlu0 %3962
        %v3964 = vsel %vm1508, %v3904, -inf
        %3965 = vmax.xlane.f32.xlu0 %v3964
        %v3966 = vpop.xlane.xlu0 %3965
        %v3967 = vsel %vm1508, %v3909, -inf
        %3968 = vmax.xlane.f32.xlu0 %v3967
        %v3969 = vpop.xlane.xlu0 %3968
        %v3970 = vsel %vm1508, %v3914, -inf
        %3971 = vmax.xlane.f32.xlu0 %v3970
        %v3972 = vpop.xlane.xlu0 %3971
        %v3973 = vsel %vm1508, %v3919, -inf
        %3974 = vmax.xlane.f32.xlu0 %v3973
        %v3975 = vpop.xlane.xlu0 %3974
        %v3976 = vsel %vm1508, %v3924, -inf
        %3977 = vmax.xlane.f32.xlu0 %v3976
        %v3978 = vpop.xlane.xlu0 %3977
        %v3979 = vsel %vm1508, %v3929, -inf
        %3980 = vmax.xlane.f32.xlu0 %v3979
        %v3981 = vpop.xlane.xlu0 %3980
        %v3982 = vsel %vm1508, %v3934, -inf
        %3983 = vmax.xlane.f32.xlu0 %v3982
        %v3984 = vpop.xlane.xlu0 %3983
        %v3985 = vsub.f32 %v3730, %v3939
        %v3986 = vsub.f32 %v3735, %v3942
        %v3987 = vsub.f32 %v3740, %v3945
        %v3988 = vsub.f32 %v3745, %v3948
        %v3989 = vsub.f32 %v3750, %v3951
        %v3990 = vsub.f32 %v3755, %v3954
        %v3991 = vsub.f32 %v3760, %v3957
        %v3992 = vsub.f32 %v3765, %v3960
        %v3993 = vsub.f32 %v3899, %v3963
        %v3994 = vsub.f32 %v3904, %v3966
        %v3995 = vsub.f32 %v3909, %v3969
        %v3996 = vsub.f32 %v3914, %v3972
        %v3997 = vsub.f32 %v3919, %v3975
        %v3998 = vsub.f32 %v3924, %v3978
        %v3999 = vsub.f32 %v3929, %v3981
        %v4000 = vsub.f32 %v3934, %v3984
        %v4001 = vmul.f32 %v3985, 1.442695
        %v4002 = vpow.pop %v4001
        %v4003 = vmul.f32 %v3986, 1.442695
        %v4004 = vpow.pop %v4003
        %v4005 = vmul.f32 %v3987, 1.442695
        %v4006 = vpow.pop %v4005
        %v4007 = vmul.f32 %v3988, 1.442695
        %v4008 = vpow.pop %v4007
        %v4009 = vmul.f32 %v3989, 1.442695
        %v4010 = vpow.pop %v4009
        %v4011 = vmul.f32 %v3990, 1.442695
        %v4012 = vpow.pop %v4011
        %v4013 = vmul.f32 %v3991, 1.442695
        %v4014 = vpow.pop %v4013
        %v4015 = vmul.f32 %v3992, 1.442695
        %v4016 = vpow.pop %v4015
        %v4017 = vmul.f32 %v3993, 1.442695
        %v4018 = vpow.pop %v4017
        %v4019 = vmul.f32 %v3994, 1.442695
        %v4020 = vpow.pop %v4019
        %v4021 = vmul.f32 %v3995, 1.442695
        %v4022 = vpow.pop %v4021
        %v4023 = vmul.f32 %v3996, 1.442695
        %v4024 = vpow.pop %v4023
        %v4025 = vmul.f32 %v3997, 1.442695
        %v4026 = vpow.pop %v4025
        %v4027 = vmul.f32 %v3998, 1.442695
        %v4028 = vpow.pop %v4027
        %v4029 = vmul.f32 %v3999, 1.442695
        %v4030 = vpow.pop %v4029
        %v4031 = vmul.f32 %v4000, 1.442695
        %v4032 = vpow.pop %v4031
        %v4033 = vsel %vm1508, %v4002, 0.0
        %4034 = vadd.xlane.f32.xlu0 %v4033
        %v4035 = vpop.xlane.xlu0 %4034
        %v4036 = vsel %vm1508, %v4004, 0.0
        %4037 = vadd.xlane.f32.xlu0 %v4036
        %v4038 = vpop.xlane.xlu0 %4037
        %v4039 = vsel %vm1508, %v4006, 0.0
        %4040 = vadd.xlane.f32.xlu0 %v4039
        %v4041 = vpop.xlane.xlu0 %4040
        %v4042 = vsel %vm1508, %v4008, 0.0
        %4043 = vadd.xlane.f32.xlu0 %v4042
        %v4044 = vpop.xlane.xlu0 %4043
        %v4045 = vsel %vm1508, %v4010, 0.0
        %4046 = vadd.xlane.f32.xlu0 %v4045
        %v4047 = vpop.xlane.xlu0 %4046
        %v4048 = vsel %vm1508, %v4012, 0.0
        %4049 = vadd.xlane.f32.xlu0 %v4048
        %v4050 = vpop.xlane.xlu0 %4049
        %v4051 = vsel %vm1508, %v4014, 0.0
        %4052 = vadd.xlane.f32.xlu0 %v4051
        %v4053 = vpop.xlane.xlu0 %4052
        %v4054 = vsel %vm1508, %v4016, 0.0
        %4055 = vadd.xlane.f32.xlu0 %v4054
        %v4056 = vpop.xlane.xlu0 %4055
        %v4057 = vsel %vm1508, %v4018, 0.0
        %4058 = vadd.xlane.f32.xlu0 %v4057
        %v4059 = vpop.xlane.xlu0 %4058
        %v4060 = vsel %vm1508, %v4020, 0.0
        %4061 = vadd.xlane.f32.xlu0 %v4060
        %v4062 = vpop.xlane.xlu0 %4061
        %v4063 = vsel %vm1508, %v4022, 0.0
        %4064 = vadd.xlane.f32.xlu0 %v4063
        %v4065 = vpop.xlane.xlu0 %4064
        %v4066 = vsel %vm1508, %v4024, 0.0
        %4067 = vadd.xlane.f32.xlu0 %v4066
        %v4068 = vpop.xlane.xlu0 %4067
        %v4069 = vsel %vm1508, %v4026, 0.0
        %4070 = vadd.xlane.f32.xlu0 %v4069
        %v4071 = vpop.xlane.xlu0 %4070
        %v4072 = vsel %vm1508, %v4028, 0.0
        %4073 = vadd.xlane.f32.xlu0 %v4072
        %v4074 = vpop.xlane.xlu0 %4073
        %v4075 = vsel %vm1508, %v4030, 0.0
        %4076 = vadd.xlane.f32.xlu0 %v4075
        %v4077 = vpop.xlane.xlu0 %4076
        %v4078 = vsel %vm1508, %v4032, 0.0
        %4079 = vadd.xlane.f32.xlu0 %v4078
        %v4080 = vpop.xlane.xlu0 %4079
        %v4081 = vrcp.pop %v4035
        %v4082 = vrcp.pop %v4038
        %v4083 = vrcp.pop %v4041
        %v4084 = vrcp.pop %v4044
        %v4085 = vrcp.pop %v4047
        %v4086 = vrcp.pop %v4050
        %v4087 = vrcp.pop %v4053
        %v4088 = vrcp.pop %v4056
        %v4089 = vrcp.pop %v4059
        %v4090 = vrcp.pop %v4062
        %v4091 = vrcp.pop %v4065
        %v4092 = vrcp.pop %v4068
        %v4093 = vrcp.pop %v4071
        %v4094 = vrcp.pop %v4074
        %v4095 = vrcp.pop %v4077
        %v4096 = vrcp.pop %v4080
        %v4097 = vmul.f32 %v4002, %v4081
        %v4098 = vmul.f32 %v4004, %v4082
        %v4099 = vmul.f32 %v4006, %v4083
        %v4100 = vmul.f32 %v4008, %v4084
        %v4101 = vmul.f32 %v4010, %v4085
        %v4102 = vmul.f32 %v4012, %v4086
        %v4103 = vmul.f32 %v4014, %v4087
        %v4104 = vmul.f32 %v4016, %v4088
        %v4105 = vmul.f32 %v4018, %v4089
        %v4106 = vmul.f32 %v4020, %v4090
        %v4107 = vmul.f32 %v4022, %v4091
        %v4108 = vmul.f32 %v4024, %v4092
        %v4109 = vmul.f32 %v4026, %v4093
        %v4110 = vmul.f32 %v4028, %v4094
        %v4111 = vmul.f32 %v4030, %v4095
        %v4112 = vmul.f32 %v4032, %v4096
        %4113 = vrot.lane.b32.xlu0 %v1107, 32
        %v4114 = vpop.permute.xlu0 %4113
        %4115 = vrot.lane.b32.xlu0 %v1112, 32
        %v4116 = vpop.permute.xlu0 %4115
        %4117 = vrot.lane.b32.xlu0 %v1117, 32
        %v4118 = vpop.permute.xlu0 %4117
        %4119 = vrot.lane.b32.xlu0 %v1122, 32
        %v4120 = vpop.permute.xlu0 %4119
        %4121 = vrot.lane.b32.xlu0 %v1127, 32
        %v4122 = vpop.permute.xlu0 %4121
        %4123 = vrot.lane.b32.xlu0 %v1132, 32
        %v4124 = vpop.permute.xlu0 %4123
        %4125 = vrot.lane.b32.xlu0 %v1137, 32
        %v4126 = vpop.permute.xlu0 %4125
        %4127 = vrot.lane.b32.xlu0 %v1142, 32
        %v4128 = vpop.permute.xlu0 %4127
        %v4138 = vsel %vm1508, %v4097, 0
        %v4141 = vsel %vm1508, %v4098, 0
        %v4144 = vsel %vm1508, %v4099, 0
        %v4147 = vsel %vm1508, %v4100, 0
        %v4150 = vsel %vm1508, %v4101, 0
        %v4153 = vsel %vm1508, %v4102, 0
        %v4156 = vsel %vm1508, %v4103, 0
        %v4159 = vsel %vm1508, %v4104, 0
        %4161 = vmatprep.subr.mxu0 0.0
        %4162 = vmatpush1.msra.mxu0 0.0
        %4163 = vmatprep.subr.mxu0 0.0
        %4164 = vmatpush1.msra.mxu0 0.0
        %4165 = vmatprep.subr.mxu0 0.0
        %4166 = vmatpush1.msra.mxu0 0.0
        %4167 = vmatprep.subr.mxu0 0.0
        %4168 = vmatpush1.msra.mxu0 0.0
        %4169 = vmatprep.subr.mxu0 0.0
        %4170 = vmatpush1.msra.mxu0 0.0
        %4171 = vmatprep.subr.mxu0 0.0
        %4172 = vmatpush1.msra.mxu0 0.0
        %4173 = vmatprep.subr.mxu0 0.0
        %4174 = vmatpush1.msra.mxu0 0.0
        %4175 = vmatprep.subr.mxu0 0.0
        %4176 = vmatpush1.msra.mxu0 0.0
        %4177 = vmatprep.subr.mxu0 0.0
        %4178 = vmatpush1.msra.mxu0 %v4128
        %4179 = vmatprep.subr.mxu0 0.0
        %4180 = vmatpush1.msra.mxu0 %v4126
        %4181 = vmatprep.subr.mxu0 0.0
        %4182 = vmatpush1.msra.mxu0 %v4124
        %4183 = vmatprep.subr.mxu0 0.0
        %4184 = vmatpush1.msra.mxu0 %v4122
        %4185 = vmatprep.subr.mxu0 0.0
        %4186 = vmatpush1.msra.mxu0 %v4120
        %4187 = vmatprep.subr.mxu0 0.0
        %4188 = vmatpush1.msra.mxu0 %v4118
        %4189 = vmatprep.subr.mxu0 0.0
        %4190 = vmatpush1.msra.mxu0 %v4116
        %4191 = vmatprep.subr.mxu0 0.0
        %4192 = vmatpush1.msra.mxu0 %v4114
        %4193 = vmatprep.subr.mxu0 0.0
        %4194 = vmatpush2.msra.mxu0 0.0
        %4195 = vmatprep.subr.mxu0 0.0
        %4196 = vmatpush2.msra.mxu0 0.0
        %4197 = vmatprep.subr.mxu0 0.0
        %4198 = vmatpush2.msra.mxu0 0.0
        %4199 = vmatprep.subr.mxu0 0.0
        %4200 = vmatpush2.msra.mxu0 0.0
        %4201 = vmatprep.subr.mxu0 0.0
        %4202 = vmatpush2.msra.mxu0 0.0
        %4203 = vmatprep.subr.mxu0 0.0
        %4204 = vmatpush2.msra.mxu0 0.0
        %4205 = vmatprep.subr.mxu0 0.0
        %4206 = vmatpush2.msra.mxu0 0.0
        %4207 = vmatprep.subr.mxu0 0.0
        %4208 = vmatpush2.msra.mxu0 0.0
        %4209 = vmatprep.subr.mxu0 0.0
        %4210 = vmatpush2.msra.mxu0 0.0
        %4211 = vmatprep.subr.mxu0 0.0
        %4212 = vmatpush2.msra.mxu0 0.0
        %4213 = vmatprep.subr.mxu0 0.0
        %4214 = vmatpush2.msra.mxu0 0.0
        %4215 = vmatprep.subr.mxu0 0.0
        %4216 = vmatpush2.msra.mxu0 0.0
        %4217 = vmatprep.subr.mxu0 0.0
        %4218 = vmatpush2.msra.mxu0 0.0
        %4219 = vmatprep.subr.mxu0 0.0
        %4220 = vmatpush2.msra.mxu0 0.0
        %4221 = vmatprep.subr.mxu0 0.0
        %4222 = vmatpush2.msra.mxu0 0.0
        %4223 = vmatprep.subr.mxu0 0.0
        %4224 = vmatpush2.msra.mxu0 0.0
        %4225 = vmatprep.mubr.f32.mxu0 0.0
        %4226 = vmatmul.mubr.f32.gmra.mxu0 %v4138
        %v4227 = vpop.f32.mrf.mxu0
        %v4228 = vadd.f32 0.0, %v4227
        %v4229 = vpop.f32.mrf.mxu0
        %4230 = vmatprep.mubr.f32.mxu0 0.0
        %4231 = vmatmul.mubr.f32.gmra.mxu0 %v4141
        %v4232 = vpop.f32.mrf.mxu0
        %v4233 = vadd.f32 0.0, %v4232
        %v4234 = vpop.f32.mrf.mxu0
        %4235 = vmatprep.mubr.f32.mxu0 0.0
        %4236 = vmatmul.mubr.f32.gmra.mxu0 %v4144
        %v4237 = vpop.f32.mrf.mxu0
        %v4238 = vadd.f32 0.0, %v4237
        %v4239 = vpop.f32.mrf.mxu0
        %4240 = vmatprep.mubr.f32.mxu0 0.0
        %4241 = vmatmul.mubr.f32.gmra.mxu0 %v4147
        %v4242 = vpop.f32.mrf.mxu0
        %v4243 = vadd.f32 0.0, %v4242
        %v4244 = vpop.f32.mrf.mxu0
        %4245 = vmatprep.mubr.f32.mxu0 0.0
        %4246 = vmatmul.mubr.f32.gmra.mxu0 %v4150
        %v4247 = vpop.f32.mrf.mxu0
        %v4248 = vadd.f32 0.0, %v4247
        %v4249 = vpop.f32.mrf.mxu0
        %4250 = vmatprep.mubr.f32.mxu0 0.0
        %4251 = vmatmul.mubr.f32.gmra.mxu0 %v4153
        %v4252 = vpop.f32.mrf.mxu0
        %v4253 = vadd.f32 0.0, %v4252
        %v4254 = vpop.f32.mrf.mxu0
        %4255 = vmatprep.mubr.f32.mxu0 0.0
        %4256 = vmatmul.mubr.f32.gmra.mxu0 %v4156
        %v4257 = vpop.f32.mrf.mxu0
        %v4258 = vadd.f32 0.0, %v4257
        %v4259 = vpop.f32.mrf.mxu0
        %4260 = vmatprep.mubr.f32.mxu0 0.0
        %4261 = vmatmul.mubr.f32.gmra.mxu0 %v4159
        %v4262 = vpop.f32.mrf.mxu0
        %v4263 = vadd.f32 0.0, %v4262
        %v4264 = vpop.f32.mrf.mxu0
        %4265 = vdwg.mxu0
        %4266 = vrot.lane.b32.xlu0 %v1147, 32
        %v4267 = vpop.permute.xlu0 %4266
        %4268 = vrot.lane.b32.xlu0 %v1152, 32
        %v4269 = vpop.permute.xlu0 %4268
        %4270 = vrot.lane.b32.xlu0 %v1157, 32
        %v4271 = vpop.permute.xlu0 %4270
        %4272 = vrot.lane.b32.xlu0 %v1162, 32
        %v4273 = vpop.permute.xlu0 %4272
        %4274 = vrot.lane.b32.xlu0 %v1167, 32
        %v4275 = vpop.permute.xlu0 %4274
        %4276 = vrot.lane.b32.xlu0 %v1172, 32
        %v4277 = vpop.permute.xlu0 %4276
        %4278 = vrot.lane.b32.xlu0 %v1177, 32
        %v4279 = vpop.permute.xlu0 %4278
        %4280 = vrot.lane.b32.xlu0 %v1182, 32
        %v4281 = vpop.permute.xlu0 %4280
        %v4291 = vsel %vm1508, %v4105, 0
        %v4294 = vsel %vm1508, %v4106, 0
        %v4297 = vsel %vm1508, %v4107, 0
        %v4300 = vsel %vm1508, %v4108, 0
        %v4303 = vsel %vm1508, %v4109, 0
        %v4306 = vsel %vm1508, %v4110, 0
        %v4309 = vsel %vm1508, %v4111, 0
        %v4312 = vsel %vm1508, %v4112, 0
        %4314 = vmatprep.subr.mxu0 0.0
        %4315 = vmatpush1.msra.mxu0 0.0
        %4316 = vmatprep.subr.mxu0 0.0
        %4317 = vmatpush1.msra.mxu0 0.0
        %4318 = vmatprep.subr.mxu0 0.0
        %4319 = vmatpush1.msra.mxu0 0.0
        %4320 = vmatprep.subr.mxu0 0.0
        %4321 = vmatpush1.msra.mxu0 0.0
        %4322 = vmatprep.subr.mxu0 0.0
        %4323 = vmatpush1.msra.mxu0 0.0
        %4324 = vmatprep.subr.mxu0 0.0
        %4325 = vmatpush1.msra.mxu0 0.0
        %4326 = vmatprep.subr.mxu0 0.0
        %4327 = vmatpush1.msra.mxu0 0.0
        %4328 = vmatprep.subr.mxu0 0.0
        %4329 = vmatpush1.msra.mxu0 0.0
        %4330 = vmatprep.subr.mxu0 0.0
        %4331 = vmatpush1.msra.mxu0 %v4281
        %4332 = vmatprep.subr.mxu0 0.0
        %4333 = vmatpush1.msra.mxu0 %v4279
        %4334 = vmatprep.subr.mxu0 0.0
        %4335 = vmatpush1.msra.mxu0 %v4277
        %4336 = vmatprep.subr.mxu0 0.0
        %4337 = vmatpush1.msra.mxu0 %v4275
        %4338 = vmatprep.subr.mxu0 0.0
        %4339 = vmatpush1.msra.mxu0 %v4273
        %4340 = vmatprep.subr.mxu0 0.0
        %4341 = vmatpush1.msra.mxu0 %v4271
        %4342 = vmatprep.subr.mxu0 0.0
        %4343 = vmatpush1.msra.mxu0 %v4269
        %4344 = vmatprep.subr.mxu0 0.0
        %4345 = vmatpush1.msra.mxu0 %v4267
        %4346 = vmatprep.subr.mxu0 0.0
        %4347 = vmatpush2.msra.mxu0 0.0
        %4348 = vmatprep.subr.mxu0 0.0
        %4349 = vmatpush2.msra.mxu0 0.0
        %4350 = vmatprep.subr.mxu0 0.0
        %4351 = vmatpush2.msra.mxu0 0.0
        %4352 = vmatprep.subr.mxu0 0.0
        %4353 = vmatpush2.msra.mxu0 0.0
        %4354 = vmatprep.subr.mxu0 0.0
        %4355 = vmatpush2.msra.mxu0 0.0
        %4356 = vmatprep.subr.mxu0 0.0
        %4357 = vmatpush2.msra.mxu0 0.0
        %4358 = vmatprep.subr.mxu0 0.0
        %4359 = vmatpush2.msra.mxu0 0.0
        %4360 = vmatprep.subr.mxu0 0.0
        %4361 = vmatpush2.msra.mxu0 0.0
        %4362 = vmatprep.subr.mxu0 0.0
        %4363 = vmatpush2.msra.mxu0 0.0
        %4364 = vmatprep.subr.mxu0 0.0
        %4365 = vmatpush2.msra.mxu0 0.0
        %4366 = vmatprep.subr.mxu0 0.0
        %4367 = vmatpush2.msra.mxu0 0.0
        %4368 = vmatprep.subr.mxu0 0.0
        %4369 = vmatpush2.msra.mxu0 0.0
        %4370 = vmatprep.subr.mxu0 0.0
        %4371 = vmatpush2.msra.mxu0 0.0
        %4372 = vmatprep.subr.mxu0 0.0
        %4373 = vmatpush2.msra.mxu0 0.0
        %4374 = vmatprep.subr.mxu0 0.0
        %4375 = vmatpush2.msra.mxu0 0.0
        %4376 = vmatprep.subr.mxu0 0.0
        %4377 = vmatpush2.msra.mxu0 0.0
        %4378 = vmatprep.mubr.f32.mxu0 0.0
        %4379 = vmatmul.mubr.f32.gmra.mxu0 %v4291
        %v4380 = vpop.f32.mrf.mxu0
        %v4381 = vadd.f32 0.0, %v4380
        %v4382 = vpop.f32.mrf.mxu0
        %4383 = vmatprep.mubr.f32.mxu0 0.0
        %4384 = vmatmul.mubr.f32.gmra.mxu0 %v4294
        %v4385 = vpop.f32.mrf.mxu0
        %v4386 = vadd.f32 0.0, %v4385
        %v4387 = vpop.f32.mrf.mxu0
        %4388 = vmatprep.mubr.f32.mxu0 0.0
        %4389 = vmatmul.mubr.f32.gmra.mxu0 %v4297
        %v4390 = vpop.f32.mrf.mxu0
        %v4391 = vadd.f32 0.0, %v4390
        %v4392 = vpop.f32.mrf.mxu0
        %4393 = vmatprep.mubr.f32.mxu0 0.0
        %4394 = vmatmul.mubr.f32.gmra.mxu0 %v4300
        %v4395 = vpop.f32.mrf.mxu0
        %v4396 = vadd.f32 0.0, %v4395
        %v4397 = vpop.f32.mrf.mxu0
        %4398 = vmatprep.mubr.f32.mxu0 0.0
        %4399 = vmatmul.mubr.f32.gmra.mxu0 %v4303
        %v4400 = vpop.f32.mrf.mxu0
        %v4401 = vadd.f32 0.0, %v4400
        %v4402 = vpop.f32.mrf.mxu0
        %4403 = vmatprep.mubr.f32.mxu0 0.0
        %4404 = vmatmul.mubr.f32.gmra.mxu0 %v4306
        %v4405 = vpop.f32.mrf.mxu0
        %v4406 = vadd.f32 0.0, %v4405
        %v4407 = vpop.f32.mrf.mxu0
        %4408 = vmatprep.mubr.f32.mxu0 0.0
        %4409 = vmatmul.mubr.f32.gmra.mxu0 %v4309
        %v4410 = vpop.f32.mrf.mxu0
        %v4411 = vadd.f32 0.0, %v4410
        %v4412 = vpop.f32.mrf.mxu0
        %4413 = vmatprep.mubr.f32.mxu0 0.0
        %4414 = vmatmul.mubr.f32.gmra.mxu0 %v4312
        %v4415 = vpop.f32.mrf.mxu0
        %v4416 = vadd.f32 0.0, %v4415
        %v4417 = vpop.f32.mrf.mxu0
        %4418 = vdwg.mxu0
        %4435 = vrot.lane.b32.xlu0 %v2580, 32
        %v4436 = vpop.permute.xlu0 %4435
        %4437 = vrot.lane.b32.xlu0 %v2585, 32
        %v4438 = vpop.permute.xlu0 %4437
        %4439 = vrot.lane.b32.xlu0 %v2590, 32
        %v4440 = vpop.permute.xlu0 %4439
        %4441 = vrot.lane.b32.xlu0 %v2595, 32
        %v4442 = vpop.permute.xlu0 %4441
        %4443 = vrot.lane.b32.xlu0 %v2600, 32
        %v4444 = vpop.permute.xlu0 %4443
        %4445 = vrot.lane.b32.xlu0 %v2605, 32
        %v4446 = vpop.permute.xlu0 %4445
        %4447 = vrot.lane.b32.xlu0 %v2610, 32
        %v4448 = vpop.permute.xlu0 %4447
        %4449 = vrot.lane.b32.xlu0 %v2615, 32
        %v4450 = vpop.permute.xlu0 %4449
        %4451 = vrot.lane.b32.xlu0 %v2741, 32
        %v4452 = vpop.permute.xlu0 %4451
        %4453 = vrot.lane.b32.xlu0 %v2746, 32
        %v4454 = vpop.permute.xlu0 %4453
        %4455 = vrot.lane.b32.xlu0 %v2751, 32
        %v4456 = vpop.permute.xlu0 %4455
        %4457 = vrot.lane.b32.xlu0 %v2756, 32
        %v4458 = vpop.permute.xlu0 %4457
        %4459 = vrot.lane.b32.xlu0 %v2761, 32
        %v4460 = vpop.permute.xlu0 %4459
        %4461 = vrot.lane.b32.xlu0 %v2766, 32
        %v4462 = vpop.permute.xlu0 %4461
        %4463 = vrot.lane.b32.xlu0 %v2771, 32
        %v4464 = vpop.permute.xlu0 %4463
        %4465 = vrot.lane.b32.xlu0 %v2776, 32
        %v4466 = vpop.permute.xlu0 %4465
        %4499 = vrot.lane.b32.xlu0 %v3408, 64
        %v4500 = vpop.permute.xlu0 %4499
        %4501 = vrot.lane.b32.xlu0 %v3413, 64
        %v4502 = vpop.permute.xlu0 %4501
        %4503 = vrot.lane.b32.xlu0 %v3418, 64
        %v4504 = vpop.permute.xlu0 %4503
        %4505 = vrot.lane.b32.xlu0 %v3423, 64
        %v4506 = vpop.permute.xlu0 %4505
        %4507 = vrot.lane.b32.xlu0 %v3428, 64
        %v4508 = vpop.permute.xlu0 %4507
        %4509 = vrot.lane.b32.xlu0 %v3433, 64
        %v4510 = vpop.permute.xlu0 %4509
        %4511 = vrot.lane.b32.xlu0 %v3438, 64
        %v4512 = vpop.permute.xlu0 %4511
        %4513 = vrot.lane.b32.xlu0 %v3443, 64
        %v4514 = vpop.permute.xlu0 %4513
        %4515 = vrot.lane.b32.xlu0 %v3561, 64
        %v4516 = vpop.permute.xlu0 %4515
        %4517 = vrot.lane.b32.xlu0 %v3566, 64
        %v4518 = vpop.permute.xlu0 %4517
        %4519 = vrot.lane.b32.xlu0 %v3571, 64
        %v4520 = vpop.permute.xlu0 %4519
        %4521 = vrot.lane.b32.xlu0 %v3576, 64
        %v4522 = vpop.permute.xlu0 %4521
        %4523 = vrot.lane.b32.xlu0 %v3581, 64
        %v4524 = vpop.permute.xlu0 %4523
        %4525 = vrot.lane.b32.xlu0 %v3586, 64
        %v4526 = vpop.permute.xlu0 %4525
        %4527 = vrot.lane.b32.xlu0 %v3591, 64
        %v4528 = vpop.permute.xlu0 %4527
        %4529 = vrot.lane.b32.xlu0 %v3596, 64
        %v4530 = vpop.permute.xlu0 %4529
        %4563 = vrot.lane.b32.xlu0 %v4228, 96
        %v4564 = vpop.permute.xlu0 %4563
        %4565 = vrot.lane.b32.xlu0 %v4233, 96
        %v4566 = vpop.permute.xlu0 %4565
        %4567 = vrot.lane.b32.xlu0 %v4238, 96
        %v4568 = vpop.permute.xlu0 %4567
        %4569 = vrot.lane.b32.xlu0 %v4243, 96
        %v4570 = vpop.permute.xlu0 %4569
        %4571 = vrot.lane.b32.xlu0 %v4248, 96
        %v4572 = vpop.permute.xlu0 %4571
        %4573 = vrot.lane.b32.xlu0 %v4253, 96
        %v4574 = vpop.permute.xlu0 %4573
        %4575 = vrot.lane.b32.xlu0 %v4258, 96
        %v4576 = vpop.permute.xlu0 %4575
        %4577 = vrot.lane.b32.xlu0 %v4263, 96
        %v4578 = vpop.permute.xlu0 %4577
        %4579 = vrot.lane.b32.xlu0 %v4381, 96
        %v4580 = vpop.permute.xlu0 %4579
        %4581 = vrot.lane.b32.xlu0 %v4386, 96
        %v4582 = vpop.permute.xlu0 %4581
        %4583 = vrot.lane.b32.xlu0 %v4391, 96
        %v4584 = vpop.permute.xlu0 %4583
        %4585 = vrot.lane.b32.xlu0 %v4396, 96
        %v4586 = vpop.permute.xlu0 %4585
        %4587 = vrot.lane.b32.xlu0 %v4401, 96
        %v4588 = vpop.permute.xlu0 %4587
        %4589 = vrot.lane.b32.xlu0 %v4406, 96
        %v4590 = vpop.permute.xlu0 %4589
        %4591 = vrot.lane.b32.xlu0 %v4411, 96
        %v4592 = vpop.permute.xlu0 %4591
        %4593 = vrot.lane.b32.xlu0 %v4416, 96
        %v4594 = vpop.permute.xlu0 %4593
        %v4611 = vsel %vm1201, %v1776, %v4436
        %v4612 = vsel %vm1201, %v1781, %v4438
        %v4613 = vsel %vm1201, %v1786, %v4440
        %v4614 = vsel %vm1201, %v1791, %v4442
        %v4615 = vsel %vm1201, %v1796, %v4444
        %v4616 = vsel %vm1201, %v1801, %v4446
        %v4617 = vsel %vm1201, %v1806, %v4448
        %v4618 = vsel %vm1201, %v1811, %v4450
        %v4619 = vsel %vm1201, %v1905, %v4452
        %v4620 = vsel %vm1201, %v1910, %v4454
        %v4621 = vsel %vm1201, %v1915, %v4456
        %v4622 = vsel %vm1201, %v1920, %v4458
        %v4623 = vsel %vm1201, %v1925, %v4460
        %v4624 = vsel %vm1201, %v1930, %v4462
        %v4625 = vsel %vm1201, %v1935, %v4464
        %v4626 = vsel %vm1201, %v1940, %v4466
        %v4627 = vsel %vm1508, %v4611, %v4500
        %v4628 = vsel %vm1508, %v4612, %v4502
        %v4629 = vsel %vm1508, %v4613, %v4504
        %v4630 = vsel %vm1508, %v4614, %v4506
        %v4631 = vsel %vm1508, %v4615, %v4508
        %v4632 = vsel %vm1508, %v4616, %v4510
        %v4633 = vsel %vm1508, %v4617, %v4512
        %v4634 = vsel %vm1508, %v4618, %v4514
        %v4635 = vsel %vm1508, %v4619, %v4516
        %v4636 = vsel %vm1508, %v4620, %v4518
        %v4637 = vsel %vm1508, %v4621, %v4520
        %v4638 = vsel %vm1508, %v4622, %v4522
        %v4639 = vsel %vm1508, %v4623, %v4524
        %v4640 = vsel %vm1508, %v4624, %v4526
        %v4641 = vsel %vm1508, %v4625, %v4528
        %v4642 = vsel %vm1508, %v4626, %v4530
        %vm4643 = vcmask 785408
        %v4644 = vsel %vm4643, %v4627, %v4564
        %v4645 = vsel %vm4643, %v4628, %v4566
        %v4646 = vsel %vm4643, %v4629, %v4568
        %v4647 = vsel %vm4643, %v4630, %v4570
        %v4648 = vsel %vm4643, %v4631, %v4572
        %v4649 = vsel %vm4643, %v4632, %v4574
        %v4650 = vsel %vm4643, %v4633, %v4576
        %v4651 = vsel %vm4643, %v4634, %v4578
        %v4652 = vsel %vm4643, %v4635, %v4580
        %v4653 = vsel %vm4643, %v4636, %v4582
        %v4654 = vsel %vm4643, %v4637, %v4584
        %v4655 = vsel %vm4643, %v4638, %v4586
        %v4656 = vsel %vm4643, %v4639, %v4588
        %v4657 = vsel %vm4643, %v4640, %v4590
        %v4658 = vsel %vm4643, %v4641, %v4592
        %v4659 = vsel %vm4643, %v4642, %v4594
        %v4660 = vld [vmem:[%s447] sm:$0xff]
        %v4661 = vld [vmem:[%s447 + $0x8] sm:$0xff]
        %v4662 = vld [vmem:[%s447 + $0x10] sm:$0xff]
        %v4663 = vld [vmem:[%s447 + $0x18] sm:$0xff]
        %v4664 = vld [vmem:[%s447 + $0x20] sm:$0xff]
        %v4665 = vld [vmem:[%s447 + $0x28] sm:$0xff]
        %v4666 = vld [vmem:[%s447 + $0x30] sm:$0xff]
        %v4667 = vld [vmem:[%s447 + $0x38] sm:$0xff]
        %v4668 = vld [vmem:[%s447 + $0x40] sm:$0xff]
        %v4669 = vld [vmem:[%s447 + $0x48] sm:$0xff]
        %v4670 = vld [vmem:[%s447 + $0x50] sm:$0xff]
        %v4671 = vld [vmem:[%s447 + $0x58] sm:$0xff]
        %v4672 = vld [vmem:[%s447 + $0x60] sm:$0xff]
        %v4673 = vld [vmem:[%s447 + $0x68] sm:$0xff]
        %v4674 = vld [vmem:[%s447 + $0x70] sm:$0xff]
        %v4675 = vld [vmem:[%s447 + $0x78] sm:$0xff]
        %v4676 = vlaneseq
        %v4677 = vshrl.u32 %v4676, 7
        %v4678 = vsub.s32 2, %v4677
        %v4679 = vrot.slane %v596, %v4678
        %4680 = vmatprep.subr.mxu0 0.0
        %4681 = vmatpush1.msra.mxu0 %v4675
        %4682 = vmatprep.subr.mxu0 0.0
        %4683 = vmatpush1.msra.mxu0 %v4674
        %4684 = vmatprep.subr.mxu0 0.0
        %4685 = vmatpush1.msra.mxu0 %v4673
        %4686 = vmatprep.subr.mxu0 0.0
        %4687 = vmatpush1.msra.mxu0 %v4672
        %4688 = vmatprep.subr.mxu0 0.0
        %4689 = vmatpush1.msra.mxu0 %v4671
        %4690 = vmatprep.subr.mxu0 0.0
        %4691 = vmatpush1.msra.mxu0 %v4670
        %4692 = vmatprep.subr.mxu0 0.0
        %4693 = vmatpush1.msra.mxu0 %v4669
        %4694 = vmatprep.subr.mxu0 0.0
        %4695 = vmatpush1.msra.mxu0 %v4668
        %4696 = vmatprep.subr.mxu0 0.0
        %4697 = vmatpush1.msra.mxu0 %v4667
        %4698 = vmatprep.subr.mxu0 0.0
        %4699 = vmatpush1.msra.mxu0 %v4666
        %4700 = vmatprep.subr.mxu0 0.0
        %4701 = vmatpush1.msra.mxu0 %v4665
        %4702 = vmatprep.subr.mxu0 0.0
        %4703 = vmatpush1.msra.mxu0 %v4664
        %4704 = vmatprep.subr.mxu0 0.0
        %4705 = vmatpush1.msra.mxu0 %v4663
        %4706 = vmatprep.subr.mxu0 0.0
        %4707 = vmatpush1.msra.mxu0 %v4662
        %4708 = vmatprep.subr.mxu0 0.0
        %4709 = vmatpush1.msra.mxu0 %v4661
        %4710 = vmatprep.subr.mxu0 0.0
        %4711 = vmatpush1.msra.mxu0 %v4660
        %4712 = vmatprep.subr.mxu0 0.0
        %4713 = vmatpush2.msra.mxu0 0.0
        %4714 = vmatprep.subr.mxu0 0.0
        %4715 = vmatpush2.msra.mxu0 0.0
        %4716 = vmatprep.subr.mxu0 0.0
        %4717 = vmatpush2.msra.mxu0 0.0
        %4718 = vmatprep.subr.mxu0 0.0
        %4719 = vmatpush2.msra.mxu0 0.0
        %4720 = vmatprep.subr.mxu0 0.0
        %4721 = vmatpush2.msra.mxu0 0.0
        %4722 = vmatprep.subr.mxu0 0.0
        %4723 = vmatpush2.msra.mxu0 0.0
        %4724 = vmatprep.subr.mxu0 0.0
        %4725 = vmatpush2.msra.mxu0 0.0
        %4726 = vmatprep.subr.mxu0 0.0
        %4727 = vmatpush2.msra.mxu0 0.0
        %4728 = vmatprep.subr.mxu0 0.0
        %4729 = vmatpush2.msra.mxu0 0.0
        %4730 = vmatprep.subr.mxu0 0.0
        %4731 = vmatpush2.msra.mxu0 0.0
        %4732 = vmatprep.subr.mxu0 0.0
        %4733 = vmatpush2.msra.mxu0 0.0
        %4734 = vmatprep.subr.mxu0 0.0
        %4735 = vmatpush2.msra.mxu0 0.0
        %4736 = vmatprep.subr.mxu0 0.0
        %4737 = vmatpush2.msra.mxu0 0.0
        %4738 = vmatprep.subr.mxu0 0.0
        %4739 = vmatpush2.msra.mxu0 0.0
        %4740 = vmatprep.subr.mxu0 0.0
        %4741 = vmatpush2.msra.mxu0 0.0
        %4742 = vmatprep.subr.mxu0 0.0
        %4743 = vmatpush2.msra.mxu0 0.0
        %4744 = vmatprep.mubr.f32.mxu0 0.0
        %4745 = vmatmul.mubr.f32.gmra.mxu0 %v4644
        %v4746 = vpop.f32.mrf.mxu0
        %v4747 = vadd.f32 %v4679, %v4746
        %v4748 = vpop.f32.mrf.mxu0
        %4749 = vmatprep.mubr.f32.mxu0 0.0
        %4750 = vmatmul.mubr.f32.gmra.mxu0 %v4645
        %v4751 = vpop.f32.mrf.mxu0
        %v4752 = vadd.f32 %v4679, %v4751
        %v4753 = vpop.f32.mrf.mxu0
        %4754 = vmatprep.mubr.f32.mxu0 0.0
        %4755 = vmatmul.mubr.f32.gmra.mxu0 %v4646
        %v4756 = vpop.f32.mrf.mxu0
        %v4757 = vadd.f32 %v4679, %v4756
        %v4758 = vpop.f32.mrf.mxu0
        %4759 = vmatprep.mubr.f32.mxu0 0.0
        %4760 = vmatmul.mubr.f32.gmra.mxu0 %v4647
        %v4761 = vpop.f32.mrf.mxu0
        %v4762 = vadd.f32 %v4679, %v4761
        %v4763 = vpop.f32.mrf.mxu0
        %4764 = vmatprep.mubr.f32.mxu0 0.0
        %4765 = vmatmul.mubr.f32.gmra.mxu0 %v4648
        %v4766 = vpop.f32.mrf.mxu0
        %v4767 = vadd.f32 %v4679, %v4766
        %v4768 = vpop.f32.mrf.mxu0
        %4769 = vmatprep.mubr.f32.mxu0 0.0
        %4770 = vmatmul.mubr.f32.gmra.mxu0 %v4649
        %v4771 = vpop.f32.mrf.mxu0
        %v4772 = vadd.f32 %v4679, %v4771
        %v4773 = vpop.f32.mrf.mxu0
        %4774 = vmatprep.mubr.f32.mxu0 0.0
        %4775 = vmatmul.mubr.f32.gmra.mxu0 %v4650
        %v4776 = vpop.f32.mrf.mxu0
        %v4777 = vadd.f32 %v4679, %v4776
        %v4778 = vpop.f32.mrf.mxu0
        %4779 = vmatprep.mubr.f32.mxu0 0.0
        %4780 = vmatmul.mubr.f32.gmra.mxu0 %v4651
        %v4781 = vpop.f32.mrf.mxu0
        %v4782 = vadd.f32 %v4679, %v4781
        %v4783 = vpop.f32.mrf.mxu0
        %4784 = vmatprep.mubr.f32.mxu0 0.0
        %4785 = vmatmul.mubr.f32.gmra.mxu0 %v4652
        %v4786 = vpop.f32.mrf.mxu0
        %v4787 = vadd.f32 %v4679, %v4786
        %v4788 = vpop.f32.mrf.mxu0
        %4789 = vmatprep.mubr.f32.mxu0 0.0
        %4790 = vmatmul.mubr.f32.gmra.mxu0 %v4653
        %v4791 = vpop.f32.mrf.mxu0
        %v4792 = vadd.f32 %v4679, %v4791
        %v4793 = vpop.f32.mrf.mxu0
        %4794 = vmatprep.mubr.f32.mxu0 0.0
        %4795 = vmatmul.mubr.f32.gmra.mxu0 %v4654
        %v4796 = vpop.f32.mrf.mxu0
        %v4797 = vadd.f32 %v4679, %v4796
        %v4798 = vpop.f32.mrf.mxu0
        %4799 = vmatprep.mubr.f32.mxu0 0.0
        %4800 = vmatmul.mubr.f32.gmra.mxu0 %v4655
        %v4801 = vpop.f32.mrf.mxu0
        %v4802 = vadd.f32 %v4679, %v4801
        %v4803 = vpop.f32.mrf.mxu0
        %4804 = vmatprep.mubr.f32.mxu0 0.0
        %4805 = vmatmul.mubr.f32.gmra.mxu0 %v4656
        %v4806 = vpop.f32.mrf.mxu0
        %v4807 = vadd.f32 %v4679, %v4806
        %v4808 = vpop.f32.mrf.mxu0
        %4809 = vmatprep.mubr.f32.mxu0 0.0
        %4810 = vmatmul.mubr.f32.gmra.mxu0 %v4657
        %v4811 = vpop.f32.mrf.mxu0
        %v4812 = vadd.f32 %v4679, %v4811
        %v4813 = vpop.f32.mrf.mxu0
        %4814 = vmatprep.mubr.f32.mxu0 0.0
        %4815 = vmatmul.mubr.f32.gmra.mxu0 %v4658
        %v4816 = vpop.f32.mrf.mxu0
        %v4817 = vadd.f32 %v4679, %v4816
        %v4818 = vpop.f32.mrf.mxu0
        %4819 = vmatprep.mubr.f32.mxu0 0.0
        %4820 = vmatmul.mubr.f32.gmra.mxu0 %v4659
        %v4821 = vpop.f32.mrf.mxu0
        %v4822 = vadd.f32 %v4679, %v4821
        %v4823 = vpop.f32.mrf.mxu0
        %4824 = vdwg.mxu0
        %v4825 = vadd.f32 %v580, %v4747
        %v4826 = vadd.f32 %v581, %v4752
        %v4827 = vadd.f32 %v582, %v4757
        %v4828 = vadd.f32 %v583, %v4762
        %v4829 = vadd.f32 %v584, %v4767
        %v4830 = vadd.f32 %v585, %v4772
        %v4831 = vadd.f32 %v586, %v4777
        %v4832 = vadd.f32 %v587, %v4782
        %v4833 = vadd.f32 %v588, %v4787
        %v4834 = vadd.f32 %v589, %v4792
        %v4835 = vadd.f32 %v590, %v4797
        %v4836 = vadd.f32 %v591, %v4802
        %v4837 = vadd.f32 %v592, %v4807
        %v4838 = vadd.f32 %v593, %v4812
        %v4839 = vadd.f32 %v594, %v4817
        %v4840 = vadd.f32 %v595, %v4822
        %4841 = vadd.xlane.f32.xlu0 %v4825
        %v4842 = vpop.xlane.xlu0 %4841
        %4843 = vadd.xlane.f32.xlu0 %v4826
        %v4844 = vpop.xlane.xlu0 %4843
        %4845 = vadd.xlane.f32.xlu0 %v4827
        %v4846 = vpop.xlane.xlu0 %4845
        %4847 = vadd.xlane.f32.xlu0 %v4828
        %v4848 = vpop.xlane.xlu0 %4847
        %4849 = vadd.xlane.f32.xlu0 %v4829
        %v4850 = vpop.xlane.xlu0 %4849
        %4851 = vadd.xlane.f32.xlu0 %v4830
        %v4852 = vpop.xlane.xlu0 %4851
        %4853 = vadd.xlane.f32.xlu0 %v4831
        %v4854 = vpop.xlane.xlu0 %4853
        %4855 = vadd.xlane.f32.xlu0 %v4832
        %v4856 = vpop.xlane.xlu0 %4855
        %4857 = vadd.xlane.f32.xlu0 %v4833
        %v4858 = vpop.xlane.xlu0 %4857
        %4859 = vadd.xlane.f32.xlu0 %v4834
        %v4860 = vpop.xlane.xlu0 %4859
        %4861 = vadd.xlane.f32.xlu0 %v4835
        %v4862 = vpop.xlane.xlu0 %4861
        %4863 = vadd.xlane.f32.xlu0 %v4836
        %v4864 = vpop.xlane.xlu0 %4863
        %4865 = vadd.xlane.f32.xlu0 %v4837
        %v4866 = vpop.xlane.xlu0 %4865
        %4867 = vadd.xlane.f32.xlu0 %v4838
        %v4868 = vpop.xlane.xlu0 %4867
        %4869 = vadd.xlane.f32.xlu0 %v4839
        %v4870 = vpop.xlane.xlu0 %4869
        %4871 = vadd.xlane.f32.xlu0 %v4840
        %v4872 = vpop.xlane.xlu0 %4871
        %v4873 = vmul.f32 %v4842, %v629
        %v4874 = vmul.f32 %v4844, %v629
        %v4875 = vmul.f32 %v4846, %v629
        %v4876 = vmul.f32 %v4848, %v629
        %v4877 = vmul.f32 %v4850, %v629
        %v4878 = vmul.f32 %v4852, %v629
        %v4879 = vmul.f32 %v4854, %v629
        %v4880 = vmul.f32 %v4856, %v629
        %v4881 = vmul.f32 %v4858, %v629
        %v4882 = vmul.f32 %v4860, %v629
        %v4883 = vmul.f32 %v4862, %v629
        %v4884 = vmul.f32 %v4864, %v629
        %v4885 = vmul.f32 %v4866, %v629
        %v4886 = vmul.f32 %v4868, %v629
        %v4887 = vmul.f32 %v4870, %v629
        %v4888 = vmul.f32 %v4872, %v629
        %v4889 = vsub.f32 %v4825, %v4873
        %v4890 = vsub.f32 %v4826, %v4874
        %v4891 = vsub.f32 %v4827, %v4875
        %v4892 = vsub.f32 %v4828, %v4876
        %v4893 = vsub.f32 %v4829, %v4877
        %v4894 = vsub.f32 %v4830, %v4878
        %v4895 = vsub.f32 %v4831, %v4879
        %v4896 = vsub.f32 %v4832, %v4880
        %v4897 = vsub.f32 %v4833, %v4881
        %v4898 = vsub.f32 %v4834, %v4882
        %v4899 = vsub.f32 %v4835, %v4883
        %v4900 = vsub.f32 %v4836, %v4884
        %v4901 = vsub.f32 %v4837, %v4885
        %v4902 = vsub.f32 %v4838, %v4886
        %v4903 = vsub.f32 %v4839, %v4887
        %v4904 = vsub.f32 %v4840, %v4888
        %v4905 = vmul.f32 %v4889, %v4889
        %v4906 = vmul.f32 %v4890, %v4890
        %v4907 = vmul.f32 %v4891, %v4891
        %v4908 = vmul.f32 %v4892, %v4892
        %v4909 = vmul.f32 %v4893, %v4893
        %v4910 = vmul.f32 %v4894, %v4894
        %v4911 = vmul.f32 %v4895, %v4895
        %v4912 = vmul.f32 %v4896, %v4896
        %v4913 = vmul.f32 %v4897, %v4897
        %v4914 = vmul.f32 %v4898, %v4898
        %v4915 = vmul.f32 %v4899, %v4899
        %v4916 = vmul.f32 %v4900, %v4900
        %v4917 = vmul.f32 %v4901, %v4901
        %v4918 = vmul.f32 %v4902, %v4902
        %v4919 = vmul.f32 %v4903, %v4903
        %v4920 = vmul.f32 %v4904, %v4904
        %4921 = vadd.xlane.f32.xlu0 %v4905
        %v4922 = vpop.xlane.xlu0 %4921
        %4923 = vadd.xlane.f32.xlu0 %v4906
        %v4924 = vpop.xlane.xlu0 %4923
        %4925 = vadd.xlane.f32.xlu0 %v4907
        %v4926 = vpop.xlane.xlu0 %4925
        %4927 = vadd.xlane.f32.xlu0 %v4908
        %v4928 = vpop.xlane.xlu0 %4927
        %4929 = vadd.xlane.f32.xlu0 %v4909
        %v4930 = vpop.xlane.xlu0 %4929
        %4931 = vadd.xlane.f32.xlu0 %v4910
        %v4932 = vpop.xlane.xlu0 %4931
        %4933 = vadd.xlane.f32.xlu0 %v4911
        %v4934 = vpop.xlane.xlu0 %4933
        %4935 = vadd.xlane.f32.xlu0 %v4912
        %v4936 = vpop.xlane.xlu0 %4935
        %4937 = vadd.xlane.f32.xlu0 %v4913
        %v4938 = vpop.xlane.xlu0 %4937
        %4939 = vadd.xlane.f32.xlu0 %v4914
        %v4940 = vpop.xlane.xlu0 %4939
        %4941 = vadd.xlane.f32.xlu0 %v4915
        %v4942 = vpop.xlane.xlu0 %4941
        %4943 = vadd.xlane.f32.xlu0 %v4916
        %v4944 = vpop.xlane.xlu0 %4943
        %4945 = vadd.xlane.f32.xlu0 %v4917
        %v4946 = vpop.xlane.xlu0 %4945
        %4947 = vadd.xlane.f32.xlu0 %v4918
        %v4948 = vpop.xlane.xlu0 %4947
        %4949 = vadd.xlane.f32.xlu0 %v4919
        %v4950 = vpop.xlane.xlu0 %4949
        %4951 = vadd.xlane.f32.xlu0 %v4920
        %v4952 = vpop.xlane.xlu0 %4951
        %v4953 = vmul.f32 %v4922, %v629
        %v4954 = vmul.f32 %v4924, %v629
        %v4955 = vmul.f32 %v4926, %v629
        %v4956 = vmul.f32 %v4928, %v629
        %v4957 = vmul.f32 %v4930, %v629
        %v4958 = vmul.f32 %v4932, %v629
        %v4959 = vmul.f32 %v4934, %v629
        %v4960 = vmul.f32 %v4936, %v629
        %v4961 = vmul.f32 %v4938, %v629
        %v4962 = vmul.f32 %v4940, %v629
        %v4963 = vmul.f32 %v4942, %v629
        %v4964 = vmul.f32 %v4944, %v629
        %v4965 = vmul.f32 %v4946, %v629
        %v4966 = vmul.f32 %v4948, %v629
        %v4967 = vmul.f32 %v4950, %v629
        %v4968 = vmul.f32 %v4952, %v629
        %v4969 = vadd.f32 %v4953, 1e-06
        %v4970 = vadd.f32 %v4954, 1e-06
        %v4971 = vadd.f32 %v4955, 1e-06
        %v4972 = vadd.f32 %v4956, 1e-06
        %v4973 = vadd.f32 %v4957, 1e-06
        %v4974 = vadd.f32 %v4958, 1e-06
        %v4975 = vadd.f32 %v4959, 1e-06
        %v4976 = vadd.f32 %v4960, 1e-06
        %v4977 = vadd.f32 %v4961, 1e-06
        %v4978 = vadd.f32 %v4962, 1e-06
        %v4979 = vadd.f32 %v4963, 1e-06
        %v4980 = vadd.f32 %v4964, 1e-06
        %v4981 = vadd.f32 %v4965, 1e-06
        %v4982 = vadd.f32 %v4966, 1e-06
        %v4983 = vadd.f32 %v4967, 1e-06
        %v4984 = vadd.f32 %v4968, 1e-06
        %v4985 = vrsqrt.pop %v4969
        %v4986 = vrsqrt.pop %v4970
        %v4987 = vrsqrt.pop %v4971
        %v4988 = vrsqrt.pop %v4972
        %v4989 = vrsqrt.pop %v4973
        %v4990 = vrsqrt.pop %v4974
        %v4991 = vrsqrt.pop %v4975
        %v4992 = vrsqrt.pop %v4976
        %v4993 = vrsqrt.pop %v4977
        %v4994 = vrsqrt.pop %v4978
        %v4995 = vrsqrt.pop %v4979
        %v4996 = vrsqrt.pop %v4980
        %v4997 = vrsqrt.pop %v4981
        %v4998 = vrsqrt.pop %v4982
        %v4999 = vrsqrt.pop %v4983
        %v5000 = vrsqrt.pop %v4984
        %v5001 = vmul.f32 %v4889, %v4985
        %v5002 = vmul.f32 %v4890, %v4986
        %v5003 = vmul.f32 %v4891, %v4987
        %v5004 = vmul.f32 %v4892, %v4988
        %v5005 = vmul.f32 %v4893, %v4989
        %v5006 = vmul.f32 %v4894, %v4990
        %v5007 = vmul.f32 %v4895, %v4991
        %v5008 = vmul.f32 %v4896, %v4992
        %v5009 = vmul.f32 %v4897, %v4993
        %v5010 = vmul.f32 %v4898, %v4994
        %v5011 = vmul.f32 %v4899, %v4995
        %v5012 = vmul.f32 %v4900, %v4996
        %v5013 = vmul.f32 %v4901, %v4997
        %v5014 = vmul.f32 %v4902, %v4998
        %v5015 = vmul.f32 %v4903, %v4999
        %v5016 = vmul.f32 %v4904, %v5000
        %v5017 = vlaneseq
        %v5018 = vshrl.u32 %v5017, 7
        %v5019 = vsub.s32 3, %v5018
        %v5020 = vrot.slane %v596, %v5019
        %v5021 = vmul.f32 %v5001, %v5020
        %v5022 = vmul.f32 %v5002, %v5020
        %v5023 = vmul.f32 %v5003, %v5020
        %v5024 = vmul.f32 %v5004, %v5020
        %v5025 = vmul.f32 %v5005, %v5020
        %v5026 = vmul.f32 %v5006, %v5020
        %v5027 = vmul.f32 %v5007, %v5020
        %v5028 = vmul.f32 %v5008, %v5020
        %v5029 = vmul.f32 %v5009, %v5020
        %v5030 = vmul.f32 %v5010, %v5020
        %v5031 = vmul.f32 %v5011, %v5020
        %v5032 = vmul.f32 %v5012, %v5020
        %v5033 = vmul.f32 %v5013, %v5020
        %v5034 = vmul.f32 %v5014, %v5020
        %v5035 = vmul.f32 %v5015, %v5020
        %v5036 = vmul.f32 %v5016, %v5020
        %v5037 = vlaneseq
        %v5038 = vshrl.u32 %v5037, 7
        %v5039 = vsub.s32 4, %v5038
        %v5040 = vrot.slane %v596, %v5039
        %v5041 = vadd.f32 %v5021, %v5040
        %v5042 = vadd.f32 %v5022, %v5040
        %v5043 = vadd.f32 %v5023, %v5040
        %v5044 = vadd.f32 %v5024, %v5040
        %v5045 = vadd.f32 %v5025, %v5040
        %v5046 = vadd.f32 %v5026, %v5040
        %v5047 = vadd.f32 %v5027, %v5040
        %v5048 = vadd.f32 %v5028, %v5040
        %v5049 = vadd.f32 %v5029, %v5040
        %v5050 = vadd.f32 %v5030, %v5040
        %v5051 = vadd.f32 %v5031, %v5040
        %v5052 = vadd.f32 %v5032, %v5040
        %v5053 = vadd.f32 %v5033, %v5040
        %v5054 = vadd.f32 %v5034, %v5040
        %v5055 = vadd.f32 %v5035, %v5040
        %v5056 = vadd.f32 %v5036, %v5040
        %v5057 = vld [vmem:[%s456] sm:$0xff]
        %v5058 = vld [vmem:[%s456 + $0x8] sm:$0xff]
        %v5059 = vld [vmem:[%s456 + $0x10] sm:$0xff]
        %v5060 = vld [vmem:[%s456 + $0x18] sm:$0xff]
        %v5061 = vld [vmem:[%s456 + $0x20] sm:$0xff]
        %v5062 = vld [vmem:[%s456 + $0x28] sm:$0xff]
        %v5063 = vld [vmem:[%s456 + $0x30] sm:$0xff]
        %v5064 = vld [vmem:[%s456 + $0x38] sm:$0xff]
        %v5065 = vld [vmem:[%s456 + $0x40] sm:$0xff]
        %v5066 = vld [vmem:[%s456 + $0x48] sm:$0xff]
        %v5067 = vld [vmem:[%s456 + $0x50] sm:$0xff]
        %v5068 = vld [vmem:[%s456 + $0x58] sm:$0xff]
        %v5069 = vld [vmem:[%s456 + $0x60] sm:$0xff]
        %v5070 = vld [vmem:[%s456 + $0x68] sm:$0xff]
        %v5071 = vld [vmem:[%s456 + $0x70] sm:$0xff]
        %v5072 = vld [vmem:[%s456 + $0x78] sm:$0xff]
        %v5073 = vld [vmem:[%s456 + $0x80] sm:$0xff]
        %v5074 = vld [vmem:[%s456 + $0x88] sm:$0xff]
        %v5075 = vld [vmem:[%s456 + $0x90] sm:$0xff]
        %v5076 = vld [vmem:[%s456 + $0x98] sm:$0xff]
        %v5077 = vld [vmem:[%s456 + $0xa0] sm:$0xff]
        %v5078 = vld [vmem:[%s456 + $0xa8] sm:$0xff]
        %v5079 = vld [vmem:[%s456 + $0xb0] sm:$0xff]
        %v5080 = vld [vmem:[%s456 + $0xb8] sm:$0xff]
        %v5081 = vld [vmem:[%s456 + $0xc0] sm:$0xff]
        %v5082 = vld [vmem:[%s456 + $0xc8] sm:$0xff]
        %v5083 = vld [vmem:[%s456 + $0xd0] sm:$0xff]
        %v5084 = vld [vmem:[%s456 + $0xd8] sm:$0xff]
        %v5085 = vld [vmem:[%s456 + $0xe0] sm:$0xff]
        %v5086 = vld [vmem:[%s456 + $0xe8] sm:$0xff]
        %v5087 = vld [vmem:[%s456 + $0xf0] sm:$0xff]
        %v5088 = vld [vmem:[%s456 + $0xf8] sm:$0xff]
        %v5089 = vld [vmem:[%s542] sm:$0x3]
        %v5091 = vlaneseq
        %v5092 = vshrl.u32 %v5091, 7
        %v5093 = vsub.s32 0, %v5092
        %v5094 = vrot.slane %v5089, %v5093
        %v5095 = vlaneseq
        %v5096 = vshrl.u32 %v5095, 7
        %v5097 = vsub.s32 1, %v5096
        %v5098 = vrot.slane %v5089, %v5097
        %5101 = vmatprep.subr.mxu0 %v5088
        %5102 = vmatpush1.msra.mxu0 %v5087
        %5103 = vmatprep.subr.mxu0 %v5086
        %5104 = vmatpush1.msra.mxu0 %v5085
        %5105 = vmatprep.subr.mxu0 %v5084
        %5106 = vmatpush1.msra.mxu0 %v5083
        %5107 = vmatprep.subr.mxu0 %v5082
        %5108 = vmatpush1.msra.mxu0 %v5081
        %5109 = vmatprep.subr.mxu0 %v5080
        %5110 = vmatpush1.msra.mxu0 %v5079
        %5111 = vmatprep.subr.mxu0 %v5078
        %5112 = vmatpush1.msra.mxu0 %v5077
        %5113 = vmatprep.subr.mxu0 %v5076
        %5114 = vmatpush1.msra.mxu0 %v5075
        %5115 = vmatprep.subr.mxu0 %v5074
        %5116 = vmatpush1.msra.mxu0 %v5073
        %5117 = vmatprep.subr.mxu0 %v5072
        %5118 = vmatpush1.msra.mxu0 %v5071
        %5119 = vmatprep.subr.mxu0 %v5070
        %5120 = vmatpush1.msra.mxu0 %v5069
        %5121 = vmatprep.subr.mxu0 %v5068
        %5122 = vmatpush1.msra.mxu0 %v5067
        %5123 = vmatprep.subr.mxu0 %v5066
        %5124 = vmatpush1.msra.mxu0 %v5065
        %5125 = vmatprep.subr.mxu0 %v5064
        %5126 = vmatpush1.msra.mxu0 %v5063
        %5127 = vmatprep.subr.mxu0 %v5062
        %5128 = vmatpush1.msra.mxu0 %v5061
        %5129 = vmatprep.subr.mxu0 %v5060
        %5130 = vmatpush1.msra.mxu0 %v5059
        %5131 = vmatprep.subr.mxu0 %v5058
        %5132 = vmatpush1.msra.mxu0 %v5057
        %5133 = vmatprep.subr.mxu0 0.0
        %5134 = vmatpush2.msra.mxu0 0.0
        %5135 = vmatprep.subr.mxu0 0.0
        %5136 = vmatpush2.msra.mxu0 0.0
        %5137 = vmatprep.subr.mxu0 0.0
        %5138 = vmatpush2.msra.mxu0 0.0
        %5139 = vmatprep.subr.mxu0 0.0
        %5140 = vmatpush2.msra.mxu0 0.0
        %5141 = vmatprep.subr.mxu0 0.0
        %5142 = vmatpush2.msra.mxu0 0.0
        %5143 = vmatprep.subr.mxu0 0.0
        %5144 = vmatpush2.msra.mxu0 0.0
        %5145 = vmatprep.subr.mxu0 0.0
        %5146 = vmatpush2.msra.mxu0 0.0
        %5147 = vmatprep.subr.mxu0 0.0
        %5148 = vmatpush2.msra.mxu0 0.0
        %5149 = vmatprep.subr.mxu0 0.0
        %5150 = vmatpush2.msra.mxu0 0.0
        %5151 = vmatprep.subr.mxu0 0.0
        %5152 = vmatpush2.msra.mxu0 0.0
        %5153 = vmatprep.subr.mxu0 0.0
        %5154 = vmatpush2.msra.mxu0 0.0
        %5155 = vmatprep.subr.mxu0 0.0
        %5156 = vmatpush2.msra.mxu0 0.0
        %5157 = vmatprep.subr.mxu0 0.0
        %5158 = vmatpush2.msra.mxu0 0.0
        %5159 = vmatprep.subr.mxu0 0.0
        %5160 = vmatpush2.msra.mxu0 0.0
        %5161 = vmatprep.subr.mxu0 0.0
        %5162 = vmatpush2.msra.mxu0 0.0
        %5163 = vmatprep.subr.mxu0 0.0
        %5164 = vmatpush2.msra.mxu0 0.0
        %5165 = vmatprep.mubr.f32.mxu0 0.0
        %5166 = vmatmul.mubr.f32.gmra.mxu0 %v5041
        %v5167 = vpop.f32.mrf.mxu0
        %v5168 = vadd.f32 %v5094, %v5167
        %v5169 = vpop.f32.mrf.mxu0
        %v5170 = vadd.f32 %v5098, %v5169
        %5171 = vmatprep.mubr.f32.mxu0 0.0
        %5172 = vmatmul.mubr.f32.gmra.mxu0 %v5042
        %v5173 = vpop.f32.mrf.mxu0
        %v5174 = vadd.f32 %v5094, %v5173
        %v5175 = vpop.f32.mrf.mxu0
        %v5176 = vadd.f32 %v5098, %v5175
        %5177 = vmatprep.mubr.f32.mxu0 0.0
        %5178 = vmatmul.mubr.f32.gmra.mxu0 %v5043
        %v5179 = vpop.f32.mrf.mxu0
        %v5180 = vadd.f32 %v5094, %v5179
        %v5181 = vpop.f32.mrf.mxu0
        %v5182 = vadd.f32 %v5098, %v5181
        %5183 = vmatprep.mubr.f32.mxu0 0.0
        %5184 = vmatmul.mubr.f32.gmra.mxu0 %v5044
        %v5185 = vpop.f32.mrf.mxu0
        %v5186 = vadd.f32 %v5094, %v5185
        %v5187 = vpop.f32.mrf.mxu0
        %v5188 = vadd.f32 %v5098, %v5187
        %5189 = vmatprep.mubr.f32.mxu0 0.0
        %5190 = vmatmul.mubr.f32.gmra.mxu0 %v5045
        %v5191 = vpop.f32.mrf.mxu0
        %v5192 = vadd.f32 %v5094, %v5191
        %v5193 = vpop.f32.mrf.mxu0
        %v5194 = vadd.f32 %v5098, %v5193
        %5195 = vmatprep.mubr.f32.mxu0 0.0
        %5196 = vmatmul.mubr.f32.gmra.mxu0 %v5046
        %v5197 = vpop.f32.mrf.mxu0
        %v5198 = vadd.f32 %v5094, %v5197
        %v5199 = vpop.f32.mrf.mxu0
        %v5200 = vadd.f32 %v5098, %v5199
        %5201 = vmatprep.mubr.f32.mxu0 0.0
        %5202 = vmatmul.mubr.f32.gmra.mxu0 %v5047
        %v5203 = vpop.f32.mrf.mxu0
        %v5204 = vadd.f32 %v5094, %v5203
        %v5205 = vpop.f32.mrf.mxu0
        %v5206 = vadd.f32 %v5098, %v5205
        %5207 = vmatprep.mubr.f32.mxu0 0.0
        %5208 = vmatmul.mubr.f32.gmra.mxu0 %v5048
        %v5209 = vpop.f32.mrf.mxu0
        %v5210 = vadd.f32 %v5094, %v5209
        %v5211 = vpop.f32.mrf.mxu0
        %v5212 = vadd.f32 %v5098, %v5211
        %5213 = vmatprep.mubr.f32.mxu0 0.0
        %5214 = vmatmul.mubr.f32.gmra.mxu0 %v5049
        %v5215 = vpop.f32.mrf.mxu0
        %v5216 = vadd.f32 %v5094, %v5215
        %v5217 = vpop.f32.mrf.mxu0
        %v5218 = vadd.f32 %v5098, %v5217
        %5219 = vmatprep.mubr.f32.mxu0 0.0
        %5220 = vmatmul.mubr.f32.gmra.mxu0 %v5050
        %v5221 = vpop.f32.mrf.mxu0
        %v5222 = vadd.f32 %v5094, %v5221
        %v5223 = vpop.f32.mrf.mxu0
        %v5224 = vadd.f32 %v5098, %v5223
        %5225 = vmatprep.mubr.f32.mxu0 0.0
        %5226 = vmatmul.mubr.f32.gmra.mxu0 %v5051
        %v5227 = vpop.f32.mrf.mxu0
        %v5228 = vadd.f32 %v5094, %v5227
        %v5229 = vpop.f32.mrf.mxu0
        %v5230 = vadd.f32 %v5098, %v5229
        %5231 = vmatprep.mubr.f32.mxu0 0.0
        %5232 = vmatmul.mubr.f32.gmra.mxu0 %v5052
        %v5233 = vpop.f32.mrf.mxu0
        %v5234 = vadd.f32 %v5094, %v5233
        %v5235 = vpop.f32.mrf.mxu0
        %v5236 = vadd.f32 %v5098, %v5235
        %5237 = vmatprep.mubr.f32.mxu0 0.0
        %5238 = vmatmul.mubr.f32.gmra.mxu0 %v5053
        %v5239 = vpop.f32.mrf.mxu0
        %v5240 = vadd.f32 %v5094, %v5239
        %v5241 = vpop.f32.mrf.mxu0
        %v5242 = vadd.f32 %v5098, %v5241
        %5243 = vmatprep.mubr.f32.mxu0 0.0
        %5244 = vmatmul.mubr.f32.gmra.mxu0 %v5054
        %v5245 = vpop.f32.mrf.mxu0
        %v5246 = vadd.f32 %v5094, %v5245
        %v5247 = vpop.f32.mrf.mxu0
        %v5248 = vadd.f32 %v5098, %v5247
        %5249 = vmatprep.mubr.f32.mxu0 0.0
        %5250 = vmatmul.mubr.f32.gmra.mxu0 %v5055
        %v5251 = vpop.f32.mrf.mxu0
        %v5252 = vadd.f32 %v5094, %v5251
        %v5253 = vpop.f32.mrf.mxu0
        %v5254 = vadd.f32 %v5098, %v5253
        %5255 = vmatprep.mubr.f32.mxu0 0.0
        %5256 = vmatmul.mubr.f32.gmra.mxu0 %v5056
        %v5257 = vpop.f32.mrf.mxu0
        %v5258 = vadd.f32 %v5094, %v5257
        %v5259 = vpop.f32.mrf.mxu0
        %v5260 = vadd.f32 %v5098, %v5259
        %5261 = vdwg.mxu0
        %v5262 = vmul.f32 %v5168, 0.5
        %v5263 = vmul.f32 %v5170, 0.5
        %v5264 = vmul.f32 %v5174, 0.5
        %v5265 = vmul.f32 %v5176, 0.5
        %v5266 = vmul.f32 %v5180, 0.5
        %v5267 = vmul.f32 %v5182, 0.5
        %v5268 = vmul.f32 %v5186, 0.5
        %v5269 = vmul.f32 %v5188, 0.5
        %v5270 = vmul.f32 %v5192, 0.5
        %v5271 = vmul.f32 %v5194, 0.5
        %v5272 = vmul.f32 %v5198, 0.5
        %v5273 = vmul.f32 %v5200, 0.5
        %v5274 = vmul.f32 %v5204, 0.5
        %v5275 = vmul.f32 %v5206, 0.5
        %v5276 = vmul.f32 %v5210, 0.5
        %v5277 = vmul.f32 %v5212, 0.5
        %v5278 = vmul.f32 %v5216, 0.5
        %v5279 = vmul.f32 %v5218, 0.5
        %v5280 = vmul.f32 %v5222, 0.5
        %v5281 = vmul.f32 %v5224, 0.5
        %v5282 = vmul.f32 %v5228, 0.5
        %v5283 = vmul.f32 %v5230, 0.5
        %v5284 = vmul.f32 %v5234, 0.5
        %v5285 = vmul.f32 %v5236, 0.5
        %v5286 = vmul.f32 %v5240, 0.5
        %v5287 = vmul.f32 %v5242, 0.5
        %v5288 = vmul.f32 %v5246, 0.5
        %v5289 = vmul.f32 %v5248, 0.5
        %v5290 = vmul.f32 %v5252, 0.5
        %v5291 = vmul.f32 %v5254, 0.5
        %v5292 = vmul.f32 %v5258, 0.5
        %v5293 = vmul.f32 %v5260, 0.5
        %v5294 = vmul.f32 %v5168, 0.044715
        %v5295 = vmul.f32 %v5170, 0.044715
        %v5296 = vmul.f32 %v5174, 0.044715
        %v5297 = vmul.f32 %v5176, 0.044715
        %v5298 = vmul.f32 %v5180, 0.044715
        %v5299 = vmul.f32 %v5182, 0.044715
        %v5300 = vmul.f32 %v5186, 0.044715
        %v5301 = vmul.f32 %v5188, 0.044715
        %v5302 = vmul.f32 %v5192, 0.044715
        %v5303 = vmul.f32 %v5194, 0.044715
        %v5304 = vmul.f32 %v5198, 0.044715
        %v5305 = vmul.f32 %v5200, 0.044715
        %v5306 = vmul.f32 %v5204, 0.044715
        %v5307 = vmul.f32 %v5206, 0.044715
        %v5308 = vmul.f32 %v5210, 0.044715
        %v5309 = vmul.f32 %v5212, 0.044715
        %v5310 = vmul.f32 %v5216, 0.044715
        %v5311 = vmul.f32 %v5218, 0.044715
        %v5312 = vmul.f32 %v5222, 0.044715
        %v5313 = vmul.f32 %v5224, 0.044715
        %v5314 = vmul.f32 %v5228, 0.044715
        %v5315 = vmul.f32 %v5230, 0.044715
        %v5316 = vmul.f32 %v5234, 0.044715
        %v5317 = vmul.f32 %v5236, 0.044715
        %v5318 = vmul.f32 %v5240, 0.044715
        %v5319 = vmul.f32 %v5242, 0.044715
        %v5320 = vmul.f32 %v5246, 0.044715
        %v5321 = vmul.f32 %v5248, 0.044715
        %v5322 = vmul.f32 %v5252, 0.044715
        %v5323 = vmul.f32 %v5254, 0.044715
        %v5324 = vmul.f32 %v5258, 0.044715
        %v5325 = vmul.f32 %v5260, 0.044715
        %v5326 = vmul.f32 %v5294, %v5168
        %v5327 = vmul.f32 %v5295, %v5170
        %v5328 = vmul.f32 %v5296, %v5174
        %v5329 = vmul.f32 %v5297, %v5176
        %v5330 = vmul.f32 %v5298, %v5180
        %v5331 = vmul.f32 %v5299, %v5182
        %v5332 = vmul.f32 %v5300, %v5186
        %v5333 = vmul.f32 %v5301, %v5188
        %v5334 = vmul.f32 %v5302, %v5192
        %v5335 = vmul.f32 %v5303, %v5194
        %v5336 = vmul.f32 %v5304, %v5198
        %v5337 = vmul.f32 %v5305, %v5200
        %v5338 = vmul.f32 %v5306, %v5204
        %v5339 = vmul.f32 %v5307, %v5206
        %v5340 = vmul.f32 %v5308, %v5210
        %v5341 = vmul.f32 %v5309, %v5212
        %v5342 = vmul.f32 %v5310, %v5216
        %v5343 = vmul.f32 %v5311, %v5218
        %v5344 = vmul.f32 %v5312, %v5222
        %v5345 = vmul.f32 %v5313, %v5224
        %v5346 = vmul.f32 %v5314, %v5228
        %v5347 = vmul.f32 %v5315, %v5230
        %v5348 = vmul.f32 %v5316, %v5234
        %v5349 = vmul.f32 %v5317, %v5236
        %v5350 = vmul.f32 %v5318, %v5240
        %v5351 = vmul.f32 %v5319, %v5242
        %v5352 = vmul.f32 %v5320, %v5246
        %v5353 = vmul.f32 %v5321, %v5248
        %v5354 = vmul.f32 %v5322, %v5252
        %v5355 = vmul.f32 %v5323, %v5254
        %v5356 = vmul.f32 %v5324, %v5258
        %v5357 = vmul.f32 %v5325, %v5260
        %v5358 = vmul.f32 %v5326, %v5168
        %v5359 = vmul.f32 %v5327, %v5170
        %v5360 = vmul.f32 %v5328, %v5174
        %v5361 = vmul.f32 %v5329, %v5176
        %v5362 = vmul.f32 %v5330, %v5180
        %v5363 = vmul.f32 %v5331, %v5182
        %v5364 = vmul.f32 %v5332, %v5186
        %v5365 = vmul.f32 %v5333, %v5188
        %v5366 = vmul.f32 %v5334, %v5192
        %v5367 = vmul.f32 %v5335, %v5194
        %v5368 = vmul.f32 %v5336, %v5198
        %v5369 = vmul.f32 %v5337, %v5200
        %v5370 = vmul.f32 %v5338, %v5204
        %v5371 = vmul.f32 %v5339, %v5206
        %v5372 = vmul.f32 %v5340, %v5210
        %v5373 = vmul.f32 %v5341, %v5212
        %v5374 = vmul.f32 %v5342, %v5216
        %v5375 = vmul.f32 %v5343, %v5218
        %v5376 = vmul.f32 %v5344, %v5222
        %v5377 = vmul.f32 %v5345, %v5224
        %v5378 = vmul.f32 %v5346, %v5228
        %v5379 = vmul.f32 %v5347, %v5230
        %v5380 = vmul.f32 %v5348, %v5234
        %v5381 = vmul.f32 %v5349, %v5236
        %v5382 = vmul.f32 %v5350, %v5240
        %v5383 = vmul.f32 %v5351, %v5242
        %v5384 = vmul.f32 %v5352, %v5246
        %v5385 = vmul.f32 %v5353, %v5248
        %v5386 = vmul.f32 %v5354, %v5252
        %v5387 = vmul.f32 %v5355, %v5254
        %v5388 = vmul.f32 %v5356, %v5258
        %v5389 = vmul.f32 %v5357, %v5260
        %v5390 = vadd.f32 %v5168, %v5358
        %v5391 = vadd.f32 %v5170, %v5359
        %v5392 = vadd.f32 %v5174, %v5360
        %v5393 = vadd.f32 %v5176, %v5361
        %v5394 = vadd.f32 %v5180, %v5362
        %v5395 = vadd.f32 %v5182, %v5363
        %v5396 = vadd.f32 %v5186, %v5364
        %v5397 = vadd.f32 %v5188, %v5365
        %v5398 = vadd.f32 %v5192, %v5366
        %v5399 = vadd.f32 %v5194, %v5367
        %v5400 = vadd.f32 %v5198, %v5368
        %v5401 = vadd.f32 %v5200, %v5369
        %v5402 = vadd.f32 %v5204, %v5370
        %v5403 = vadd.f32 %v5206, %v5371
        %v5404 = vadd.f32 %v5210, %v5372
        %v5405 = vadd.f32 %v5212, %v5373
        %v5406 = vadd.f32 %v5216, %v5374
        %v5407 = vadd.f32 %v5218, %v5375
        %v5408 = vadd.f32 %v5222, %v5376
        %v5409 = vadd.f32 %v5224, %v5377
        %v5410 = vadd.f32 %v5228, %v5378
        %v5411 = vadd.f32 %v5230, %v5379
        %v5412 = vadd.f32 %v5234, %v5380
        %v5413 = vadd.f32 %v5236, %v5381
        %v5414 = vadd.f32 %v5240, %v5382
        %v5415 = vadd.f32 %v5242, %v5383
        %v5416 = vadd.f32 %v5246, %v5384
        %v5417 = vadd.f32 %v5248, %v5385
        %v5418 = vadd.f32 %v5252, %v5386
        %v5419 = vadd.f32 %v5254, %v5387
        %v5420 = vadd.f32 %v5258, %v5388
        %v5421 = vadd.f32 %v5260, %v5389
        %v5422 = vmul.f32 %v5390, 0.7978846
        %v5423 = vmul.f32 %v5391, 0.7978846
        %v5424 = vmul.f32 %v5392, 0.7978846
        %v5425 = vmul.f32 %v5393, 0.7978846
        %v5426 = vmul.f32 %v5394, 0.7978846
        %v5427 = vmul.f32 %v5395, 0.7978846
        %v5428 = vmul.f32 %v5396, 0.7978846
        %v5429 = vmul.f32 %v5397, 0.7978846
        %v5430 = vmul.f32 %v5398, 0.7978846
        %v5431 = vmul.f32 %v5399, 0.7978846
        %v5432 = vmul.f32 %v5400, 0.7978846
        %v5433 = vmul.f32 %v5401, 0.7978846
        %v5434 = vmul.f32 %v5402, 0.7978846
        %v5435 = vmul.f32 %v5403, 0.7978846
        %v5436 = vmul.f32 %v5404, 0.7978846
        %v5437 = vmul.f32 %v5405, 0.7978846
        %v5438 = vmul.f32 %v5406, 0.7978846
        %v5439 = vmul.f32 %v5407, 0.7978846
        %v5440 = vmul.f32 %v5408, 0.7978846
        %v5441 = vmul.f32 %v5409, 0.7978846
        %v5442 = vmul.f32 %v5410, 0.7978846
        %v5443 = vmul.f32 %v5411, 0.7978846
        %v5444 = vmul.f32 %v5412, 0.7978846
        %v5445 = vmul.f32 %v5413, 0.7978846
        %v5446 = vmul.f32 %v5414, 0.7978846
        %v5447 = vmul.f32 %v5415, 0.7978846
        %v5448 = vmul.f32 %v5416, 0.7978846
        %v5449 = vmul.f32 %v5417, 0.7978846
        %v5450 = vmul.f32 %v5418, 0.7978846
        %v5451 = vmul.f32 %v5419, 0.7978846
        %v5452 = vmul.f32 %v5420, 0.7978846
        %v5453 = vmul.f32 %v5421, 0.7978846
        %v5454 = vtanh.pop %v5422
        %v5455 = vtanh.pop %v5423
        %v5456 = vtanh.pop %v5424
        %v5457 = vtanh.pop %v5425
        %v5458 = vtanh.pop %v5426
        %v5459 = vtanh.pop %v5427
        %v5460 = vtanh.pop %v5428
        %v5461 = vtanh.pop %v5429
        %v5462 = vtanh.pop %v5430
        %v5463 = vtanh.pop %v5431
        %v5464 = vtanh.pop %v5432
        %v5465 = vtanh.pop %v5433
        %v5466 = vtanh.pop %v5434
        %v5467 = vtanh.pop %v5435
        %v5468 = vtanh.pop %v5436
        %v5469 = vtanh.pop %v5437
        %v5470 = vtanh.pop %v5438
        %v5471 = vtanh.pop %v5439
        %v5472 = vtanh.pop %v5440
        %v5473 = vtanh.pop %v5441
        %v5474 = vtanh.pop %v5442
        %v5475 = vtanh.pop %v5443
        %v5476 = vtanh.pop %v5444
        %v5477 = vtanh.pop %v5445
        %v5478 = vtanh.pop %v5446
        %v5479 = vtanh.pop %v5447
        %v5480 = vtanh.pop %v5448
        %v5481 = vtanh.pop %v5449
        %v5482 = vtanh.pop %v5450
        %v5483 = vtanh.pop %v5451
        %v5484 = vtanh.pop %v5452
        %v5485 = vtanh.pop %v5453
        %v5486 = vadd.f32 %v5454, 1.0
        %v5487 = vadd.f32 %v5455, 1.0
        %v5488 = vadd.f32 %v5456, 1.0
        %v5489 = vadd.f32 %v5457, 1.0
        %v5490 = vadd.f32 %v5458, 1.0
        %v5491 = vadd.f32 %v5459, 1.0
        %v5492 = vadd.f32 %v5460, 1.0
        %v5493 = vadd.f32 %v5461, 1.0
        %v5494 = vadd.f32 %v5462, 1.0
        %v5495 = vadd.f32 %v5463, 1.0
        %v5496 = vadd.f32 %v5464, 1.0
        %v5497 = vadd.f32 %v5465, 1.0
        %v5498 = vadd.f32 %v5466, 1.0
        %v5499 = vadd.f32 %v5467, 1.0
        %v5500 = vadd.f32 %v5468, 1.0
        %v5501 = vadd.f32 %v5469, 1.0
        %v5502 = vadd.f32 %v5470, 1.0
        %v5503 = vadd.f32 %v5471, 1.0
        %v5504 = vadd.f32 %v5472, 1.0
        %v5505 = vadd.f32 %v5473, 1.0
        %v5506 = vadd.f32 %v5474, 1.0
        %v5507 = vadd.f32 %v5475, 1.0
        %v5508 = vadd.f32 %v5476, 1.0
        %v5509 = vadd.f32 %v5477, 1.0
        %v5510 = vadd.f32 %v5478, 1.0
        %v5511 = vadd.f32 %v5479, 1.0
        %v5512 = vadd.f32 %v5480, 1.0
        %v5513 = vadd.f32 %v5481, 1.0
        %v5514 = vadd.f32 %v5482, 1.0
        %v5515 = vadd.f32 %v5483, 1.0
        %v5516 = vadd.f32 %v5484, 1.0
        %v5517 = vadd.f32 %v5485, 1.0
        %v5518 = vmul.f32 %v5262, %v5486
        %v5519 = vmul.f32 %v5263, %v5487
        %v5520 = vmul.f32 %v5264, %v5488
        %v5521 = vmul.f32 %v5265, %v5489
        %v5522 = vmul.f32 %v5266, %v5490
        %v5523 = vmul.f32 %v5267, %v5491
        %v5524 = vmul.f32 %v5268, %v5492
        %v5525 = vmul.f32 %v5269, %v5493
        %v5526 = vmul.f32 %v5270, %v5494
        %v5527 = vmul.f32 %v5271, %v5495
        %v5528 = vmul.f32 %v5272, %v5496
        %v5529 = vmul.f32 %v5273, %v5497
        %v5530 = vmul.f32 %v5274, %v5498
        %v5531 = vmul.f32 %v5275, %v5499
        %v5532 = vmul.f32 %v5276, %v5500
        %v5533 = vmul.f32 %v5277, %v5501
        %v5534 = vmul.f32 %v5278, %v5502
        %v5535 = vmul.f32 %v5279, %v5503
        %v5536 = vmul.f32 %v5280, %v5504
        %v5537 = vmul.f32 %v5281, %v5505
        %v5538 = vmul.f32 %v5282, %v5506
        %v5539 = vmul.f32 %v5283, %v5507
        %v5540 = vmul.f32 %v5284, %v5508
        %v5541 = vmul.f32 %v5285, %v5509
        %v5542 = vmul.f32 %v5286, %v5510
        %v5543 = vmul.f32 %v5287, %v5511
        %v5544 = vmul.f32 %v5288, %v5512
        %v5545 = vmul.f32 %v5289, %v5513
        %v5546 = vmul.f32 %v5290, %v5514
        %v5547 = vmul.f32 %v5291, %v5515
        %v5548 = vmul.f32 %v5292, %v5516
        %v5549 = vmul.f32 %v5293, %v5517
        %v5550 = vld [vmem:[%s465] sm:$0xff]
        %v5551 = vld [vmem:[%s465 + $0x8] sm:$0xff]
        %v5552 = vld [vmem:[%s465 + $0x10] sm:$0xff]
        %v5553 = vld [vmem:[%s465 + $0x18] sm:$0xff]
        %v5554 = vld [vmem:[%s465 + $0x20] sm:$0xff]
        %v5555 = vld [vmem:[%s465 + $0x28] sm:$0xff]
        %v5556 = vld [vmem:[%s465 + $0x30] sm:$0xff]
        %v5557 = vld [vmem:[%s465 + $0x38] sm:$0xff]
        %v5558 = vld [vmem:[%s465 + $0x40] sm:$0xff]
        %v5559 = vld [vmem:[%s465 + $0x48] sm:$0xff]
        %v5560 = vld [vmem:[%s465 + $0x50] sm:$0xff]
        %v5561 = vld [vmem:[%s465 + $0x58] sm:$0xff]
        %v5562 = vld [vmem:[%s465 + $0x60] sm:$0xff]
        %v5563 = vld [vmem:[%s465 + $0x68] sm:$0xff]
        %v5564 = vld [vmem:[%s465 + $0x70] sm:$0xff]
        %v5565 = vld [vmem:[%s465 + $0x78] sm:$0xff]
        %v5566 = vld [vmem:[%s465 + $0x80] sm:$0xff]
        %v5567 = vld [vmem:[%s465 + $0x88] sm:$0xff]
        %v5568 = vld [vmem:[%s465 + $0x90] sm:$0xff]
        %v5569 = vld [vmem:[%s465 + $0x98] sm:$0xff]
        %v5570 = vld [vmem:[%s465 + $0xa0] sm:$0xff]
        %v5571 = vld [vmem:[%s465 + $0xa8] sm:$0xff]
        %v5572 = vld [vmem:[%s465 + $0xb0] sm:$0xff]
        %v5573 = vld [vmem:[%s465 + $0xb8] sm:$0xff]
        %v5574 = vld [vmem:[%s465 + $0xc0] sm:$0xff]
        %v5575 = vld [vmem:[%s465 + $0xc8] sm:$0xff]
        %v5576 = vld [vmem:[%s465 + $0xd0] sm:$0xff]
        %v5577 = vld [vmem:[%s465 + $0xd8] sm:$0xff]
        %v5578 = vld [vmem:[%s465 + $0xe0] sm:$0xff]
        %v5579 = vld [vmem:[%s465 + $0xe8] sm:$0xff]
        %v5580 = vld [vmem:[%s465 + $0xf0] sm:$0xff]
        %v5581 = vld [vmem:[%s465 + $0xf8] sm:$0xff]
        %v5582 = vlaneseq
        %v5583 = vshrl.u32 %v5582, 7
        %v5584 = vsub.s32 5, %v5583
        %v5585 = vrot.slane %v596, %v5584
        %5586 = vmatprep.subr.mxu0 0.0
        %5587 = vmatpush1.msra.mxu0 %v5565
        %5588 = vmatprep.subr.mxu0 0.0
        %5589 = vmatpush1.msra.mxu0 %v5564
        %5590 = vmatprep.subr.mxu0 0.0
        %5591 = vmatpush1.msra.mxu0 %v5563
        %5592 = vmatprep.subr.mxu0 0.0
        %5593 = vmatpush1.msra.mxu0 %v5562
        %5594 = vmatprep.subr.mxu0 0.0
        %5595 = vmatpush1.msra.mxu0 %v5561
        %5596 = vmatprep.subr.mxu0 0.0
        %5597 = vmatpush1.msra.mxu0 %v5560
        %5598 = vmatprep.subr.mxu0 0.0
        %5599 = vmatpush1.msra.mxu0 %v5559
        %5600 = vmatprep.subr.mxu0 0.0
        %5601 = vmatpush1.msra.mxu0 %v5558
        %5602 = vmatprep.subr.mxu0 0.0
        %5603 = vmatpush1.msra.mxu0 %v5557
        %5604 = vmatprep.subr.mxu0 0.0
        %5605 = vmatpush1.msra.mxu0 %v5556
        %5606 = vmatprep.subr.mxu0 0.0
        %5607 = vmatpush1.msra.mxu0 %v5555
        %5608 = vmatprep.subr.mxu0 0.0
        %5609 = vmatpush1.msra.mxu0 %v5554
        %5610 = vmatprep.subr.mxu0 0.0
        %5611 = vmatpush1.msra.mxu0 %v5553
        %5612 = vmatprep.subr.mxu0 0.0
        %5613 = vmatpush1.msra.mxu0 %v5552
        %5614 = vmatprep.subr.mxu0 0.0
        %5615 = vmatpush1.msra.mxu0 %v5551
        %5616 = vmatprep.subr.mxu0 0.0
        %5617 = vmatpush1.msra.mxu0 %v5550
        %5618 = vmatprep.subr.mxu0 0.0
        %5619 = vmatpush2.msra.mxu0 %v5581
        %5620 = vmatprep.subr.mxu0 0.0
        %5621 = vmatpush2.msra.mxu0 %v5580
        %5622 = vmatprep.subr.mxu0 0.0
        %5623 = vmatpush2.msra.mxu0 %v5579
        %5624 = vmatprep.subr.mxu0 0.0
        %5625 = vmatpush2.msra.mxu0 %v5578
        %5626 = vmatprep.subr.mxu0 0.0
        %5627 = vmatpush2.msra.mxu0 %v5577
        %5628 = vmatprep.subr.mxu0 0.0
        %5629 = vmatpush2.msra.mxu0 %v5576
        %5630 = vmatprep.subr.mxu0 0.0
        %5631 = vmatpush2.msra.mxu0 %v5575
        %5632 = vmatprep.subr.mxu0 0.0
        %5633 = vmatpush2.msra.mxu0 %v5574
        %5634 = vmatprep.subr.mxu0 0.0
        %5635 = vmatpush2.msra.mxu0 %v5573
        %5636 = vmatprep.subr.mxu0 0.0
        %5637 = vmatpush2.msra.mxu0 %v5572
        %5638 = vmatprep.subr.mxu0 0.0
        %5639 = vmatpush2.msra.mxu0 %v5571
        %5640 = vmatprep.subr.mxu0 0.0
        %5641 = vmatpush2.msra.mxu0 %v5570
        %5642 = vmatprep.subr.mxu0 0.0
        %5643 = vmatpush2.msra.mxu0 %v5569
        %5644 = vmatprep.subr.mxu0 0.0
        %5645 = vmatpush2.msra.mxu0 %v5568
        %5646 = vmatprep.subr.mxu0 0.0
        %5647 = vmatpush2.msra.mxu0 %v5567
        %5648 = vmatprep.subr.mxu0 0.0
        %5649 = vmatpush2.msra.mxu0 %v5566
        %5650 = vmatprep.mubr.f32.mxu0 %v5519
        %5651 = vmatmul.mubr.f32.gmra.mxu0 %v5518
        %v5652 = vpop.f32.mrf.mxu0
        %v5653 = vadd.f32 %v5585, %v5652
        %v5654 = vpop.f32.mrf.mxu0
        %5655 = vmatprep.mubr.f32.mxu0 %v5521
        %5656 = vmatmul.mubr.f32.gmra.mxu0 %v5520
        %v5657 = vpop.f32.mrf.mxu0
        %v5658 = vadd.f32 %v5585, %v5657
        %v5659 = vpop.f32.mrf.mxu0
        %5660 = vmatprep.mubr.f32.mxu0 %v5523
        %5661 = vmatmul.mubr.f32.gmra.mxu0 %v5522
        %v5662 = vpop.f32.mrf.mxu0
        %v5663 = vadd.f32 %v5585, %v5662
        %v5664 = vpop.f32.mrf.mxu0
        %5665 = vmatprep.mubr.f32.mxu0 %v5525
        %5666 = vmatmul.mubr.f32.gmra.mxu0 %v5524
        %v5667 = vpop.f32.mrf.mxu0
        %v5668 = vadd.f32 %v5585, %v5667
        %v5669 = vpop.f32.mrf.mxu0
        %5670 = vmatprep.mubr.f32.mxu0 %v5527
        %5671 = vmatmul.mubr.f32.gmra.mxu0 %v5526
        %v5672 = vpop.f32.mrf.mxu0
        %v5673 = vadd.f32 %v5585, %v5672
        %v5674 = vpop.f32.mrf.mxu0
        %5675 = vmatprep.mubr.f32.mxu0 %v5529
        %5676 = vmatmul.mubr.f32.gmra.mxu0 %v5528
        %v5677 = vpop.f32.mrf.mxu0
        %v5678 = vadd.f32 %v5585, %v5677
        %v5679 = vpop.f32.mrf.mxu0
        %5680 = vmatprep.mubr.f32.mxu0 %v5531
        %5681 = vmatmul.mubr.f32.gmra.mxu0 %v5530
        %v5682 = vpop.f32.mrf.mxu0
        %v5683 = vadd.f32 %v5585, %v5682
        %v5684 = vpop.f32.mrf.mxu0
        %5685 = vmatprep.mubr.f32.mxu0 %v5533
        %5686 = vmatmul.mubr.f32.gmra.mxu0 %v5532
        %v5687 = vpop.f32.mrf.mxu0
        %v5688 = vadd.f32 %v5585, %v5687
        %v5689 = vpop.f32.mrf.mxu0
        %5690 = vmatprep.mubr.f32.mxu0 %v5535
        %5691 = vmatmul.mubr.f32.gmra.mxu0 %v5534
        %v5692 = vpop.f32.mrf.mxu0
        %v5693 = vadd.f32 %v5585, %v5692
        %v5694 = vpop.f32.mrf.mxu0
        %5695 = vmatprep.mubr.f32.mxu0 %v5537
        %5696 = vmatmul.mubr.f32.gmra.mxu0 %v5536
        %v5697 = vpop.f32.mrf.mxu0
        %v5698 = vadd.f32 %v5585, %v5697
        %v5699 = vpop.f32.mrf.mxu0
        %5700 = vmatprep.mubr.f32.mxu0 %v5539
        %5701 = vmatmul.mubr.f32.gmra.mxu0 %v5538
        %v5702 = vpop.f32.mrf.mxu0
        %v5703 = vadd.f32 %v5585, %v5702
        %v5704 = vpop.f32.mrf.mxu0
        %5705 = vmatprep.mubr.f32.mxu0 %v5541
        %5706 = vmatmul.mubr.f32.gmra.mxu0 %v5540
        %v5707 = vpop.f32.mrf.mxu0
        %v5708 = vadd.f32 %v5585, %v5707
        %v5709 = vpop.f32.mrf.mxu0
        %5710 = vmatprep.mubr.f32.mxu0 %v5543
        %5711 = vmatmul.mubr.f32.gmra.mxu0 %v5542
        %v5712 = vpop.f32.mrf.mxu0
        %v5713 = vadd.f32 %v5585, %v5712
        %v5714 = vpop.f32.mrf.mxu0
        %5715 = vmatprep.mubr.f32.mxu0 %v5545
        %5716 = vmatmul.mubr.f32.gmra.mxu0 %v5544
        %v5717 = vpop.f32.mrf.mxu0
        %v5718 = vadd.f32 %v5585, %v5717
        %v5719 = vpop.f32.mrf.mxu0
        %5720 = vmatprep.mubr.f32.mxu0 %v5547
        %5721 = vmatmul.mubr.f32.gmra.mxu0 %v5546
        %v5722 = vpop.f32.mrf.mxu0
        %v5723 = vadd.f32 %v5585, %v5722
        %v5724 = vpop.f32.mrf.mxu0
        %5725 = vmatprep.mubr.f32.mxu0 %v5549
        %5726 = vmatmul.mubr.f32.gmra.mxu0 %v5548
        %v5727 = vpop.f32.mrf.mxu0
        %v5728 = vadd.f32 %v5585, %v5727
        %v5729 = vpop.f32.mrf.mxu0
        %5730 = vdwg.mxu0
        %v5731 = vadd.f32 %v4825, %v5653
        %v5732 = vadd.f32 %v4826, %v5658
        %v5733 = vadd.f32 %v4827, %v5663
        %v5734 = vadd.f32 %v4828, %v5668
        %v5735 = vadd.f32 %v4829, %v5673
        %v5736 = vadd.f32 %v4830, %v5678
        %v5737 = vadd.f32 %v4831, %v5683
        %v5738 = vadd.f32 %v4832, %v5688
        %v5739 = vadd.f32 %v4833, %v5693
        %v5740 = vadd.f32 %v4834, %v5698
        %v5741 = vadd.f32 %v4835, %v5703
        %v5742 = vadd.f32 %v4836, %v5708
        %v5743 = vadd.f32 %v4837, %v5713
        %v5744 = vadd.f32 %v4838, %v5718
        %v5745 = vadd.f32 %v4839, %v5723
        %v5746 = vadd.f32 %v4840, %v5728
        %5747 = vst [vmem:[#allocation2] sm:$0xff] %v5731
        %5748 = vst [vmem:[#allocation2 + $0x8] sm:$0xff] %v5732
        %5749 = vst [vmem:[#allocation2 + $0x10] sm:$0xff] %v5733
        %5750 = vst [vmem:[#allocation2 + $0x18] sm:$0xff] %v5734
        %5751 = vst [vmem:[#allocation2 + $0x20] sm:$0xff] %v5735
        %5752 = vst [vmem:[#allocation2 + $0x28] sm:$0xff] %v5736
        %5753 = vst [vmem:[#allocation2 + $0x30] sm:$0xff] %v5737
        %5754 = vst [vmem:[#allocation2 + $0x38] sm:$0xff] %v5738
        %5755 = vst [vmem:[#allocation2 + $0x40] sm:$0xff] %v5739
        %5756 = vst [vmem:[#allocation2 + $0x48] sm:$0xff] %v5740
        %5757 = vst [vmem:[#allocation2 + $0x50] sm:$0xff] %v5741
        %5758 = vst [vmem:[#allocation2 + $0x58] sm:$0xff] %v5742
        %5759 = vst [vmem:[#allocation2 + $0x60] sm:$0xff] %v5743
        %5760 = vst [vmem:[#allocation2 + $0x68] sm:$0xff] %v5744
        %5761 = vst [vmem:[#allocation2 + $0x70] sm:$0xff] %v5745
        %5762 = vst [vmem:[#allocation2 + $0x78] sm:$0xff] %v5746
        %p5763 = scmp.eq.s32.totalorder %s36, 1
        // Predicated region
        $region77: #{siglip_encoder.1} parent=51 // pred_check
          %p5764 = pneg %p5763
        $region78: #{siglip_encoder.1} parent=51 // pred_check_branch
          %5766 = sbr.rel (%p5764) target = $region80
        $region79: #{siglip_encoder.1} parent=51 // pred_region
          %5767 = vst [vmem:[%s529] sm:$0xff] %v5731
          %5768 = vst [vmem:[%s529 + $0x8] sm:$0xff] %v5732
          %5769 = vst [vmem:[%s529 + $0x10] sm:$0xff] %v5733
          %5770 = vst [vmem:[%s529 + $0x18] sm:$0xff] %v5734
          %5771 = vst [vmem:[%s529 + $0x20] sm:$0xff] %v5735
          %5772 = vst [vmem:[%s529 + $0x28] sm:$0xff] %v5736
          %5773 = vst [vmem:[%s529 + $0x30] sm:$0xff] %v5737
          %5774 = vst [vmem:[%s529 + $0x38] sm:$0xff] %v5738
          %5775 = vst [vmem:[%s529 + $0x40] sm:$0xff] %v5739
          %5776 = vst [vmem:[%s529 + $0x48] sm:$0xff] %v5740
          %5777 = vst [vmem:[%s529 + $0x50] sm:$0xff] %v5741
          %5778 = vst [vmem:[%s529 + $0x58] sm:$0xff] %v5742
          %5779 = vst [vmem:[%s529 + $0x60] sm:$0xff] %v5743
          %5780 = vst [vmem:[%s529 + $0x68] sm:$0xff] %v5744
          %5781 = vst [vmem:[%s529 + $0x70] sm:$0xff] %v5745
          %5782 = vst [vmem:[%s529 + $0x78] sm:$0xff] %v5746
        $region80: #{siglip_encoder.1} parent=51 // pred_fallthru
          _
        %s5783 = sand.u32 %s259, 1
        %s5784 = scalar_lea.sflag [#allocation5], %s5783
        %s5785 = sand.u32 %s259, 1
        %s5786 = smul.addr %s5785, 128
        %s5787 = scalar_lea.vmem [#allocation12], %s5786
        // Predicated region
        $region81: #{siglip_encoder.1} parent=51 // pred_check
          %p5788 = pneg %p269
        $region82: #{siglip_encoder.1} parent=51 // pred_check_branch
          %5790 = sbr.rel (%p5788) target = $region84
        $region83: #{siglip_encoder.1} parent=51 // pred_region
          %s5791 = smul.u32 2, %s35
          %s5793 = ssub.s32 2048, 2048
          %5794 = vsyncadd %s5784, %s5793
          %s5795 = smul.addr %s5791, 8
          %s5796 = smul.addr %s5795, 128
          %s5797 = scalar_lea.hbm %s8, %s5796
          %s5798 = sshll.u32 %s5787, 4
          %s5799 = int_to_ptr.vmem [resolvable:$true] %s5798
          %5804 = dma.vmem_to_hbm [thread:$0]  %s5799, 2048, %s5797, %s5784, 128, 128, 8
        $region84: #{siglip_encoder.1} parent=51 // pred_fallthru
          _
      $region52: #{siglip_encoder.1} parent=5 // pred_fallthru
        _
      %p5805 = scmp.le.s32.totalorder 2, %s26
      // Predicated region
      $region85: #{siglip_encoder.1} parent=5 // pred_check
        %p5806 = pneg %p5805
      $region86: #{siglip_encoder.1} parent=5 // pred_check_branch
        %5808 = sbr.rel (%p5806) target = $region88
      $region87: #{siglip_encoder.1} parent=5 // pred_region
        %s5809 = ssub.s32 %s26, 2
        // Predicated region
        $region89: #{siglip_encoder.1} parent=87 // pred_check
          %p5810 = pneg %p275
        $region90: #{siglip_encoder.1} parent=87 // pred_check_branch
          %5812 = sbr.rel (%p5810) target = $region92
        $region91: #{siglip_encoder.1} parent=87 // pred_region
          %s5813 = sand.u32 %s260, 1
          %s5814 = scalar_lea.sflag [#allocation5], %s5813
          %s5815 = sand.u32 %s260, 1
          %s5816 = smul.addr %s5815, 128
          %s5817 = scalar_lea.vmem [#allocation12], %s5816
          %5818 = dma.done %s5814, 2048
        $region92: #{siglip_encoder.1} parent=87 // pred_fallthru
          _
      $region88: #{siglip_encoder.1} parent=5 // pred_fallthru
        _
    $region6: #{siglip_encoder.1} parent=1 // loop_footer
      %s30 = sadd.s32 1, %s26
    $region7: #{siglip_encoder.1} parent=1 // loop_footer_branch
      %25 = sbr.rel target = $region3
    $region8: #{siglip_encoder.1} parent=1 // loop_exit
      _
    %5819 = vsyncpa [#allocation4], 1
    %s5820 = scalar_lea.sflag [#allocation4], 1
    %5821 = vsyncpa %s5820, 1
    %5822 = vsyncpa [#allocation7], 1
    %s5823 = scalar_lea.sflag [#allocation7], 1
    %5824 = vsyncpa %s5823, 1
    %5825 = vsyncpa [#allocation10], 1
    %s5826 = scalar_lea.sflag [#allocation10], 1
    %5827 = vsyncpa %s5826, 1
    %5828 = vsyncpa [#allocation5], 1
    %s5829 = scalar_lea.sflag [#allocation5], 1
    %5830 = vsyncpa %s5829, 1

</llo_original>
